<compile_context>
chip_gen: v5e
topology: v5e:2x2
jax: 0.10.0
libtpu: 0.0.40
codegen_flags: <defaults>
</compile_context>

<pallas_src>
import functools
import math

import jax
import jax.numpy as jnp
from jax.experimental import pallas as pl
from jax.experimental.pallas import tpu as pltpu


# ----------------------------- helpers ------------------------------

def _pick_tile(n, cap, align):
    """Largest align-multiple tile <= cap dividing n, else the full dim."""
    if n <= cap:
        return n
    start = cap - (cap % align)
    for t in range(start, 0, -align):
        if n % t == 0:
            return t
    return n


# ----------------------- in-kernel building blocks -----------------------

def _add_layernorm(residual, y, gamma, beta, eps):
    """LayerNorm(residual + y) with single-pass (sum, sum-of-squares) statistics."""
    z = residual + y
    d = z.shape[-1]
    s1 = jnp.sum(z, axis=-1, keepdims=True)
    s2 = jnp.sum(z * z, axis=-1, keepdims=True)
    mean = s1 * (1.0 / d)
    var = s2 * (1.0 / d) - mean * mean
    return (z - mean) * jax.lax.rsqrt(var + eps) * gamma + beta


def _attention_block(x_q, x_kv, key_bias, causal_bias, w, b, gamma, beta,
                     num_heads, scale, eps):
    """Multi-head attention + residual + LayerNorm.

    w: (4, D, D) bf16 stacked [wq, wk, wv, wo]; b: (4, 1, D) f32.
    key_bias: (1, Sk) additive f32 (-1e9 on padded keys).
    causal_bias: (Sq, Sk) additive f32 or None.
    """
    Sq, D = x_q.shape
    Dh = D // num_heads

    xq16 = x_q.astype(jnp.bfloat16)
    xkv16 = x_kv.astype(jnp.bfloat16)

    q = jnp.dot(xq16, w[0], preferred_element_type=jnp.float32) + b[0]
    k = jnp.dot(xkv16, w[1], preferred_element_type=jnp.float32) + b[1]
    v = jnp.dot(xkv16, w[2], preferred_element_type=jnp.float32) + b[2]

    # Head-major (H, S, Dh) stacks: all heads share one batched score matmul,
    # one batched softmax and one batched context matmul.
    # TODO(synk): when D is a multiple of 128 this should become a pure reshape;
    #             at D=32 the lane-slice + leading-axis stack is the relayout-safe form.
    q3 = jnp.stack([q[:, h * Dh:(h + 1) * Dh] for h in range(num_heads)], axis=0)
    k3 = jnp.stack([k[:, h * Dh:(h + 1) * Dh] for h in range(num_heads)], axis=0)
    v3 = jnp.stack([v[:, h * Dh:(h + 1) * Dh] for h in range(num_heads)], axis=0)

    s = jnp.einsum("hqd,hkd->hqk", q3.astype(jnp.bfloat16), k3.astype(jnp.bfloat16),
                   preferred_element_type=jnp.float32) * scale
    s = s + key_bias[None, :, :]                       # key-padding bias (broadcast)
    if causal_bias is not None:
        s = s + causal_bias[None, :, :]                # look-ahead bias (broadcast)
    s = s - jnp.max(s, axis=-1, keepdims=True)         # stable softmax
    e = jnp.exp(s)
    p = e * pl.reciprocal(jnp.sum(e, axis=-1, keepdims=True), approx=True)

    ctx = jnp.einsum("hqk,hkd->hqd", p.astype(jnp.bfloat16), v3.astype(jnp.bfloat16),
                     preferred_element_type=jnp.float32)        # (H, Sq, Dh)
    ctx2 = jnp.concatenate([ctx[h] for h in range(num_heads)], axis=-1)  # (Sq, D)

    attn = jnp.dot(ctx2.astype(jnp.bfloat16), w[3],
                   preferred_element_type=jnp.float32) + b[3]
    return _add_layernorm(x_q, attn, gamma, beta, eps)


def _ffn_block(x, w1, b1, w2, b2, gamma, beta, eps):
    h = jnp.dot(x.astype(jnp.bfloat16), w1, preferred_element_type=jnp.float32) + b1
    h = jnp.maximum(h, 0.0).astype(jnp.bfloat16)       # ReLU; bf16 intermediate
    y = jnp.dot(h, w2, preferred_element_type=jnp.float32) + b2
    return _add_layernorm(x, y, gamma, beta, eps)


# ----------------------------- Pallas kernels ------------------------------

def _encoder_stack_kernel(x_ref, kbias_ref, aw_ref, ab_ref, lng_ref, lnb_ref,
                          w1_ref, b1_ref, w2_ref, b2_ref, o_ref, act_ref,
                          *, num_heads, scale, eps):
    """Grid = (batch, layer). Activations carried in VMEM scratch across layers."""
    l = pl.program_id(1)

    @pl.when(l == 0)
    def _():
        act_ref[...] = x_ref[0]

    x = act_ref[...]                                   # (S, D) f32, running activations
    kbias = kbias_ref[0]                               # (1, S) key-padding bias

    lng = lng_ref[0]                                   # (2, 1, D)
    lnb = lnb_ref[0]

    x = _attention_block(x, x, kbias, None, aw_ref[0], ab_ref[0],
                         lng[0], lnb[0], num_heads, scale, eps)
    x = _ffn_block(x, w1_ref[0], b1_ref[0], w2_ref[0], b2_ref[0],
                   lng[1], lnb[1], eps)

    act_ref[...] = x

    @pl.when(l == pl.num_programs(1) - 1)
    def _():
        o_ref[0] = x


def _decoder_stack_kernel(y_ref, enc_ref, dkb_ref, ekb_ref,
                          sw_ref, sb_ref, cw_ref, cb_ref,
                          lng_ref, lnb_ref, w1_ref, b1_ref, w2_ref, b2_ref,
                          o_ref, act_ref, *, num_heads, scale, eps):
    l = pl.program_id(1)

    @pl.when(l == 0)
    def _():
        act_ref[...] = y_ref[0]

    x = act_ref[...]                                   # (Sd, D)
    enc = enc_ref[0]                                   # (Se, D)
    dkb = dkb_ref[0]                                   # (1, Sd) dec key-padding bias
    ekb = ekb_ref[0]                                   # (1, Se) enc key-padding bias

    Sd = x.shape[0]
    # Causal (look-ahead) bias built in-kernel: no S^2 HBM traffic, pure VPU.
    row = jax.lax.broadcasted_iota(jnp.int32, (Sd, Sd), 0)
    col = jax.lax.broadcasted_iota(jnp.int32, (Sd, Sd), 1)
    causal = jnp.where(col > row, jnp.float32(-1e9), jnp.float32(0.0))

    lng = lng_ref[0]                                   # (3, 1, D)
    lnb = lnb_ref[0]

    x = _attention_block(x, x, dkb, causal, sw_ref[0], sb_ref[0],
                         lng[0], lnb[0], num_heads, scale, eps)
    x = _attention_block(x, enc, ekb, None, cw_ref[0], cb_ref[0],
                         lng[1], lnb[1], num_heads, scale, eps)
    x = _ffn_block(x, w1_ref[0], b1_ref[0], w2_ref[0], b2_ref[0],
                   lng[2], lnb[2], eps)

    act_ref[...] = x

    @pl.when(l == pl.num_programs(1) - 1)
    def _():
        o_ref[0] = x


def _linear_kernel(x_ref, w_ref, b_ref, o_ref):
    o_ref[...] = jnp.dot(x_ref[...].astype(jnp.bfloat16), w_ref[...],
                         preferred_element_type=jnp.float32) + b_ref[...]


# ----------------------------- kernel wrappers ------------------------------

def encoder_stack(x, enc_kbias, p, *, num_heads, eps):
    B, S, D = x.shape
    L = p["aw"].shape[0]
    F = p["w1"].shape[-1]
    scale = 1.0 / math.sqrt(D // num_heads)

    flops_step = 8 * S * D * D + 4 * S * S * D + 4 * S * D * F
    cost = pl.CostEstimate(
        flops=B * L * flops_step,
        transcendentals=B * L * num_heads * S * S,
        bytes_accessed=2 * B * S * D * 4 + B * L * (4 * D * D + 2 * D * F) * 2,
    )
    return pl.pallas_call(
        functools.partial(_encoder_stack_kernel, num_heads=num_heads,
                          scale=scale, eps=eps),
        out_shape=jax.ShapeDtypeStruct((B, S, D), jnp.float32),
        grid=(B, L),
        in_specs=[
            pl.BlockSpec((1, S, D), lambda b, l: (b, 0, 0)),        # x
            pl.BlockSpec((1, 1, S), lambda b, l: (b, 0, 0)),        # key-pad bias
            pl.BlockSpec((1, 4, D, D), lambda b, l: (l, 0, 0, 0)),  # attn W [q,k,v,o]
            pl.BlockSpec((1, 4, 1, D), lambda b, l: (l, 0, 0, 0)),  # attn b
            pl.BlockSpec((1, 2, 1, D), lambda b, l: (l, 0, 0, 0)),  # ln gamma (2 LNs)
            pl.BlockSpec((1, 2, 1, D), lambda b, l: (l, 0, 0, 0)),  # ln beta
            pl.BlockSpec((1, D, F), lambda b, l: (l, 0, 0)),        # ffn w1
            pl.BlockSpec((1, 1, F), lambda b, l: (l, 0, 0)),        # ffn b1
            pl.BlockSpec((1, F, D), lambda b, l: (l, 0, 0)),        # ffn w2
            pl.BlockSpec((1, 1, D), lambda b, l: (l, 0, 0)),        # ffn b2
        ],
        out_specs=pl.BlockSpec((1, S, D), lambda b, l: (b, 0, 0)),
        scratch_shapes=[pltpu.VMEM((S, D), jnp.float32)],
        compiler_params=pltpu.CompilerParams(
            dimension_semantics=("parallel", "arbitrary")),
        cost_estimate=cost,
    )(x, enc_kbias, p["aw"], p["ab"], p["ln_g"], p["ln_b"],
      p["w1"], p["b1"], p["w2"], p["b2"])


def decoder_stack(y, enc_out, dec_kbias, enc_kbias, p, *, num_heads, eps):
    B, Sd, D = y.shape
    Se = enc_out.shape[1]
    L = p["sw"].shape[0]
    F = p["w1"].shape[-1]
    scale = 1.0 / math.sqrt(D // num_heads)

    flops_step = (12 * Sd * D * D + 4 * Se * D * D
                  + 4 * Sd * Sd * D + 4 * Sd * Se * D + 4 * Sd * D * F)
    cost = pl.CostEstimate(
        flops=B * L * flops_step,
        transcendentals=B * L * num_heads * (Sd * Sd + Sd * Se),
        bytes_accessed=(2 * B * Sd * D + B * Se * D) * 4
                       + B * L * (8 * D * D + 2 * D * F) * 2,
    )
    return pl.pallas_call(
        functools.partial(_decoder_stack_kernel, num_heads=num_heads,
                          scale=scale, eps=eps),
        out_shape=jax.ShapeDtypeStruct((B, Sd, D), jnp.float32),
        grid=(B, L),
        in_specs=[
            pl.BlockSpec((1, Sd, D), lambda b, l: (b, 0, 0)),       # y
            pl.BlockSpec((1, Se, D), lambda b, l: (b, 0, 0)),       # enc_out
            pl.BlockSpec((1, 1, Sd), lambda b, l: (b, 0, 0)),       # dec key-pad bias
            pl.BlockSpec((1, 1, Se), lambda b, l: (b, 0, 0)),       # enc key-pad bias
            pl.BlockSpec((1, 4, D, D), lambda b, l: (l, 0, 0, 0)),  # self-attn W
            pl.BlockSpec((1, 4, 1, D), lambda b, l: (l, 0, 0, 0)),  # self-attn b
            pl.BlockSpec((1, 4, D, D), lambda b, l: (l, 0, 0, 0)),  # cross-attn W
            pl.BlockSpec((1, 4, 1, D), lambda b, l: (l, 0, 0, 0)),  # cross-attn b
            pl.BlockSpec((1, 3, 1, D), lambda b, l: (l, 0, 0, 0)),  # ln gamma (3 LNs)
            pl.BlockSpec((1, 3, 1, D), lambda b, l: (l, 0, 0, 0)),  # ln beta
            pl.BlockSpec((1, D, F), lambda b, l: (l, 0, 0)),        # ffn w1
            pl.BlockSpec((1, 1, F), lambda b, l: (l, 0, 0)),        # ffn b1
            pl.BlockSpec((1, F, D), lambda b, l: (l, 0, 0)),        # ffn w2
            pl.BlockSpec((1, 1, D), lambda b, l: (l, 0, 0)),        # ffn b2
        ],
        out_specs=pl.BlockSpec((1, Sd, D), lambda b, l: (b, 0, 0)),
        scratch_shapes=[pltpu.VMEM((Sd, D), jnp.float32)],
        compiler_params=pltpu.CompilerParams(
            dimension_semantics=("parallel", "arbitrary")),
        cost_estimate=cost,
    )(y, enc_out, dec_kbias, enc_kbias, p["sw"], p["sb"], p["cw"], p["cb"],
      p["ln_g"], p["ln_b"], p["w1"], p["b1"], p["w2"], p["b2"])


def output_projection(x2d, w, b):
    """(M, K) @ (K, V) + (1, V), tiled over rows and vocab columns."""
    M, K = x2d.shape
    N = w.shape[1]
    # Cap the row tile at M//2 so the parallel grid has >= 2 steps (v7x 2nd core);
    # caps can be raised on v5e/v6e (128 MiB VMEM) for large M/N.
    tm = _pick_tile(M, max(8, min(256, M // 2)), 8)
    tn = _pick_tile(N, 512, 128)
    cost = pl.CostEstimate(flops=2 * M * K * N, transcendentals=0,
                           bytes_accessed=M * K * 4 + K * N * 2 + M * N * 4)
    return pl.pallas_call(
        _linear_kernel,
        out_shape=jax.ShapeDtypeStruct((M, N), jnp.float32),
        grid=(M // tm, N // tn),
        in_specs=[
            pl.BlockSpec((tm, K), lambda i, j: (i, 0)),
            pl.BlockSpec((K, tn), lambda i, j: (0, j)),
            pl.BlockSpec((1, tn), lambda i, j: (0, j)),
        ],
        out_specs=pl.BlockSpec((tm, tn), lambda i, j: (i, j)),
        compiler_params=pltpu.CompilerParams(
            dimension_semantics=("parallel", "parallel")),
        cost_estimate=cost,
    )(x2d, w, b)


# ----------------------------- model glue (plain JAX) -----------------------------

def positional_encoding(seq_len, d):
    pos = jnp.arange(seq_len, dtype=jnp.float32)[:, None]
    i = jnp.arange(0, d, 2, dtype=jnp.float32)
    div = jnp.exp(-jnp.log(10000.0) * i / d)
    pe = jnp.zeros((seq_len, d), dtype=jnp.float32)
    pe = pe.at[:, 0::2].set(jnp.sin(pos * div))
    pe = pe.at[:, 1::2].set(jnp.cos(pos * div))
    return pe


def key_padding_bias(tokens):
    """(B, 1, S) additive bias: -1e9 where token id == 0 (padding), else 0."""
    return jnp.where(tokens == 0, -1e9, 0.0).astype(jnp.float32)[:, None, :]


def transformer_forward(params, enc_tokens, dec_tokens, *, num_heads, eps):
    B, Se = enc_tokens.shape
    _, Sd = dec_tokens.shape
    D = params["enc_embed"].shape[1]

    enc_kbias = key_padding_bias(enc_tokens)           # (B, 1, Se)
    dec_kbias = key_padding_bias(dec_tokens)           # (B, 1, Sd)

    # --- encoder ---
    x = params["enc_embed"][enc_tokens] + positional_encoding(Se, D)[None]
    enc_out = encoder_stack(x, enc_kbias, params["encoder"],
                            num_heads=num_heads, eps=eps)

    # --- decoder ---
    y = params["dec_embed"][dec_tokens] + positional_encoding(Sd, D)[None]
    dec_out = decoder_stack(y, enc_out, dec_kbias, enc_kbias, params["decoder"],
                            num_heads=num_heads, eps=eps)

    # --- output projection ---
    V = params["out_w"].shape[1]
    logits = output_projection(dec_out.reshape(B * Sd, D),
                               params["out_w"], params["out_b"])
    return logits.reshape(B, Sd, V)


# ----------------------------- parameter init ------------------------------

def _attn_params(key, d, num_layers):
    w = 0.02 * jax.random.normal(key, (num_layers, 4, d, d), jnp.float32)
    return w.astype(jnp.bfloat16), jnp.zeros((num_layers, 4, 1, d), jnp.float32)


def _ffn_params(k1, k2, d, f, num_layers):
    w1 = 0.02 * jax.random.normal(k1, (num_layers, d, f), jnp.float32)
    w2 = 0.02 * jax.random.normal(k2, (num_layers, f, d), jnp.float32)
    return (w1.astype(jnp.bfloat16), jnp.zeros((num_layers, 1, f), jnp.float32),
            w2.astype(jnp.bfloat16), jnp.zeros((num_layers, 1, d), jnp.float32))


def init_encoder(key, d, f, num_layers):
    k1, k2, k3 = jax.random.split(key, 3)
    aw, ab = _attn_params(k1, d, num_layers)
    w1, b1, w2, b2 = _ffn_params(k2, k3, d, f, num_layers)
    return {
        "aw": aw, "ab": ab,
        "ln_g": jnp.ones((num_layers, 2, 1, d), jnp.float32),
        "ln_b": jnp.zeros((num_layers, 2, 1, d), jnp.float32),
        "w1": w1, "b1": b1, "w2": w2, "b2": b2,
    }


def init_decoder(key, d, f, num_layers):
    k1, k2, k3, k4 = jax.random.split(key, 4)
    sw, sb = _attn_params(k1, d, num_layers)
    cw, cb = _attn_params(k2, d, num_layers)
    w1, b1, w2, b2 = _ffn_params(k3, k4, d, f, num_layers)
    return {
        "sw": sw, "sb": sb, "cw": cw, "cb": cb,
        "ln_g": jnp.ones((num_layers, 3, 1, d), jnp.float32),
        "ln_b": jnp.zeros((num_layers, 3, 1, d), jnp.float32),
        "w1": w1, "b1": b1, "w2": w2, "b2": b2,
    }


def init_transformer(key, *, enc_vocab, dec_vocab, num_layers, d, f):
    ks = jax.random.split(key, 5)
    out_w = 0.02 * jax.random.normal(ks[4], (d, dec_vocab), jnp.float32)
    return {
        "enc_embed": 0.02 * jax.random.normal(ks[0], (enc_vocab, d), jnp.float32),
        "dec_embed": 0.02 * jax.random.normal(ks[1], (dec_vocab, d), jnp.float32),
        "encoder": init_encoder(ks[2], d, f, num_layers),
        "decoder": init_decoder(ks[3], d, f, num_layers),
        "out_w": out_w.astype(jnp.bfloat16),
        "out_b": jnp.zeros((1, dec_vocab), jnp.float32),
    }


# ----------------------------- main ------------------------------

if __name__ == "__main__":
    # small config consistent with the module's forward
    B = 2
    S_ENC = 8
    S_DEC = 8
    D = 32        # embed_dim
    F = 64        # ffn_dim
    H = 4         # num_heads
    LAYERS = 2
    ENC_VOCAB = 64
    DEC_VOCAB = 64
    EPS = 1e-5

    key = jax.random.PRNGKey(0)
    kp, ke, kd = jax.random.split(key, 3)

    params = init_transformer(
        kp, enc_vocab=ENC_VOCAB, dec_vocab=DEC_VOCAB, num_layers=LAYERS, d=D, f=F
    )

    enc_tokens = jax.random.randint(ke, (B, S_ENC), 1, ENC_VOCAB, dtype=jnp.int32)
    dec_tokens = jax.random.randint(kd, (B, S_DEC), 1, DEC_VOCAB, dtype=jnp.int32)
    # introduce padding (token id 0) to exercise the padding masks
    enc_tokens = enc_tokens.at[0, -2:].set(0)
    dec_tokens = dec_tokens.at[1, -1].set(0)

    fwd = jax.jit(functools.partial(transformer_forward, num_heads=H, eps=EPS))
    logits = fwd(params, enc_tokens, dec_tokens)
    jax.block_until_ready(logits)

    assert logits.shape == (B, S_DEC, DEC_VOCAB)
    assert logits.dtype == jnp.float32
    assert bool(jnp.all(jnp.isfinite(logits)))

    print("KERNEL_OK")
</pallas_src>

<mosaic_0001>
module attributes {stable_mosaic.version = 11 : i64} {
  func.func @_linear_kernel(%arg0: i32, %arg1: i32, %arg2: memref<8x32xf32, #tpu.memory_space<vmem>>, %arg3: memref<32x64xbf16, #tpu.memory_space<vmem>>, %arg4: memref<1x64xf32, #tpu.memory_space<vmem>>, %arg5: memref<8x64xf32, #tpu.memory_space<vmem>>) attributes {dimension_semantics = [#tpu.dimension_semantics<parallel>, #tpu.dimension_semantics<parallel>], iteration_bounds = array<i64: 2, 1>, scalar_prefetch = 0 : i64, scratch_operands = 0 : i64, tpu.core_type = #tpu.core_type<tc>, window_params = [{transform_indices = @transform_0, window_bounds = array<i64: 8, 32>}, {transform_indices = @transform_1, window_bounds = array<i64: 32, 64>}, {transform_indices = @transform_2, window_bounds = array<i64: 1, 64>}, {transform_indices = @transform_3, window_bounds = array<i64: 8, 64>}]} {
    %c0 = arith.constant 0 : index
    %c0_0 = arith.constant 0 : index
    %0 = vector.load %arg2[%c0, %c0_0] : memref<8x32xf32, #tpu.memory_space<vmem>>, vector<8x32xf32>
    %1 = arith.truncf %0 : vector<8x32xf32> to vector<8x32xbf16>
    %c0_1 = arith.constant 0 : index
    %c0_2 = arith.constant 0 : index
    %2 = vector.load %arg3[%c0_1, %c0_2] : memref<32x64xbf16, #tpu.memory_space<vmem>>, vector<32x64xbf16>
    %cst = arith.constant dense<0.000000e+00> : vector<8x64xf32>
    %3 = tpu.matmul %1, %2, %cst {dimension_numbers = #tpu.dot_dimension_numbers<[1], [0], [0], [1], [0, 0, 1, 1], [], []>} : vector<8x32xbf16>, vector<32x64xbf16>, vector<8x64xf32> -> vector<8x64xf32>
    %c0_3 = arith.constant 0 : index
    %c0_4 = arith.constant 0 : index
    %4 = vector.load %arg4[%c0_3, %c0_4] : memref<1x64xf32, #tpu.memory_space<vmem>>, vector<1x64xf32>
    %5 = vector.broadcast %4 : vector<1x64xf32> to vector<8x64xf32>
    %6 = arith.addf %3, %5 : vector<8x64xf32>
    %c0_5 = arith.constant 0 : index
    %c0_6 = arith.constant 0 : index
    %7 = vector.load %arg5[%c0_5, %c0_6] : memref<8x64xf32, #tpu.memory_space<vmem>>, vector<8x64xf32>
    tpu.vector_store %arg5[%c0_5, %c0_6], %6 {strides = array<i32>} : memref<8x64xf32, #tpu.memory_space<vmem>>, vector<8x64xf32>,
    return
  }
  func.func @transform_0(%arg0: i32, %arg1: i32) -> (i32, i32) {
    %c0_i32 = arith.constant 0 : i32
    %c0_i32_0 = arith.constant 0 : i32
    return %arg0, %c0_i32 : i32, i32
  }
  func.func @transform_1(%arg0: i32, %arg1: i32) -> (i32, i32) {
    %c0_i32 = arith.constant 0 : i32
    %c0_i32_0 = arith.constant 0 : i32
    return %c0_i32, %arg1 : i32, i32
  }
  func.func @transform_2(%arg0: i32, %arg1: i32) -> (i32, i32) {
    %c0_i32 = arith.constant 0 : i32
    %c0_i32_0 = arith.constant 0 : i32
    return %c0_i32, %arg1 : i32, i32
  }
  func.func @transform_3(%arg0: i32, %arg1: i32) -> (i32, i32) {
    %c0_i32 = arith.constant 0 : i32
    return %arg0, %arg1 : i32, i32
  }
}

module attributes {stable_mosaic.version = 11 : i64} {
  func.func @_encoder_stack_kernel(%arg0: i32, %arg1: i32, %arg2: memref<1x8x32xf32, #tpu.memory_space<vmem>>, %arg3: memref<1x1x8xf32, #tpu.memory_space<vmem>>, %arg4: memref<1x4x32x32xbf16, #tpu.memory_space<vmem>>, %arg5: memref<1x4x1x32xf32, #tpu.memory_space<vmem>>, %arg6: memref<1x2x1x32xf32, #tpu.memory_space<vmem>>, %arg7: memref<1x2x1x32xf32, #tpu.memory_space<vmem>>, %arg8: memref<1x32x64xbf16, #tpu.memory_space<vmem>>, %arg9: memref<1x1x64xf32, #tpu.memory_space<vmem>>, %arg10: memref<1x64x32xbf16, #tpu.memory_space<vmem>>, %arg11: memref<1x1x32xf32, #tpu.memory_space<vmem>>, %arg12: memref<1x8x32xf32, #tpu.memory_space<vmem>>, %arg13: memref<8x32xf32, #tpu.memory_space<vmem>>) attributes {dimension_semantics = [#tpu.dimension_semantics<parallel>, #tpu.dimension_semantics<arbitrary>], iteration_bounds = array<i64: 2, 2>, scalar_prefetch = 0 : i64, scratch_operands = 1 : i64, tpu.core_type = #tpu.core_type<tc>, window_params = [{transform_indices = @transform_0, window_bounds = array<i64: 1, 8, 32>}, {transform_indices = @transform_1, window_bounds = array<i64: 1, 1, 8>}, {transform_indices = @transform_2, window_bounds = array<i64: 1, 4, 32, 32>}, {transform_indices = @transform_3, window_bounds = array<i64: 1, 4, 1, 32>}, {transform_indices = @transform_4, window_bounds = array<i64: 1, 2, 1, 32>}, {transform_indices = @transform_5, window_bounds = array<i64: 1, 2, 1, 32>}, {transform_indices = @transform_6, window_bounds = array<i64: 1, 32, 64>}, {transform_indices = @transform_7, window_bounds = array<i64: 1, 1, 64>}, {transform_indices = @transform_8, window_bounds = array<i64: 1, 64, 32>}, {transform_indices = @transform_9, window_bounds = array<i64: 1, 1, 32>}, {transform_indices = @transform_10, window_bounds = array<i64: 1, 8, 32>}]} {
    %c0_i32 = arith.constant 0 : i32
    %0 = arith.cmpi eq, %arg1, %c0_i32 : i32
    %1 = arith.extui %0 : i1 to i32
    %c0_i32_0 = arith.constant 0 : i32
    %2 = arith.cmpi ne, %1, %c0_i32_0 : i32
    scf.if %2 {
      %c0_57 = arith.constant 0 : index
      %c0_58 = arith.constant 0 : index
      %c0_59 = arith.constant 0 : index
      %178 = vector.load %arg2[%c0_57, %c0_58, %c0_59] : memref<1x8x32xf32, #tpu.memory_space<vmem>>, vector<1x8x32xf32>
      %179 = vector.shape_cast %178 : vector<1x8x32xf32> to vector<8x32xf32>
      %c0_60 = arith.constant 0 : index
      %c0_61 = arith.constant 0 : index
      %180 = vector.load %arg13[%c0_60, %c0_61] : memref<8x32xf32, #tpu.memory_space<vmem>>, vector<8x32xf32>
      tpu.vector_store %arg13[%c0_60, %c0_61], %179 {strides = array<i32>} : memref<8x32xf32, #tpu.memory_space<vmem>>, vector<8x32xf32>,
    } else {
    }
    %c0 = arith.constant 0 : index
    %c0_1 = arith.constant 0 : index
    %3 = vector.load %arg13[%c0, %c0_1] : memref<8x32xf32, #tpu.memory_space<vmem>>, vector<8x32xf32>
    %c0_2 = arith.constant 0 : index
    %c0_3 = arith.constant 0 : index
    %c0_4 = arith.constant 0 : index
    %4 = vector.load %arg3[%c0_2, %c0_3, %c0_4] : memref<1x1x8xf32, #tpu.memory_space<vmem>>, vector<1x1x8xf32>
    %5 = vector.shape_cast %4 : vector<1x1x8xf32> to vector<1x8xf32>
    %c0_5 = arith.constant 0 : index
    %c0_6 = arith.constant 0 : index
    %c0_7 = arith.constant 0 : index
    %c0_8 = arith.constant 0 : index
    %6 = vector.load %arg6[%c0_5, %c0_6, %c0_7, %c0_8] : memref<1x2x1x32xf32, #tpu.memory_space<vmem>>, vector<1x2x1x32xf32>
    %7 = vector.shape_cast %6 : vector<1x2x1x32xf32> to vector<2x1x32xf32>
    %c0_9 = arith.constant 0 : index
    %c0_10 = arith.constant 0 : index
    %c0_11 = arith.constant 0 : index
    %c0_12 = arith.constant 0 : index
    %8 = vector.load %arg7[%c0_9, %c0_10, %c0_11, %c0_12] : memref<1x2x1x32xf32, #tpu.memory_space<vmem>>, vector<1x2x1x32xf32>
    %9 = vector.shape_cast %8 : vector<1x2x1x32xf32> to vector<2x1x32xf32>
    %c0_13 = arith.constant 0 : index
    %c0_14 = arith.constant 0 : index
    %c0_15 = arith.constant 0 : index
    %c0_16 = arith.constant 0 : index
    %10 = vector.load %arg4[%c0_13, %c0_14, %c0_15, %c0_16] : memref<1x4x32x32xbf16, #tpu.memory_space<vmem>>, vector<1x4x32x32xbf16>
    %11 = vector.shape_cast %10 : vector<1x4x32x32xbf16> to vector<4x32x32xbf16>
    %c0_17 = arith.constant 0 : index
    %c0_18 = arith.constant 0 : index
    %c0_19 = arith.constant 0 : index
    %c0_20 = arith.constant 0 : index
    %12 = vector.load %arg5[%c0_17, %c0_18, %c0_19, %c0_20] : memref<1x4x1x32xf32, #tpu.memory_space<vmem>>, vector<1x4x1x32xf32>
    %13 = vector.shape_cast %12 : vector<1x4x1x32xf32> to vector<4x1x32xf32>
    %14 = vector.extract_strided_slice %7 {offsets = [0, 0, 0], sizes = [1, 1, 32], strides = [1, 1, 1]} : vector<2x1x32xf32> to vector<1x1x32xf32>
    %15 = vector.shape_cast %14 : vector<1x1x32xf32> to vector<1x32xf32>
    %16 = vector.extract_strided_slice %9 {offsets = [0, 0, 0], sizes = [1, 1, 32], strides = [1, 1, 1]} : vector<2x1x32xf32> to vector<1x1x32xf32>
    %17 = vector.shape_cast %16 : vector<1x1x32xf32> to vector<1x32xf32>
    %18 = arith.truncf %3 : vector<8x32xf32> to vector<8x32xbf16>
    %19 = arith.truncf %3 : vector<8x32xf32> to vector<8x32xbf16>
    %20 = vector.extract_strided_slice %11 {offsets = [0, 0, 0], sizes = [1, 32, 32], strides = [1, 1, 1]} : vector<4x32x32xbf16> to vector<1x32x32xbf16>
    %21 = vector.shape_cast %20 : vector<1x32x32xbf16> to vector<32x32xbf16>
    %cst = arith.constant dense<0.000000e+00> : vector<8x32xf32>
    %22 = tpu.matmul %18, %21, %cst {dimension_numbers = #tpu.dot_dimension_numbers<[1], [0], [0], [1], [0, 0, 1, 1], [], []>} : vector<8x32xbf16>, vector<32x32xbf16>, vector<8x32xf32> -> vector<8x32xf32>
    %23 = vector.extract_strided_slice %13 {offsets = [0, 0, 0], sizes = [1, 1, 32], strides = [1, 1, 1]} : vector<4x1x32xf32> to vector<1x1x32xf32>
    %24 = vector.shape_cast %23 : vector<1x1x32xf32> to vector<1x32xf32>
    %25 = vector.broadcast %24 : vector<1x32xf32> to vector<8x32xf32>
    %26 = arith.addf %22, %25 : vector<8x32xf32>
    %27 = vector.extract_strided_slice %11 {offsets = [1, 0, 0], sizes = [1, 32, 32], strides = [1, 1, 1]} : vector<4x32x32xbf16> to vector<1x32x32xbf16>
    %28 = vector.shape_cast %27 : vector<1x32x32xbf16> to vector<32x32xbf16>
    %cst_21 = arith.constant dense<0.000000e+00> : vector<8x32xf32>
    %29 = tpu.matmul %19, %28, %cst_21 {dimension_numbers = #tpu.dot_dimension_numbers<[1], [0], [0], [1], [0, 0, 1, 1], [], []>} : vector<8x32xbf16>, vector<32x32xbf16>, vector<8x32xf32> -> vector<8x32xf32>
    %30 = vector.extract_strided_slice %13 {offsets = [1, 0, 0], sizes = [1, 1, 32], strides = [1, 1, 1]} : vector<4x1x32xf32> to vector<1x1x32xf32>
    %31 = vector.shape_cast %30 : vector<1x1x32xf32> to vector<1x32xf32>
    %32 = vector.broadcast %31 : vector<1x32xf32> to vector<8x32xf32>
    %33 = arith.addf %29, %32 : vector<8x32xf32>
    %34 = vector.extract_strided_slice %11 {offsets = [2, 0, 0], sizes = [1, 32, 32], strides = [1, 1, 1]} : vector<4x32x32xbf16> to vector<1x32x32xbf16>
    %35 = vector.shape_cast %34 : vector<1x32x32xbf16> to vector<32x32xbf16>
    %cst_22 = arith.constant dense<0.000000e+00> : vector<8x32xf32>
    %36 = tpu.matmul %19, %35, %cst_22 {dimension_numbers = #tpu.dot_dimension_numbers<[1], [0], [0], [1], [0, 0, 1, 1], [], []>} : vector<8x32xbf16>, vector<32x32xbf16>, vector<8x32xf32> -> vector<8x32xf32>
    %37 = vector.extract_strided_slice %13 {offsets = [2, 0, 0], sizes = [1, 1, 32], strides = [1, 1, 1]} : vector<4x1x32xf32> to vector<1x1x32xf32>
    %38 = vector.shape_cast %37 : vector<1x1x32xf32> to vector<1x32xf32>
    %39 = vector.broadcast %38 : vector<1x32xf32> to vector<8x32xf32>
    %40 = arith.addf %36, %39 : vector<8x32xf32>
    %41 = vector.extract_strided_slice %26 {offsets = [0, 0], sizes = [8, 8], strides = [1, 1]} : vector<8x32xf32> to vector<8x8xf32>
    %42 = vector.extract_strided_slice %26 {offsets = [0, 8], sizes = [8, 8], strides = [1, 1]} : vector<8x32xf32> to vector<8x8xf32>
    %43 = vector.extract_strided_slice %26 {offsets = [0, 16], sizes = [8, 8], strides = [1, 1]} : vector<8x32xf32> to vector<8x8xf32>
    %44 = vector.extract_strided_slice %26 {offsets = [0, 24], sizes = [8, 8], strides = [1, 1]} : vector<8x32xf32> to vector<8x8xf32>
    %45 = vector.shape_cast %41 : vector<8x8xf32> to vector<1x8x8xf32>
    %46 = vector.shape_cast %42 : vector<8x8xf32> to vector<1x8x8xf32>
    %47 = vector.shape_cast %43 : vector<8x8xf32> to vector<1x8x8xf32>
    %48 = vector.shape_cast %44 : vector<8x8xf32> to vector<1x8x8xf32>
    %49 = tpu.concatenate %45, %46, %47, %48 in 0 : vector<1x8x8xf32>, vector<1x8x8xf32>, vector<1x8x8xf32>, vector<1x8x8xf32> -> vector<4x8x8xf32>
    %50 = vector.extract_strided_slice %33 {offsets = [0, 0], sizes = [8, 8], strides = [1, 1]} : vector<8x32xf32> to vector<8x8xf32>
    %51 = vector.extract_strided_slice %33 {offsets = [0, 8], sizes = [8, 8], strides = [1, 1]} : vector<8x32xf32> to vector<8x8xf32>
    %52 = vector.extract_strided_slice %33 {offsets = [0, 16], sizes = [8, 8], strides = [1, 1]} : vector<8x32xf32> to vector<8x8xf32>
    %53 = vector.extract_strided_slice %33 {offsets = [0, 24], sizes = [8, 8], strides = [1, 1]} : vector<8x32xf32> to vector<8x8xf32>
    %54 = vector.shape_cast %50 : vector<8x8xf32> to vector<1x8x8xf32>
    %55 = vector.shape_cast %51 : vector<8x8xf32> to vector<1x8x8xf32>
    %56 = vector.shape_cast %52 : vector<8x8xf32> to vector<1x8x8xf32>
    %57 = vector.shape_cast %53 : vector<8x8xf32> to vector<1x8x8xf32>
    %58 = tpu.concatenate %54, %55, %56, %57 in 0 : vector<1x8x8xf32>, vector<1x8x8xf32>, vector<1x8x8xf32>, vector<1x8x8xf32> -> vector<4x8x8xf32>
    %59 = vector.extract_strided_slice %40 {offsets = [0, 0], sizes = [8, 8], strides = [1, 1]} : vector<8x32xf32> to vector<8x8xf32>
    %60 = vector.extract_strided_slice %40 {offsets = [0, 8], sizes = [8, 8], strides = [1, 1]} : vector<8x32xf32> to vector<8x8xf32>
    %61 = vector.extract_strided_slice %40 {offsets = [0, 16], sizes = [8, 8], strides = [1, 1]} : vector<8x32xf32> to vector<8x8xf32>
    %62 = vector.extract_strided_slice %40 {offsets = [0, 24], sizes = [8, 8], strides = [1, 1]} : vector<8x32xf32> to vector<8x8xf32>
    %63 = vector.shape_cast %59 : vector<8x8xf32> to vector<1x8x8xf32>
    %64 = vector.shape_cast %60 : vector<8x8xf32> to vector<1x8x8xf32>
    %65 = vector.shape_cast %61 : vector<8x8xf32> to vector<1x8x8xf32>
    %66 = vector.shape_cast %62 : vector<8x8xf32> to vector<1x8x8xf32>
    %67 = tpu.concatenate %63, %64, %65, %66 in 0 : vector<1x8x8xf32>, vector<1x8x8xf32>, vector<1x8x8xf32>, vector<1x8x8xf32> -> vector<4x8x8xf32>
    %68 = arith.truncf %49 : vector<4x8x8xf32> to vector<4x8x8xbf16>
    %69 = arith.truncf %58 : vector<4x8x8xf32> to vector<4x8x8xbf16>
    "tpu.trace_start"() <{level = 10 : i32, message = "hqd,hkd->hqk"}> : () -> ()
    %cst_23 = arith.constant dense<0.000000e+00> : vector<4x8x8xf32>
    %70 = tpu.matmul %68, %69, %cst_23 {dimension_numbers = #tpu.dot_dimension_numbers<[2], [2], [1], [1], [0, 0, 0, 1, 1, 1], [0], [0]>} : vector<4x8x8xbf16>, vector<4x8x8xbf16>, vector<4x8x8xf32> -> vector<4x8x8xf32>
    "tpu.trace_stop"() : () -> ()
    %cst_24 = arith.constant 0.353553385 : f32
    %71 = vector.broadcast %cst_24 : f32 to vector<4x8x8xf32>
    %72 = arith.mulf %70, %71 : vector<4x8x8xf32>
    %73 = vector.shape_cast %5 : vector<1x8xf32> to vector<1x1x8xf32>
    %74 = vector.broadcast %73 : vector<1x1x8xf32> to vector<4x8x8xf32>
    %75 = arith.addf %72, %74 : vector<4x8x8xf32>
    %cst_25 = arith.constant dense<0xFF800000> : vector<4x8xf32>
    %76 = vector.multi_reduction <maximumf>, %75, %cst_25 [2] : vector<4x8x8xf32> to vector<4x8xf32>
    %77 = vector.shape_cast %76 : vector<4x8xf32> to vector<4x8x1xf32>
    %78 = vector.broadcast %77 : vector<4x8x1xf32> to vector<4x8x8xf32>
    %79 = arith.subf %75, %78 : vector<4x8x8xf32>
    %80 = math.exp %79 : vector<4x8x8xf32>
    %cst_26 = arith.constant dense<0.000000e+00> : vector<4x8xf32>
    %81 = vector.multi_reduction <add>, %80, %cst_26 [2] : vector<4x8x8xf32> to vector<4x8xf32>
    %82 = vector.shape_cast %81 : vector<4x8xf32> to vector<4x8x1xf32>
    %83 = tpu.reciprocal %82 {approx = true} : vector<4x8x1xf32> -> vector<4x8x1xf32>
    %84 = vector.broadcast %83 : vector<4x8x1xf32> to vector<4x8x8xf32>
    %85 = arith.mulf %80, %84 : vector<4x8x8xf32>
    %86 = arith.truncf %85 : vector<4x8x8xf32> to vector<4x8x8xbf16>
    %87 = arith.truncf %67 : vector<4x8x8xf32> to vector<4x8x8xbf16>
    "tpu.trace_start"() <{level = 10 : i32, message = "hqk,hkd->hqd"}> : () -> ()
    %cst_27 = arith.constant dense<0.000000e+00> : vector<4x8x8xf32>
    %88 = tpu.matmul %86, %87, %cst_27 {dimension_numbers = #tpu.dot_dimension_numbers<[2], [1], [1], [2], [0, 0, 0, 1, 1, 2], [0], [0]>} : vector<4x8x8xbf16>, vector<4x8x8xbf16>, vector<4x8x8xf32> -> vector<4x8x8xf32>
    "tpu.trace_stop"() : () -> ()
    %89 = vector.extract_strided_slice %88 {offsets = [0, 0, 0], sizes = [1, 8, 8], strides = [1, 1, 1]} : vector<4x8x8xf32> to vector<1x8x8xf32>
    %90 = vector.shape_cast %89 : vector<1x8x8xf32> to vector<8x8xf32>
    %91 = vector.extract_strided_slice %88 {offsets = [1, 0, 0], sizes = [1, 8, 8], strides = [1, 1, 1]} : vector<4x8x8xf32> to vector<1x8x8xf32>
    %92 = vector.shape_cast %91 : vector<1x8x8xf32> to vector<8x8xf32>
    %93 = vector.extract_strided_slice %88 {offsets = [2, 0, 0], sizes = [1, 8, 8], strides = [1, 1, 1]} : vector<4x8x8xf32> to vector<1x8x8xf32>
    %94 = vector.shape_cast %93 : vector<1x8x8xf32> to vector<8x8xf32>
    %95 = vector.extract_strided_slice %88 {offsets = [3, 0, 0], sizes = [1, 8, 8], strides = [1, 1, 1]} : vector<4x8x8xf32> to vector<1x8x8xf32>
    %96 = vector.shape_cast %95 : vector<1x8x8xf32> to vector<8x8xf32>
    %97 = tpu.concatenate %90, %92, %94, %96 in 1 : vector<8x8xf32>, vector<8x8xf32>, vector<8x8xf32>, vector<8x8xf32> -> vector<8x32xf32>
    %98 = arith.truncf %97 : vector<8x32xf32> to vector<8x32xbf16>
    %99 = vector.extract_strided_slice %11 {offsets = [3, 0, 0], sizes = [1, 32, 32], strides = [1, 1, 1]} : vector<4x32x32xbf16> to vector<1x32x32xbf16>
    %100 = vector.shape_cast %99 : vector<1x32x32xbf16> to vector<32x32xbf16>
    %cst_28 = arith.constant dense<0.000000e+00> : vector<8x32xf32>
    %101 = tpu.matmul %98, %100, %cst_28 {dimension_numbers = #tpu.dot_dimension_numbers<[1], [0], [0], [1], [0, 0, 1, 1], [], []>} : vector<8x32xbf16>, vector<32x32xbf16>, vector<8x32xf32> -> vector<8x32xf32>
    %102 = vector.extract_strided_slice %13 {offsets = [3, 0, 0], sizes = [1, 1, 32], strides = [1, 1, 1]} : vector<4x1x32xf32> to vector<1x1x32xf32>
    %103 = vector.shape_cast %102 : vector<1x1x32xf32> to vector<1x32xf32>
    %104 = vector.broadcast %103 : vector<1x32xf32> to vector<8x32xf32>
    %105 = arith.addf %101, %104 : vector<8x32xf32>
    %106 = arith.addf %3, %105 : vector<8x32xf32>
    %cst_29 = arith.constant dense<0.000000e+00> : vector<8xf32>
    %107 = vector.multi_reduction <add>, %106, %cst_29 [1] : vector<8x32xf32> to vector<8xf32>
    %108 = vector.shape_cast %107 : vector<8xf32> to vector<8x1xf32>
    %109 = arith.mulf %106, %106 : vector<8x32xf32>
    %cst_30 = arith.constant dense<0.000000e+00> : vector<8xf32>
    %110 = vector.multi_reduction <add>, %109, %cst_30 [1] : vector<8x32xf32> to vector<8xf32>
    %111 = vector.shape_cast %110 : vector<8xf32> to vector<8x1xf32>
    %cst_31 = arith.constant 3.125000e-02 : f32
    %112 = vector.broadcast %cst_31 : f32 to vector<8x1xf32>
    %113 = arith.mulf %108, %112 : vector<8x1xf32>
    %cst_32 = arith.constant 3.125000e-02 : f32
    %114 = vector.broadcast %cst_32 : f32 to vector<8x1xf32>
    %115 = arith.mulf %111, %114 : vector<8x1xf32>
    %116 = arith.mulf %113, %113 : vector<8x1xf32>
    %117 = arith.subf %115, %116 : vector<8x1xf32>
    %118 = vector.broadcast %113 : vector<8x1xf32> to vector<8x32xf32>
    %119 = arith.subf %106, %118 : vector<8x32xf32>
    %cst_33 = arith.constant 9.99999974E-6 : f32
    %120 = vector.broadcast %cst_33 : f32 to vector<8x1xf32>
    %121 = arith.addf %117, %120 : vector<8x1xf32>
    %122 = math.rsqrt %121 : vector<8x1xf32>
    %123 = vector.broadcast %122 : vector<8x1xf32> to vector<8x32xf32>
    %124 = arith.mulf %119, %123 : vector<8x32xf32>
    %125 = vector.broadcast %15 : vector<1x32xf32> to vector<8x32xf32>
    %126 = arith.mulf %124, %125 : vector<8x32xf32>
    %127 = vector.broadcast %17 : vector<1x32xf32> to vector<8x32xf32>
    %128 = arith.addf %126, %127 : vector<8x32xf32>
    %c0_34 = arith.constant 0 : index
    %c0_35 = arith.constant 0 : index
    %c0_36 = arith.constant 0 : index
    %129 = vector.load %arg8[%c0_34, %c0_35, %c0_36] : memref<1x32x64xbf16, #tpu.memory_space<vmem>>, vector<1x32x64xbf16>
    %130 = vector.shape_cast %129 : vector<1x32x64xbf16> to vector<32x64xbf16>
    %c0_37 = arith.constant 0 : index
    %c0_38 = arith.constant 0 : index
    %c0_39 = arith.constant 0 : index
    %131 = vector.load %arg9[%c0_37, %c0_38, %c0_39] : memref<1x1x64xf32, #tpu.memory_space<vmem>>, vector<1x1x64xf32>
    %132 = vector.shape_cast %131 : vector<1x1x64xf32> to vector<1x64xf32>
    %c0_40 = arith.constant 0 : index
    %c0_41 = arith.constant 0 : index
    %c0_42 = arith.constant 0 : index
    %133 = vector.load %arg10[%c0_40, %c0_41, %c0_42] : memref<1x64x32xbf16, #tpu.memory_space<vmem>>, vector<1x64x32xbf16>
    %134 = vector.shape_cast %133 : vector<1x64x32xbf16> to vector<64x32xbf16>
    %c0_43 = arith.constant 0 : index
    %c0_44 = arith.constant 0 : index
    %c0_45 = arith.constant 0 : index
    %135 = vector.load %arg11[%c0_43, %c0_44, %c0_45] : memref<1x1x32xf32, #tpu.memory_space<vmem>>, vector<1x1x32xf32>
    %136 = vector.shape_cast %135 : vector<1x1x32xf32> to vector<1x32xf32>
    %137 = vector.extract_strided_slice %7 {offsets = [1, 0, 0], sizes = [1, 1, 32], strides = [1, 1, 1]} : vector<2x1x32xf32> to vector<1x1x32xf32>
    %138 = vector.shape_cast %137 : vector<1x1x32xf32> to vector<1x32xf32>
    %139 = vector.extract_strided_slice %9 {offsets = [1, 0, 0], sizes = [1, 1, 32], strides = [1, 1, 1]} : vector<2x1x32xf32> to vector<1x1x32xf32>
    %140 = vector.shape_cast %139 : vector<1x1x32xf32> to vector<1x32xf32>
    %141 = arith.truncf %128 : vector<8x32xf32> to vector<8x32xbf16>
    %cst_46 = arith.constant dense<0.000000e+00> : vector<8x64xf32>
    %142 = tpu.matmul %141, %130, %cst_46 {dimension_numbers = #tpu.dot_dimension_numbers<[1], [0], [0], [1], [0, 0, 1, 1], [], []>} : vector<8x32xbf16>, vector<32x64xbf16>, vector<8x64xf32> -> vector<8x64xf32>
    %143 = vector.broadcast %132 : vector<1x64xf32> to vector<8x64xf32>
    %144 = arith.addf %142, %143 : vector<8x64xf32>
    %cst_47 = arith.constant 0.000000e+00 : f32
    %145 = vector.broadcast %cst_47 : f32 to vector<8x64xf32>
    %146 = arith.maximumf %144, %145 : vector<8x64xf32>
    %147 = arith.truncf %146 : vector<8x64xf32> to vector<8x64xbf16>
    %cst_48 = arith.constant dense<0.000000e+00> : vector<8x32xf32>
    %148 = tpu.matmul %147, %134, %cst_48 {dimension_numbers = #tpu.dot_dimension_numbers<[1], [0], [0], [1], [0, 0, 1, 1], [], []>} : vector<8x64xbf16>, vector<64x32xbf16>, vector<8x32xf32> -> vector<8x32xf32>
    %149 = vector.broadcast %136 : vector<1x32xf32> to vector<8x32xf32>
    %150 = arith.addf %148, %149 : vector<8x32xf32>
    %151 = arith.addf %128, %150 : vector<8x32xf32>
    %cst_49 = arith.constant dense<0.000000e+00> : vector<8xf32>
    %152 = vector.multi_reduction <add>, %151, %cst_49 [1] : vector<8x32xf32> to vector<8xf32>
    %153 = vector.shape_cast %152 : vector<8xf32> to vector<8x1xf32>
    %154 = arith.mulf %151, %151 : vector<8x32xf32>
    %cst_50 = arith.constant dense<0.000000e+00> : vector<8xf32>
    %155 = vector.multi_reduction <add>, %154, %cst_50 [1] : vector<8x32xf32> to vector<8xf32>
    %156 = vector.shape_cast %155 : vector<8xf32> to vector<8x1xf32>
    %cst_51 = arith.constant 3.125000e-02 : f32
    %157 = vector.broadcast %cst_51 : f32 to vector<8x1xf32>
    %158 = arith.mulf %153, %157 : vector<8x1xf32>
    %cst_52 = arith.constant 3.125000e-02 : f32
    %159 = vector.broadcast %cst_52 : f32 to vector<8x1xf32>
    %160 = arith.mulf %156, %159 : vector<8x1xf32>
    %161 = arith.mulf %158, %158 : vector<8x1xf32>
    %162 = arith.subf %160, %161 : vector<8x1xf32>
    %163 = vector.broadcast %158 : vector<8x1xf32> to vector<8x32xf32>
    %164 = arith.subf %151, %163 : vector<8x32xf32>
    %cst_53 = arith.constant 9.99999974E-6 : f32
    %165 = vector.broadcast %cst_53 : f32 to vector<8x1xf32>
    %166 = arith.addf %162, %165 : vector<8x1xf32>
    %167 = math.rsqrt %166 : vector<8x1xf32>
    %168 = vector.broadcast %167 : vector<8x1xf32> to vector<8x32xf32>
    %169 = arith.mulf %164, %168 : vector<8x32xf32>
    %170 = vector.broadcast %138 : vector<1x32xf32> to vector<8x32xf32>
    %171 = arith.mulf %169, %170 : vector<8x32xf32>
    %172 = vector.broadcast %140 : vector<1x32xf32> to vector<8x32xf32>
    %173 = arith.addf %171, %172 : vector<8x32xf32>
    %c0_54 = arith.constant 0 : index
    %c0_55 = arith.constant 0 : index
    %174 = vector.load %arg13[%c0_54, %c0_55] : memref<8x32xf32, #tpu.memory_space<vmem>>, vector<8x32xf32>
    tpu.vector_store %arg13[%c0_54, %c0_55], %173 {strides = array<i32>} : memref<8x32xf32, #tpu.memory_space<vmem>>, vector<8x32xf32>,
    %c1_i32 = arith.constant 1 : i32
    %175 = arith.cmpi eq, %arg1, %c1_i32 : i32
    %176 = arith.extui %175 : i1 to i32
    %c0_i32_56 = arith.constant 0 : i32
    %177 = arith.cmpi ne, %176, %c0_i32_56 : i32
    scf.if %177 {
      %c0_57 = arith.constant 0 : index
      %c0_58 = arith.constant 0 : index
      %c0_59 = arith.constant 0 : index
      %178 = vector.load %arg12[%c0_57, %c0_58, %c0_59] : memref<1x8x32xf32, #tpu.memory_space<vmem>>, vector<1x8x32xf32>
      %179 = vector.shape_cast %178 : vector<1x8x32xf32> to vector<8x32xf32>
      %180 = vector.shape_cast %173 : vector<8x32xf32> to vector<1x8x32xf32>
      tpu.vector_store %arg12[%c0_57, %c0_58, %c0_59], %180 {strides = array<i32>} : memref<1x8x32xf32, #tpu.memory_space<vmem>>, vector<1x8x32xf32>,
    } else {
    }
    return
  }
  func.func @transform_0(%arg0: i32, %arg1: i32) -> (i32, i32, i32) {
    %c0_i32 = arith.constant 0 : i32
    %c0_i32_0 = arith.constant 0 : i32
    %c0_i32_1 = arith.constant 0 : i32
    return %arg0, %c0_i32, %c0_i32_0 : i32, i32, i32
  }
  func.func @transform_1(%arg0: i32, %arg1: i32) -> (i32, i32, i32) {
    %c0_i32 = arith.constant 0 : i32
    %c0_i32_0 = arith.constant 0 : i32
    %c0_i32_1 = arith.constant 0 : i32
    return %arg0, %c0_i32, %c0_i32_0 : i32, i32, i32
  }
  func.func @transform_2(%arg0: i32, %arg1: i32) -> (i32, i32, i32, i32) {
    %c0_i32 = arith.constant 0 : i32
    %c0_i32_0 = arith.constant 0 : i32
    %c0_i32_1 = arith.constant 0 : i32
    %c0_i32_2 = arith.constant 0 : i32
    return %arg1, %c0_i32, %c0_i32_0, %c0_i32_1 : i32, i32, i32, i32
  }
  func.func @transform_3(%arg0: i32, %arg1: i32) -> (i32, i32, i32, i32) {
    %c0_i32 = arith.constant 0 : i32
    %c0_i32_0 = arith.constant 0 : i32
    %c0_i32_1 = arith.constant 0 : i32
    %c0_i32_2 = arith.constant 0 : i32
    return %arg1, %c0_i32, %c0_i32_0, %c0_i32_1 : i32, i32, i32, i32
  }
  func.func @transform_4(%arg0: i32, %arg1: i32) -> (i32, i32, i32, i32) {
    %c0_i32 = arith.constant 0 : i32
    %c0_i32_0 = arith.constant 0 : i32
    %c0_i32_1 = arith.constant 0 : i32
    %c0_i32_2 = arith.constant 0 : i32
    return %arg1, %c0_i32, %c0_i32_0, %c0_i32_1 : i32, i32, i32, i32
  }
  func.func @transform_5(%arg0: i32, %arg1: i32) -> (i32, i32, i32, i32) {
    %c0_i32 = arith.constant 0 : i32
    %c0_i32_0 = arith.constant 0 : i32
    %c0_i32_1 = arith.constant 0 : i32
    %c0_i32_2 = arith.constant 0 : i32
    return %arg1, %c0_i32, %c0_i32_0, %c0_i32_1 : i32, i32, i32, i32
  }
  func.func @transform_6(%arg0: i32, %arg1: i32) -> (i32, i32, i32) {
    %c0_i32 = arith.constant 0 : i32
    %c0_i32_0 = arith.constant 0 : i32
    %c0_i32_1 = arith.constant 0 : i32
    return %arg1, %c0_i32, %c0_i32_0 : i32, i32, i32
  }
  func.func @transform_7(%arg0: i32, %arg1: i32) -> (i32, i32, i32) {
    %c0_i32 = arith.constant 0 : i32
    %c0_i32_0 = arith.constant 0 : i32
    %c0_i32_1 = arith.constant 0 : i32
    return %arg1, %c0_i32, %c0_i32_0 : i32, i32, i32
  }
  func.func @transform_8(%arg0: i32, %arg1: i32) -> (i32, i32, i32) {
    %c0_i32 = arith.constant 0 : i32
    %c0_i32_0 = arith.constant 0 : i32
    %c0_i32_1 = arith.constant 0 : i32
    return %arg1, %c0_i32, %c0_i32_0 : i32, i32, i32
  }
  func.func @transform_9(%arg0: i32, %arg1: i32) -> (i32, i32, i32) {
    %c0_i32 = arith.constant 0 : i32
    %c0_i32_0 = arith.constant 0 : i32
    %c0_i32_1 = arith.constant 0 : i32
    return %arg1, %c0_i32, %c0_i32_0 : i32, i32, i32
  }
  func.func @transform_10(%arg0: i32, %arg1: i32) -> (i32, i32, i32) {
    %c0_i32 = arith.constant 0 : i32
    %c0_i32_0 = arith.constant 0 : i32
    %c0_i32_1 = arith.constant 0 : i32
    return %arg0, %c0_i32, %c0_i32_0 : i32, i32, i32
  }
}

module attributes {stable_mosaic.version = 11 : i64} {
  func.func @_decoder_stack_kernel(%arg0: i32, %arg1: i32, %arg2: memref<1x8x32xf32, #tpu.memory_space<vmem>>, %arg3: memref<1x8x32xf32, #tpu.memory_space<vmem>>, %arg4: memref<1x1x8xf32, #tpu.memory_space<vmem>>, %arg5: memref<1x1x8xf32, #tpu.memory_space<vmem>>, %arg6: memref<1x4x32x32xbf16, #tpu.memory_space<vmem>>, %arg7: memref<1x4x1x32xf32, #tpu.memory_space<vmem>>, %arg8: memref<1x4x32x32xbf16, #tpu.memory_space<vmem>>, %arg9: memref<1x4x1x32xf32, #tpu.memory_space<vmem>>, %arg10: memref<1x3x1x32xf32, #tpu.memory_space<vmem>>, %arg11: memref<1x3x1x32xf32, #tpu.memory_space<vmem>>, %arg12: memref<1x32x64xbf16, #tpu.memory_space<vmem>>, %arg13: memref<1x1x64xf32, #tpu.memory_space<vmem>>, %arg14: memref<1x64x32xbf16, #tpu.memory_space<vmem>>, %arg15: memref<1x1x32xf32, #tpu.memory_space<vmem>>, %arg16: memref<1x8x32xf32, #tpu.memory_space<vmem>>, %arg17: memref<8x32xf32, #tpu.memory_space<vmem>>) attributes {dimension_semantics = [#tpu.dimension_semantics<parallel>, #tpu.dimension_semantics<arbitrary>], iteration_bounds = array<i64: 2, 2>, scalar_prefetch = 0 : i64, scratch_operands = 1 : i64, tpu.core_type = #tpu.core_type<tc>, window_params = [{transform_indices = @transform_0, window_bounds = array<i64: 1, 8, 32>}, {transform_indices = @transform_1, window_bounds = array<i64: 1, 8, 32>}, {transform_indices = @transform_2, window_bounds = array<i64: 1, 1, 8>}, {transform_indices = @transform_3, window_bounds = array<i64: 1, 1, 8>}, {transform_indices = @transform_4, window_bounds = array<i64: 1, 4, 32, 32>}, {transform_indices = @transform_5, window_bounds = array<i64: 1, 4, 1, 32>}, {transform_indices = @transform_6, window_bounds = array<i64: 1, 4, 32, 32>}, {transform_indices = @transform_7, window_bounds = array<i64: 1, 4, 1, 32>}, {transform_indices = @transform_8, window_bounds = array<i64: 1, 3, 1, 32>}, {transform_indices = @transform_9, window_bounds = array<i64: 1, 3, 1, 32>}, {transform_indices = @transform_10, window_bounds = array<i64: 1, 32, 64>}, {transform_indices = @transform_11, window_bounds = array<i64: 1, 1, 64>}, {transform_indices = @transform_12, window_bounds = array<i64: 1, 64, 32>}, {transform_indices = @transform_13, window_bounds = array<i64: 1, 1, 32>}, {transform_indices = @transform_14, window_bounds = array<i64: 1, 8, 32>}]} {
    %c0_i32 = arith.constant 0 : i32
    %0 = arith.cmpi eq, %arg1, %c0_i32 : i32
    %1 = arith.extui %0 : i1 to i32
    %c0_i32_0 = arith.constant 0 : i32
    %2 = arith.cmpi ne, %1, %c0_i32_0 : i32
    scf.if %2 {
      %c0_87 = arith.constant 0 : index
      %c0_88 = arith.constant 0 : index
      %c0_89 = arith.constant 0 : index
      %310 = vector.load %arg2[%c0_87, %c0_88, %c0_89] : memref<1x8x32xf32, #tpu.memory_space<vmem>>, vector<1x8x32xf32>
      %311 = vector.shape_cast %310 : vector<1x8x32xf32> to vector<8x32xf32>
      %c0_90 = arith.constant 0 : index
      %c0_91 = arith.constant 0 : index
      %312 = vector.load %arg17[%c0_90, %c0_91] : memref<8x32xf32, #tpu.memory_space<vmem>>, vector<8x32xf32>
      tpu.vector_store %arg17[%c0_90, %c0_91], %311 {strides = array<i32>} : memref<8x32xf32, #tpu.memory_space<vmem>>, vector<8x32xf32>,
    } else {
    }
    %c0 = arith.constant 0 : index
    %c0_1 = arith.constant 0 : index
    %3 = vector.load %arg17[%c0, %c0_1] : memref<8x32xf32, #tpu.memory_space<vmem>>, vector<8x32xf32>
    %c0_2 = arith.constant 0 : index
    %c0_3 = arith.constant 0 : index
    %c0_4 = arith.constant 0 : index
    %4 = vector.load %arg3[%c0_2, %c0_3, %c0_4] : memref<1x8x32xf32, #tpu.memory_space<vmem>>, vector<1x8x32xf32>
    %5 = vector.shape_cast %4 : vector<1x8x32xf32> to vector<8x32xf32>
    %c0_5 = arith.constant 0 : index
    %c0_6 = arith.constant 0 : index
    %c0_7 = arith.constant 0 : index
    %6 = vector.load %arg4[%c0_5, %c0_6, %c0_7] : memref<1x1x8xf32, #tpu.memory_space<vmem>>, vector<1x1x8xf32>
    %7 = vector.shape_cast %6 : vector<1x1x8xf32> to vector<1x8xf32>
    %c0_8 = arith.constant 0 : index
    %c0_9 = arith.constant 0 : index
    %c0_10 = arith.constant 0 : index
    %8 = vector.load %arg5[%c0_8, %c0_9, %c0_10] : memref<1x1x8xf32, #tpu.memory_space<vmem>>, vector<1x1x8xf32>
    %9 = vector.shape_cast %8 : vector<1x1x8xf32> to vector<1x8xf32>
    %10 = tpu.iota {dimensions = array<i32: 0>} : vector<8x8xi32>
    %11 = tpu.iota {dimensions = array<i32: 1>} : vector<8x8xi32>
    %12 = arith.cmpi sgt, %11, %10 : vector<8x8xi32>
    %cst = arith.constant -1.000000e+09 : f32
    %cst_11 = arith.constant 0.000000e+00 : f32
    %13 = vector.broadcast %cst : f32 to vector<8x8xf32>
    %14 = vector.broadcast %cst_11 : f32 to vector<8x8xf32>
    %15 = arith.select %12, %13, %14 : vector<8x8xi1>, vector<8x8xf32>
    %c0_12 = arith.constant 0 : index
    %c0_13 = arith.constant 0 : index
    %c0_14 = arith.constant 0 : index
    %c0_15 = arith.constant 0 : index
    %16 = vector.load %arg10[%c0_12, %c0_13, %c0_14, %c0_15] : memref<1x3x1x32xf32, #tpu.memory_space<vmem>>, vector<1x3x1x32xf32>
    %17 = vector.shape_cast %16 : vector<1x3x1x32xf32> to vector<3x1x32xf32>
    %c0_16 = arith.constant 0 : index
    %c0_17 = arith.constant 0 : index
    %c0_18 = arith.constant 0 : index
    %c0_19 = arith.constant 0 : index
    %18 = vector.load %arg11[%c0_16, %c0_17, %c0_18, %c0_19] : memref<1x3x1x32xf32, #tpu.memory_space<vmem>>, vector<1x3x1x32xf32>
    %19 = vector.shape_cast %18 : vector<1x3x1x32xf32> to vector<3x1x32xf32>
    %c0_20 = arith.constant 0 : index
    %c0_21 = arith.constant 0 : index
    %c0_22 = arith.constant 0 : index
    %c0_23 = arith.constant 0 : index
    %20 = vector.load %arg6[%c0_20, %c0_21, %c0_22, %c0_23] : memref<1x4x32x32xbf16, #tpu.memory_space<vmem>>, vector<1x4x32x32xbf16>
    %21 = vector.shape_cast %20 : vector<1x4x32x32xbf16> to vector<4x32x32xbf16>
    %c0_24 = arith.constant 0 : index
    %c0_25 = arith.constant 0 : index
    %c0_26 = arith.constant 0 : index
    %c0_27 = arith.constant 0 : index
    %22 = vector.load %arg7[%c0_24, %c0_25, %c0_26, %c0_27] : memref<1x4x1x32xf32, #tpu.memory_space<vmem>>, vector<1x4x1x32xf32>
    %23 = vector.shape_cast %22 : vector<1x4x1x32xf32> to vector<4x1x32xf32>
    %24 = vector.extract_strided_slice %17 {offsets = [0, 0, 0], sizes = [1, 1, 32], strides = [1, 1, 1]} : vector<3x1x32xf32> to vector<1x1x32xf32>
    %25 = vector.shape_cast %24 : vector<1x1x32xf32> to vector<1x32xf32>
    %26 = vector.extract_strided_slice %19 {offsets = [0, 0, 0], sizes = [1, 1, 32], strides = [1, 1, 1]} : vector<3x1x32xf32> to vector<1x1x32xf32>
    %27 = vector.shape_cast %26 : vector<1x1x32xf32> to vector<1x32xf32>
    %28 = arith.truncf %3 : vector<8x32xf32> to vector<8x32xbf16>
    %29 = arith.truncf %3 : vector<8x32xf32> to vector<8x32xbf16>
    %30 = vector.extract_strided_slice %21 {offsets = [0, 0, 0], sizes = [1, 32, 32], strides = [1, 1, 1]} : vector<4x32x32xbf16> to vector<1x32x32xbf16>
    %31 = vector.shape_cast %30 : vector<1x32x32xbf16> to vector<32x32xbf16>
    %cst_28 = arith.constant dense<0.000000e+00> : vector<8x32xf32>
    %32 = tpu.matmul %28, %31, %cst_28 {dimension_numbers = #tpu.dot_dimension_numbers<[1], [0], [0], [1], [0, 0, 1, 1], [], []>} : vector<8x32xbf16>, vector<32x32xbf16>, vector<8x32xf32> -> vector<8x32xf32>
    %33 = vector.extract_strided_slice %23 {offsets = [0, 0, 0], sizes = [1, 1, 32], strides = [1, 1, 1]} : vector<4x1x32xf32> to vector<1x1x32xf32>
    %34 = vector.shape_cast %33 : vector<1x1x32xf32> to vector<1x32xf32>
    %35 = vector.broadcast %34 : vector<1x32xf32> to vector<8x32xf32>
    %36 = arith.addf %32, %35 : vector<8x32xf32>
    %37 = vector.extract_strided_slice %21 {offsets = [1, 0, 0], sizes = [1, 32, 32], strides = [1, 1, 1]} : vector<4x32x32xbf16> to vector<1x32x32xbf16>
    %38 = vector.shape_cast %37 : vector<1x32x32xbf16> to vector<32x32xbf16>
    %cst_29 = arith.constant dense<0.000000e+00> : vector<8x32xf32>
    %39 = tpu.matmul %29, %38, %cst_29 {dimension_numbers = #tpu.dot_dimension_numbers<[1], [0], [0], [1], [0, 0, 1, 1], [], []>} : vector<8x32xbf16>, vector<32x32xbf16>, vector<8x32xf32> -> vector<8x32xf32>
    %40 = vector.extract_strided_slice %23 {offsets = [1, 0, 0], sizes = [1, 1, 32], strides = [1, 1, 1]} : vector<4x1x32xf32> to vector<1x1x32xf32>
    %41 = vector.shape_cast %40 : vector<1x1x32xf32> to vector<1x32xf32>
    %42 = vector.broadcast %41 : vector<1x32xf32> to vector<8x32xf32>
    %43 = arith.addf %39, %42 : vector<8x32xf32>
    %44 = vector.extract_strided_slice %21 {offsets = [2, 0, 0], sizes = [1, 32, 32], strides = [1, 1, 1]} : vector<4x32x32xbf16> to vector<1x32x32xbf16>
    %45 = vector.shape_cast %44 : vector<1x32x32xbf16> to vector<32x32xbf16>
    %cst_30 = arith.constant dense<0.000000e+00> : vector<8x32xf32>
    %46 = tpu.matmul %29, %45, %cst_30 {dimension_numbers = #tpu.dot_dimension_numbers<[1], [0], [0], [1], [0, 0, 1, 1], [], []>} : vector<8x32xbf16>, vector<32x32xbf16>, vector<8x32xf32> -> vector<8x32xf32>
    %47 = vector.extract_strided_slice %23 {offsets = [2, 0, 0], sizes = [1, 1, 32], strides = [1, 1, 1]} : vector<4x1x32xf32> to vector<1x1x32xf32>
    %48 = vector.shape_cast %47 : vector<1x1x32xf32> to vector<1x32xf32>
    %49 = vector.broadcast %48 : vector<1x32xf32> to vector<8x32xf32>
    %50 = arith.addf %46, %49 : vector<8x32xf32>
    %51 = vector.extract_strided_slice %36 {offsets = [0, 0], sizes = [8, 8], strides = [1, 1]} : vector<8x32xf32> to vector<8x8xf32>
    %52 = vector.extract_strided_slice %36 {offsets = [0, 8], sizes = [8, 8], strides = [1, 1]} : vector<8x32xf32> to vector<8x8xf32>
    %53 = vector.extract_strided_slice %36 {offsets = [0, 16], sizes = [8, 8], strides = [1, 1]} : vector<8x32xf32> to vector<8x8xf32>
    %54 = vector.extract_strided_slice %36 {offsets = [0, 24], sizes = [8, 8], strides = [1, 1]} : vector<8x32xf32> to vector<8x8xf32>
    %55 = vector.shape_cast %51 : vector<8x8xf32> to vector<1x8x8xf32>
    %56 = vector.shape_cast %52 : vector<8x8xf32> to vector<1x8x8xf32>
    %57 = vector.shape_cast %53 : vector<8x8xf32> to vector<1x8x8xf32>
    %58 = vector.shape_cast %54 : vector<8x8xf32> to vector<1x8x8xf32>
    %59 = tpu.concatenate %55, %56, %57, %58 in 0 : vector<1x8x8xf32>, vector<1x8x8xf32>, vector<1x8x8xf32>, vector<1x8x8xf32> -> vector<4x8x8xf32>
    %60 = vector.extract_strided_slice %43 {offsets = [0, 0], sizes = [8, 8], strides = [1, 1]} : vector<8x32xf32> to vector<8x8xf32>
    %61 = vector.extract_strided_slice %43 {offsets = [0, 8], sizes = [8, 8], strides = [1, 1]} : vector<8x32xf32> to vector<8x8xf32>
    %62 = vector.extract_strided_slice %43 {offsets = [0, 16], sizes = [8, 8], strides = [1, 1]} : vector<8x32xf32> to vector<8x8xf32>
    %63 = vector.extract_strided_slice %43 {offsets = [0, 24], sizes = [8, 8], strides = [1, 1]} : vector<8x32xf32> to vector<8x8xf32>
    %64 = vector.shape_cast %60 : vector<8x8xf32> to vector<1x8x8xf32>
    %65 = vector.shape_cast %61 : vector<8x8xf32> to vector<1x8x8xf32>
    %66 = vector.shape_cast %62 : vector<8x8xf32> to vector<1x8x8xf32>
    %67 = vector.shape_cast %63 : vector<8x8xf32> to vector<1x8x8xf32>
    %68 = tpu.concatenate %64, %65, %66, %67 in 0 : vector<1x8x8xf32>, vector<1x8x8xf32>, vector<1x8x8xf32>, vector<1x8x8xf32> -> vector<4x8x8xf32>
    %69 = vector.extract_strided_slice %50 {offsets = [0, 0], sizes = [8, 8], strides = [1, 1]} : vector<8x32xf32> to vector<8x8xf32>
    %70 = vector.extract_strided_slice %50 {offsets = [0, 8], sizes = [8, 8], strides = [1, 1]} : vector<8x32xf32> to vector<8x8xf32>
    %71 = vector.extract_strided_slice %50 {offsets = [0, 16], sizes = [8, 8], strides = [1, 1]} : vector<8x32xf32> to vector<8x8xf32>
    %72 = vector.extract_strided_slice %50 {offsets = [0, 24], sizes = [8, 8], strides = [1, 1]} : vector<8x32xf32> to vector<8x8xf32>
    %73 = vector.shape_cast %69 : vector<8x8xf32> to vector<1x8x8xf32>
    %74 = vector.shape_cast %70 : vector<8x8xf32> to vector<1x8x8xf32>
    %75 = vector.shape_cast %71 : vector<8x8xf32> to vector<1x8x8xf32>
    %76 = vector.shape_cast %72 : vector<8x8xf32> to vector<1x8x8xf32>
    %77 = tpu.concatenate %73, %74, %75, %76 in 0 : vector<1x8x8xf32>, vector<1x8x8xf32>, vector<1x8x8xf32>, vector<1x8x8xf32> -> vector<4x8x8xf32>
    %78 = arith.truncf %59 : vector<4x8x8xf32> to vector<4x8x8xbf16>
    %79 = arith.truncf %68 : vector<4x8x8xf32> to vector<4x8x8xbf16>
    "tpu.trace_start"() <{level = 10 : i32, message = "hqd,hkd->hqk"}> : () -> ()
    %cst_31 = arith.constant dense<0.000000e+00> : vector<4x8x8xf32>
    %80 = tpu.matmul %78, %79, %cst_31 {dimension_numbers = #tpu.dot_dimension_numbers<[2], [2], [1], [1], [0, 0, 0, 1, 1, 1], [0], [0]>} : vector<4x8x8xbf16>, vector<4x8x8xbf16>, vector<4x8x8xf32> -> vector<4x8x8xf32>
    "tpu.trace_stop"() : () -> ()
    %cst_32 = arith.constant 0.353553385 : f32
    %81 = vector.broadcast %cst_32 : f32 to vector<4x8x8xf32>
    %82 = arith.mulf %80, %81 : vector<4x8x8xf32>
    %83 = vector.shape_cast %7 : vector<1x8xf32> to vector<1x1x8xf32>
    %84 = vector.broadcast %83 : vector<1x1x8xf32> to vector<4x8x8xf32>
    %85 = arith.addf %82, %84 : vector<4x8x8xf32>
    %86 = vector.shape_cast %15 : vector<8x8xf32> to vector<1x8x8xf32>
    %87 = vector.broadcast %86 : vector<1x8x8xf32> to vector<4x8x8xf32>
    %88 = arith.addf %85, %87 : vector<4x8x8xf32>
    %cst_33 = arith.constant dense<0xFF800000> : vector<4x8xf32>
    %89 = vector.multi_reduction <maximumf>, %88, %cst_33 [2] : vector<4x8x8xf32> to vector<4x8xf32>
    %90 = vector.shape_cast %89 : vector<4x8xf32> to vector<4x8x1xf32>
    %91 = vector.broadcast %90 : vector<4x8x1xf32> to vector<4x8x8xf32>
    %92 = arith.subf %88, %91 : vector<4x8x8xf32>
    %93 = math.exp %92 : vector<4x8x8xf32>
    %cst_34 = arith.constant dense<0.000000e+00> : vector<4x8xf32>
    %94 = vector.multi_reduction <add>, %93, %cst_34 [2] : vector<4x8x8xf32> to vector<4x8xf32>
    %95 = vector.shape_cast %94 : vector<4x8xf32> to vector<4x8x1xf32>
    %96 = tpu.reciprocal %95 {approx = true} : vector<4x8x1xf32> -> vector<4x8x1xf32>
    %97 = vector.broadcast %96 : vector<4x8x1xf32> to vector<4x8x8xf32>
    %98 = arith.mulf %93, %97 : vector<4x8x8xf32>
    %99 = arith.truncf %98 : vector<4x8x8xf32> to vector<4x8x8xbf16>
    %100 = arith.truncf %77 : vector<4x8x8xf32> to vector<4x8x8xbf16>
    "tpu.trace_start"() <{level = 10 : i32, message = "hqk,hkd->hqd"}> : () -> ()
    %cst_35 = arith.constant dense<0.000000e+00> : vector<4x8x8xf32>
    %101 = tpu.matmul %99, %100, %cst_35 {dimension_numbers = #tpu.dot_dimension_numbers<[2], [1], [1], [2], [0, 0, 0, 1, 1, 2], [0], [0]>} : vector<4x8x8xbf16>, vector<4x8x8xbf16>, vector<4x8x8xf32> -> vector<4x8x8xf32>
    "tpu.trace_stop"() : () -> ()
    %102 = vector.extract_strided_slice %101 {offsets = [0, 0, 0], sizes = [1, 8, 8], strides = [1, 1, 1]} : vector<4x8x8xf32> to vector<1x8x8xf32>
    %103 = vector.shape_cast %102 : vector<1x8x8xf32> to vector<8x8xf32>
    %104 = vector.extract_strided_slice %101 {offsets = [1, 0, 0], sizes = [1, 8, 8], strides = [1, 1, 1]} : vector<4x8x8xf32> to vector<1x8x8xf32>
    %105 = vector.shape_cast %104 : vector<1x8x8xf32> to vector<8x8xf32>
    %106 = vector.extract_strided_slice %101 {offsets = [2, 0, 0], sizes = [1, 8, 8], strides = [1, 1, 1]} : vector<4x8x8xf32> to vector<1x8x8xf32>
    %107 = vector.shape_cast %106 : vector<1x8x8xf32> to vector<8x8xf32>
    %108 = vector.extract_strided_slice %101 {offsets = [3, 0, 0], sizes = [1, 8, 8], strides = [1, 1, 1]} : vector<4x8x8xf32> to vector<1x8x8xf32>
    %109 = vector.shape_cast %108 : vector<1x8x8xf32> to vector<8x8xf32>
    %110 = tpu.concatenate %103, %105, %107, %109 in 1 : vector<8x8xf32>, vector<8x8xf32>, vector<8x8xf32>, vector<8x8xf32> -> vector<8x32xf32>
    %111 = arith.truncf %110 : vector<8x32xf32> to vector<8x32xbf16>
    %112 = vector.extract_strided_slice %21 {offsets = [3, 0, 0], sizes = [1, 32, 32], strides = [1, 1, 1]} : vector<4x32x32xbf16> to vector<1x32x32xbf16>
    %113 = vector.shape_cast %112 : vector<1x32x32xbf16> to vector<32x32xbf16>
    %cst_36 = arith.constant dense<0.000000e+00> : vector<8x32xf32>
    %114 = tpu.matmul %111, %113, %cst_36 {dimension_numbers = #tpu.dot_dimension_numbers<[1], [0], [0], [1], [0, 0, 1, 1], [], []>} : vector<8x32xbf16>, vector<32x32xbf16>, vector<8x32xf32> -> vector<8x32xf32>
    %115 = vector.extract_strided_slice %23 {offsets = [3, 0, 0], sizes = [1, 1, 32], strides = [1, 1, 1]} : vector<4x1x32xf32> to vector<1x1x32xf32>
    %116 = vector.shape_cast %115 : vector<1x1x32xf32> to vector<1x32xf32>
    %117 = vector.broadcast %116 : vector<1x32xf32> to vector<8x32xf32>
    %118 = arith.addf %114, %117 : vector<8x32xf32>
    %119 = arith.addf %3, %118 : vector<8x32xf32>
    %cst_37 = arith.constant dense<0.000000e+00> : vector<8xf32>
    %120 = vector.multi_reduction <add>, %119, %cst_37 [1] : vector<8x32xf32> to vector<8xf32>
    %121 = vector.shape_cast %120 : vector<8xf32> to vector<8x1xf32>
    %122 = arith.mulf %119, %119 : vector<8x32xf32>
    %cst_38 = arith.constant dense<0.000000e+00> : vector<8xf32>
    %123 = vector.multi_reduction <add>, %122, %cst_38 [1] : vector<8x32xf32> to vector<8xf32>
    %124 = vector.shape_cast %123 : vector<8xf32> to vector<8x1xf32>
    %cst_39 = arith.constant 3.125000e-02 : f32
    %125 = vector.broadcast %cst_39 : f32 to vector<8x1xf32>
    %126 = arith.mulf %121, %125 : vector<8x1xf32>
    %cst_40 = arith.constant 3.125000e-02 : f32
    %127 = vector.broadcast %cst_40 : f32 to vector<8x1xf32>
    %128 = arith.mulf %124, %127 : vector<8x1xf32>
    %129 = arith.mulf %126, %126 : vector<8x1xf32>
    %130 = arith.subf %128, %129 : vector<8x1xf32>
    %131 = vector.broadcast %126 : vector<8x1xf32> to vector<8x32xf32>
    %132 = arith.subf %119, %131 : vector<8x32xf32>
    %cst_41 = arith.constant 9.99999974E-6 : f32
    %133 = vector.broadcast %cst_41 : f32 to vector<8x1xf32>
    %134 = arith.addf %130, %133 : vector<8x1xf32>
    %135 = math.rsqrt %134 : vector<8x1xf32>
    %136 = vector.broadcast %135 : vector<8x1xf32> to vector<8x32xf32>
    %137 = arith.mulf %132, %136 : vector<8x32xf32>
    %138 = vector.broadcast %25 : vector<1x32xf32> to vector<8x32xf32>
    %139 = arith.mulf %137, %138 : vector<8x32xf32>
    %140 = vector.broadcast %27 : vector<1x32xf32> to vector<8x32xf32>
    %141 = arith.addf %139, %140 : vector<8x32xf32>
    %c0_42 = arith.constant 0 : index
    %c0_43 = arith.constant 0 : index
    %c0_44 = arith.constant 0 : index
    %c0_45 = arith.constant 0 : index
    %142 = vector.load %arg8[%c0_42, %c0_43, %c0_44, %c0_45] : memref<1x4x32x32xbf16, #tpu.memory_space<vmem>>, vector<1x4x32x32xbf16>
    %143 = vector.shape_cast %142 : vector<1x4x32x32xbf16> to vector<4x32x32xbf16>
    %c0_46 = arith.constant 0 : index
    %c0_47 = arith.constant 0 : index
    %c0_48 = arith.constant 0 : index
    %c0_49 = arith.constant 0 : index
    %144 = vector.load %arg9[%c0_46, %c0_47, %c0_48, %c0_49] : memref<1x4x1x32xf32, #tpu.memory_space<vmem>>, vector<1x4x1x32xf32>
    %145 = vector.shape_cast %144 : vector<1x4x1x32xf32> to vector<4x1x32xf32>
    %146 = vector.extract_strided_slice %17 {offsets = [1, 0, 0], sizes = [1, 1, 32], strides = [1, 1, 1]} : vector<3x1x32xf32> to vector<1x1x32xf32>
    %147 = vector.shape_cast %146 : vector<1x1x32xf32> to vector<1x32xf32>
    %148 = vector.extract_strided_slice %19 {offsets = [1, 0, 0], sizes = [1, 1, 32], strides = [1, 1, 1]} : vector<3x1x32xf32> to vector<1x1x32xf32>
    %149 = vector.shape_cast %148 : vector<1x1x32xf32> to vector<1x32xf32>
    %150 = arith.truncf %141 : vector<8x32xf32> to vector<8x32xbf16>
    %151 = arith.truncf %5 : vector<8x32xf32> to vector<8x32xbf16>
    %152 = vector.extract_strided_slice %143 {offsets = [0, 0, 0], sizes = [1, 32, 32], strides = [1, 1, 1]} : vector<4x32x32xbf16> to vector<1x32x32xbf16>
    %153 = vector.shape_cast %152 : vector<1x32x32xbf16> to vector<32x32xbf16>
    %cst_50 = arith.constant dense<0.000000e+00> : vector<8x32xf32>
    %154 = tpu.matmul %150, %153, %cst_50 {dimension_numbers = #tpu.dot_dimension_numbers<[1], [0], [0], [1], [0, 0, 1, 1], [], []>} : vector<8x32xbf16>, vector<32x32xbf16>, vector<8x32xf32> -> vector<8x32xf32>
    %155 = vector.extract_strided_slice %145 {offsets = [0, 0, 0], sizes = [1, 1, 32], strides = [1, 1, 1]} : vector<4x1x32xf32> to vector<1x1x32xf32>
    %156 = vector.shape_cast %155 : vector<1x1x32xf32> to vector<1x32xf32>
    %157 = vector.broadcast %156 : vector<1x32xf32> to vector<8x32xf32>
    %158 = arith.addf %154, %157 : vector<8x32xf32>
    %159 = vector.extract_strided_slice %143 {offsets = [1, 0, 0], sizes = [1, 32, 32], strides = [1, 1, 1]} : vector<4x32x32xbf16> to vector<1x32x32xbf16>
    %160 = vector.shape_cast %159 : vector<1x32x32xbf16> to vector<32x32xbf16>
    %cst_51 = arith.constant dense<0.000000e+00> : vector<8x32xf32>
    %161 = tpu.matmul %151, %160, %cst_51 {dimension_numbers = #tpu.dot_dimension_numbers<[1], [0], [0], [1], [0, 0, 1, 1], [], []>} : vector<8x32xbf16>, vector<32x32xbf16>, vector<8x32xf32> -> vector<8x32xf32>
    %162 = vector.extract_strided_slice %145 {offsets = [1, 0, 0], sizes = [1, 1, 32], strides = [1, 1, 1]} : vector<4x1x32xf32> to vector<1x1x32xf32>
    %163 = vector.shape_cast %162 : vector<1x1x32xf32> to vector<1x32xf32>
    %164 = vector.broadcast %163 : vector<1x32xf32> to vector<8x32xf32>
    %165 = arith.addf %161, %164 : vector<8x32xf32>
    %166 = vector.extract_strided_slice %143 {offsets = [2, 0, 0], sizes = [1, 32, 32], strides = [1, 1, 1]} : vector<4x32x32xbf16> to vector<1x32x32xbf16>
    %167 = vector.shape_cast %166 : vector<1x32x32xbf16> to vector<32x32xbf16>
    %cst_52 = arith.constant dense<0.000000e+00> : vector<8x32xf32>
    %168 = tpu.matmul %151, %167, %cst_52 {dimension_numbers = #tpu.dot_dimension_numbers<[1], [0], [0], [1], [0, 0, 1, 1], [], []>} : vector<8x32xbf16>, vector<32x32xbf16>, vector<8x32xf32> -> vector<8x32xf32>
    %169 = vector.extract_strided_slice %145 {offsets = [2, 0, 0], sizes = [1, 1, 32], strides = [1, 1, 1]} : vector<4x1x32xf32> to vector<1x1x32xf32>
    %170 = vector.shape_cast %169 : vector<1x1x32xf32> to vector<1x32xf32>
    %171 = vector.broadcast %170 : vector<1x32xf32> to vector<8x32xf32>
    %172 = arith.addf %168, %171 : vector<8x32xf32>
    %173 = vector.extract_strided_slice %158 {offsets = [0, 0], sizes = [8, 8], strides = [1, 1]} : vector<8x32xf32> to vector<8x8xf32>
    %174 = vector.extract_strided_slice %158 {offsets = [0, 8], sizes = [8, 8], strides = [1, 1]} : vector<8x32xf32> to vector<8x8xf32>
    %175 = vector.extract_strided_slice %158 {offsets = [0, 16], sizes = [8, 8], strides = [1, 1]} : vector<8x32xf32> to vector<8x8xf32>
    %176 = vector.extract_strided_slice %158 {offsets = [0, 24], sizes = [8, 8], strides = [1, 1]} : vector<8x32xf32> to vector<8x8xf32>
    %177 = vector.shape_cast %173 : vector<8x8xf32> to vector<1x8x8xf32>
    %178 = vector.shape_cast %174 : vector<8x8xf32> to vector<1x8x8xf32>
    %179 = vector.shape_cast %175 : vector<8x8xf32> to vector<1x8x8xf32>
    %180 = vector.shape_cast %176 : vector<8x8xf32> to vector<1x8x8xf32>
    %181 = tpu.concatenate %177, %178, %179, %180 in 0 : vector<1x8x8xf32>, vector<1x8x8xf32>, vector<1x8x8xf32>, vector<1x8x8xf32> -> vector<4x8x8xf32>
    %182 = vector.extract_strided_slice %165 {offsets = [0, 0], sizes = [8, 8], strides = [1, 1]} : vector<8x32xf32> to vector<8x8xf32>
    %183 = vector.extract_strided_slice %165 {offsets = [0, 8], sizes = [8, 8], strides = [1, 1]} : vector<8x32xf32> to vector<8x8xf32>
    %184 = vector.extract_strided_slice %165 {offsets = [0, 16], sizes = [8, 8], strides = [1, 1]} : vector<8x32xf32> to vector<8x8xf32>
    %185 = vector.extract_strided_slice %165 {offsets = [0, 24], sizes = [8, 8], strides = [1, 1]} : vector<8x32xf32> to vector<8x8xf32>
    %186 = vector.shape_cast %182 : vector<8x8xf32> to vector<1x8x8xf32>
    %187 = vector.shape_cast %183 : vector<8x8xf32> to vector<1x8x8xf32>
    %188 = vector.shape_cast %184 : vector<8x8xf32> to vector<1x8x8xf32>
    %189 = vector.shape_cast %185 : vector<8x8xf32> to vector<1x8x8xf32>
    %190 = tpu.concatenate %186, %187, %188, %189 in 0 : vector<1x8x8xf32>, vector<1x8x8xf32>, vector<1x8x8xf32>, vector<1x8x8xf32> -> vector<4x8x8xf32>
    %191 = vector.extract_strided_slice %172 {offsets = [0, 0], sizes = [8, 8], strides = [1, 1]} : vector<8x32xf32> to vector<8x8xf32>
    %192 = vector.extract_strided_slice %172 {offsets = [0, 8], sizes = [8, 8], strides = [1, 1]} : vector<8x32xf32> to vector<8x8xf32>
    %193 = vector.extract_strided_slice %172 {offsets = [0, 16], sizes = [8, 8], strides = [1, 1]} : vector<8x32xf32> to vector<8x8xf32>
    %194 = vector.extract_strided_slice %172 {offsets = [0, 24], sizes = [8, 8], strides = [1, 1]} : vector<8x32xf32> to vector<8x8xf32>
    %195 = vector.shape_cast %191 : vector<8x8xf32> to vector<1x8x8xf32>
    %196 = vector.shape_cast %192 : vector<8x8xf32> to vector<1x8x8xf32>
    %197 = vector.shape_cast %193 : vector<8x8xf32> to vector<1x8x8xf32>
    %198 = vector.shape_cast %194 : vector<8x8xf32> to vector<1x8x8xf32>
    %199 = tpu.concatenate %195, %196, %197, %198 in 0 : vector<1x8x8xf32>, vector<1x8x8xf32>, vector<1x8x8xf32>, vector<1x8x8xf32> -> vector<4x8x8xf32>
    %200 = arith.truncf %181 : vector<4x8x8xf32> to vector<4x8x8xbf16>
    %201 = arith.truncf %190 : vector<4x8x8xf32> to vector<4x8x8xbf16>
    "tpu.trace_start"() <{level = 10 : i32, message = "hqd,hkd->hqk"}> : () -> ()
    %cst_53 = arith.constant dense<0.000000e+00> : vector<4x8x8xf32>
    %202 = tpu.matmul %200, %201, %cst_53 {dimension_numbers = #tpu.dot_dimension_numbers<[2], [2], [1], [1], [0, 0, 0, 1, 1, 1], [0], [0]>} : vector<4x8x8xbf16>, vector<4x8x8xbf16>, vector<4x8x8xf32> -> vector<4x8x8xf32>
    "tpu.trace_stop"() : () -> ()
    %cst_54 = arith.constant 0.353553385 : f32
    %203 = vector.broadcast %cst_54 : f32 to vector<4x8x8xf32>
    %204 = arith.mulf %202, %203 : vector<4x8x8xf32>
    %205 = vector.shape_cast %9 : vector<1x8xf32> to vector<1x1x8xf32>
    %206 = vector.broadcast %205 : vector<1x1x8xf32> to vector<4x8x8xf32>
    %207 = arith.addf %204, %206 : vector<4x8x8xf32>
    %cst_55 = arith.constant dense<0xFF800000> : vector<4x8xf32>
    %208 = vector.multi_reduction <maximumf>, %207, %cst_55 [2] : vector<4x8x8xf32> to vector<4x8xf32>
    %209 = vector.shape_cast %208 : vector<4x8xf32> to vector<4x8x1xf32>
    %210 = vector.broadcast %209 : vector<4x8x1xf32> to vector<4x8x8xf32>
    %211 = arith.subf %207, %210 : vector<4x8x8xf32>
    %212 = math.exp %211 : vector<4x8x8xf32>
    %cst_56 = arith.constant dense<0.000000e+00> : vector<4x8xf32>
    %213 = vector.multi_reduction <add>, %212, %cst_56 [2] : vector<4x8x8xf32> to vector<4x8xf32>
    %214 = vector.shape_cast %213 : vector<4x8xf32> to vector<4x8x1xf32>
    %215 = tpu.reciprocal %214 {approx = true} : vector<4x8x1xf32> -> vector<4x8x1xf32>
    %216 = vector.broadcast %215 : vector<4x8x1xf32> to vector<4x8x8xf32>
    %217 = arith.mulf %212, %216 : vector<4x8x8xf32>
    %218 = arith.truncf %217 : vector<4x8x8xf32> to vector<4x8x8xbf16>
    %219 = arith.truncf %199 : vector<4x8x8xf32> to vector<4x8x8xbf16>
    "tpu.trace_start"() <{level = 10 : i32, message = "hqk,hkd->hqd"}> : () -> ()
    %cst_57 = arith.constant dense<0.000000e+00> : vector<4x8x8xf32>
    %220 = tpu.matmul %218, %219, %cst_57 {dimension_numbers = #tpu.dot_dimension_numbers<[2], [1], [1], [2], [0, 0, 0, 1, 1, 2], [0], [0]>} : vector<4x8x8xbf16>, vector<4x8x8xbf16>, vector<4x8x8xf32> -> vector<4x8x8xf32>
    "tpu.trace_stop"() : () -> ()
    %221 = vector.extract_strided_slice %220 {offsets = [0, 0, 0], sizes = [1, 8, 8], strides = [1, 1, 1]} : vector<4x8x8xf32> to vector<1x8x8xf32>
    %222 = vector.shape_cast %221 : vector<1x8x8xf32> to vector<8x8xf32>
    %223 = vector.extract_strided_slice %220 {offsets = [1, 0, 0], sizes = [1, 8, 8], strides = [1, 1, 1]} : vector<4x8x8xf32> to vector<1x8x8xf32>
    %224 = vector.shape_cast %223 : vector<1x8x8xf32> to vector<8x8xf32>
    %225 = vector.extract_strided_slice %220 {offsets = [2, 0, 0], sizes = [1, 8, 8], strides = [1, 1, 1]} : vector<4x8x8xf32> to vector<1x8x8xf32>
    %226 = vector.shape_cast %225 : vector<1x8x8xf32> to vector<8x8xf32>
    %227 = vector.extract_strided_slice %220 {offsets = [3, 0, 0], sizes = [1, 8, 8], strides = [1, 1, 1]} : vector<4x8x8xf32> to vector<1x8x8xf32>
    %228 = vector.shape_cast %227 : vector<1x8x8xf32> to vector<8x8xf32>
    %229 = tpu.concatenate %222, %224, %226, %228 in 1 : vector<8x8xf32>, vector<8x8xf32>, vector<8x8xf32>, vector<8x8xf32> -> vector<8x32xf32>
    %230 = arith.truncf %229 : vector<8x32xf32> to vector<8x32xbf16>
    %231 = vector.extract_strided_slice %143 {offsets = [3, 0, 0], sizes = [1, 32, 32], strides = [1, 1, 1]} : vector<4x32x32xbf16> to vector<1x32x32xbf16>
    %232 = vector.shape_cast %231 : vector<1x32x32xbf16> to vector<32x32xbf16>
    %cst_58 = arith.constant dense<0.000000e+00> : vector<8x32xf32>
    %233 = tpu.matmul %230, %232, %cst_58 {dimension_numbers = #tpu.dot_dimension_numbers<[1], [0], [0], [1], [0, 0, 1, 1], [], []>} : vector<8x32xbf16>, vector<32x32xbf16>, vector<8x32xf32> -> vector<8x32xf32>
    %234 = vector.extract_strided_slice %145 {offsets = [3, 0, 0], sizes = [1, 1, 32], strides = [1, 1, 1]} : vector<4x1x32xf32> to vector<1x1x32xf32>
    %235 = vector.shape_cast %234 : vector<1x1x32xf32> to vector<1x32xf32>
    %236 = vector.broadcast %235 : vector<1x32xf32> to vector<8x32xf32>
    %237 = arith.addf %233, %236 : vector<8x32xf32>
    %238 = arith.addf %141, %237 : vector<8x32xf32>
    %cst_59 = arith.constant dense<0.000000e+00> : vector<8xf32>
    %239 = vector.multi_reduction <add>, %238, %cst_59 [1] : vector<8x32xf32> to vector<8xf32>
    %240 = vector.shape_cast %239 : vector<8xf32> to vector<8x1xf32>
    %241 = arith.mulf %238, %238 : vector<8x32xf32>
    %cst_60 = arith.constant dense<0.000000e+00> : vector<8xf32>
    %242 = vector.multi_reduction <add>, %241, %cst_60 [1] : vector<8x32xf32> to vector<8xf32>
    %243 = vector.shape_cast %242 : vector<8xf32> to vector<8x1xf32>
    %cst_61 = arith.constant 3.125000e-02 : f32
    %244 = vector.broadcast %cst_61 : f32 to vector<8x1xf32>
    %245 = arith.mulf %240, %244 : vector<8x1xf32>
    %cst_62 = arith.constant 3.125000e-02 : f32
    %246 = vector.broadcast %cst_62 : f32 to vector<8x1xf32>
    %247 = arith.mulf %243, %246 : vector<8x1xf32>
    %248 = arith.mulf %245, %245 : vector<8x1xf32>
    %249 = arith.subf %247, %248 : vector<8x1xf32>
    %250 = vector.broadcast %245 : vector<8x1xf32> to vector<8x32xf32>
    %251 = arith.subf %238, %250 : vector<8x32xf32>
    %cst_63 = arith.constant 9.99999974E-6 : f32
    %252 = vector.broadcast %cst_63 : f32 to vector<8x1xf32>
    %253 = arith.addf %249, %252 : vector<8x1xf32>
    %254 = math.rsqrt %253 : vector<8x1xf32>
    %255 = vector.broadcast %254 : vector<8x1xf32> to vector<8x32xf32>
    %256 = arith.mulf %251, %255 : vector<8x32xf32>
    %257 = vector.broadcast %147 : vector<1x32xf32> to vector<8x32xf32>
    %258 = arith.mulf %256, %257 : vector<8x32xf32>
    %259 = vector.broadcast %149 : vector<1x32xf32> to vector<8x32xf32>
    %260 = arith.addf %258, %259 : vector<8x32xf32>
    %c0_64 = arith.constant 0 : index
    %c0_65 = arith.constant 0 : index
    %c0_66 = arith.constant 0 : index
    %261 = vector.load %arg12[%c0_64, %c0_65, %c0_66] : memref<1x32x64xbf16, #tpu.memory_space<vmem>>, vector<1x32x64xbf16>
    %262 = vector.shape_cast %261 : vector<1x32x64xbf16> to vector<32x64xbf16>
    %c0_67 = arith.constant 0 : index
    %c0_68 = arith.constant 0 : index
    %c0_69 = arith.constant 0 : index
    %263 = vector.load %arg13[%c0_67, %c0_68, %c0_69] : memref<1x1x64xf32, #tpu.memory_space<vmem>>, vector<1x1x64xf32>
    %264 = vector.shape_cast %263 : vector<1x1x64xf32> to vector<1x64xf32>
    %c0_70 = arith.constant 0 : index
    %c0_71 = arith.constant 0 : index
    %c0_72 = arith.constant 0 : index
    %265 = vector.load %arg14[%c0_70, %c0_71, %c0_72] : memref<1x64x32xbf16, #tpu.memory_space<vmem>>, vector<1x64x32xbf16>
    %266 = vector.shape_cast %265 : vector<1x64x32xbf16> to vector<64x32xbf16>
    %c0_73 = arith.constant 0 : index
    %c0_74 = arith.constant 0 : index
    %c0_75 = arith.constant 0 : index
    %267 = vector.load %arg15[%c0_73, %c0_74, %c0_75] : memref<1x1x32xf32, #tpu.memory_space<vmem>>, vector<1x1x32xf32>
    %268 = vector.shape_cast %267 : vector<1x1x32xf32> to vector<1x32xf32>
    %269 = vector.extract_strided_slice %17 {offsets = [2, 0, 0], sizes = [1, 1, 32], strides = [1, 1, 1]} : vector<3x1x32xf32> to vector<1x1x32xf32>
    %270 = vector.shape_cast %269 : vector<1x1x32xf32> to vector<1x32xf32>
    %271 = vector.extract_strided_slice %19 {offsets = [2, 0, 0], sizes = [1, 1, 32], strides = [1, 1, 1]} : vector<3x1x32xf32> to vector<1x1x32xf32>
    %272 = vector.shape_cast %271 : vector<1x1x32xf32> to vector<1x32xf32>
    %273 = arith.truncf %260 : vector<8x32xf32> to vector<8x32xbf16>
    %cst_76 = arith.constant dense<0.000000e+00> : vector<8x64xf32>
    %274 = tpu.matmul %273, %262, %cst_76 {dimension_numbers = #tpu.dot_dimension_numbers<[1], [0], [0], [1], [0, 0, 1, 1], [], []>} : vector<8x32xbf16>, vector<32x64xbf16>, vector<8x64xf32> -> vector<8x64xf32>
    %275 = vector.broadcast %264 : vector<1x64xf32> to vector<8x64xf32>
    %276 = arith.addf %274, %275 : vector<8x64xf32>
    %cst_77 = arith.constant 0.000000e+00 : f32
    %277 = vector.broadcast %cst_77 : f32 to vector<8x64xf32>
    %278 = arith.maximumf %276, %277 : vector<8x64xf32>
    %279 = arith.truncf %278 : vector<8x64xf32> to vector<8x64xbf16>
    %cst_78 = arith.constant dense<0.000000e+00> : vector<8x32xf32>
    %280 = tpu.matmul %279, %266, %cst_78 {dimension_numbers = #tpu.dot_dimension_numbers<[1], [0], [0], [1], [0, 0, 1, 1], [], []>} : vector<8x64xbf16>, vector<64x32xbf16>, vector<8x32xf32> -> vector<8x32xf32>
    %281 = vector.broadcast %268 : vector<1x32xf32> to vector<8x32xf32>
    %282 = arith.addf %280, %281 : vector<8x32xf32>
    %283 = arith.addf %260, %282 : vector<8x32xf32>
    %cst_79 = arith.constant dense<0.000000e+00> : vector<8xf32>
    %284 = vector.multi_reduction <add>, %283, %cst_79 [1] : vector<8x32xf32> to vector<8xf32>
    %285 = vector.shape_cast %284 : vector<8xf32> to vector<8x1xf32>
    %286 = arith.mulf %283, %283 : vector<8x32xf32>
    %cst_80 = arith.constant dense<0.000000e+00> : vector<8xf32>
    %287 = vector.multi_reduction <add>, %286, %cst_80 [1] : vector<8x32xf32> to vector<8xf32>
    %288 = vector.shape_cast %287 : vector<8xf32> to vector<8x1xf32>
    %cst_81 = arith.constant 3.125000e-02 : f32
    %289 = vector.broadcast %cst_81 : f32 to vector<8x1xf32>
    %290 = arith.mulf %285, %289 : vector<8x1xf32>
    %cst_82 = arith.constant 3.125000e-02 : f32
    %291 = vector.broadcast %cst_82 : f32 to vector<8x1xf32>
    %292 = arith.mulf %288, %291 : vector<8x1xf32>
    %293 = arith.mulf %290, %290 : vector<8x1xf32>
    %294 = arith.subf %292, %293 : vector<8x1xf32>
    %295 = vector.broadcast %290 : vector<8x1xf32> to vector<8x32xf32>
    %296 = arith.subf %283, %295 : vector<8x32xf32>
    %cst_83 = arith.constant 9.99999974E-6 : f32
    %297 = vector.broadcast %cst_83 : f32 to vector<8x1xf32>
    %298 = arith.addf %294, %297 : vector<8x1xf32>
    %299 = math.rsqrt %298 : vector<8x1xf32>
    %300 = vector.broadcast %299 : vector<8x1xf32> to vector<8x32xf32>
    %301 = arith.mulf %296, %300 : vector<8x32xf32>
    %302 = vector.broadcast %270 : vector<1x32xf32> to vector<8x32xf32>
    %303 = arith.mulf %301, %302 : vector<8x32xf32>
    %304 = vector.broadcast %272 : vector<1x32xf32> to vector<8x32xf32>
    %305 = arith.addf %303, %304 : vector<8x32xf32>
    %c0_84 = arith.constant 0 : index
    %c0_85 = arith.constant 0 : index
    %306 = vector.load %arg17[%c0_84, %c0_85] : memref<8x32xf32, #tpu.memory_space<vmem>>, vector<8x32xf32>
    tpu.vector_store %arg17[%c0_84, %c0_85], %305 {strides = array<i32>} : memref<8x32xf32, #tpu.memory_space<vmem>>, vector<8x32xf32>,
    %c1_i32 = arith.constant 1 : i32
    %307 = arith.cmpi eq, %arg1, %c1_i32 : i32
    %308 = arith.extui %307 : i1 to i32
    %c0_i32_86 = arith.constant 0 : i32
    %309 = arith.cmpi ne, %308, %c0_i32_86 : i32
    scf.if %309 {
      %c0_87 = arith.constant 0 : index
      %c0_88 = arith.constant 0 : index
      %c0_89 = arith.constant 0 : index
      %310 = vector.load %arg16[%c0_87, %c0_88, %c0_89] : memref<1x8x32xf32, #tpu.memory_space<vmem>>, vector<1x8x32xf32>
      %311 = vector.shape_cast %310 : vector<1x8x32xf32> to vector<8x32xf32>
      %312 = vector.shape_cast %305 : vector<8x32xf32> to vector<1x8x32xf32>
      tpu.vector_store %arg16[%c0_87, %c0_88, %c0_89], %312 {strides = array<i32>} : memref<1x8x32xf32, #tpu.memory_space<vmem>>, vector<1x8x32xf32>,
    } else {
    }
    return
  }
  func.func @transform_0(%arg0: i32, %arg1: i32) -> (i32, i32, i32) {
    %c0_i32 = arith.constant 0 : i32
    %c0_i32_0 = arith.constant 0 : i32
    %c0_i32_1 = arith.constant 0 : i32
    return %arg0, %c0_i32, %c0_i32_0 : i32, i32, i32
  }
  func.func @transform_1(%arg0: i32, %arg1: i32) -> (i32, i32, i32) {
    %c0_i32 = arith.constant 0 : i32
    %c0_i32_0 = arith.constant 0 : i32
    %c0_i32_1 = arith.constant 0 : i32
    return %arg0, %c0_i32, %c0_i32_0 : i32, i32, i32
  }
  func.func @transform_2(%arg0: i32, %arg1: i32) -> (i32, i32, i32) {
    %c0_i32 = arith.constant 0 : i32
    %c0_i32_0 = arith.constant 0 : i32
    %c0_i32_1 = arith.constant 0 : i32
    return %arg0, %c0_i32, %c0_i32_0 : i32, i32, i32
  }
  func.func @transform_3(%arg0: i32, %arg1: i32) -> (i32, i32, i32) {
    %c0_i32 = arith.constant 0 : i32
    %c0_i32_0 = arith.constant 0 : i32
    %c0_i32_1 = arith.constant 0 : i32
    return %arg0, %c0_i32, %c0_i32_0 : i32, i32, i32
  }
  func.func @transform_4(%arg0: i32, %arg1: i32) -> (i32, i32, i32, i32) {
    %c0_i32 = arith.constant 0 : i32
    %c0_i32_0 = arith.constant 0 : i32
    %c0_i32_1 = arith.constant 0 : i32
    %c0_i32_2 = arith.constant 0 : i32
    return %arg1, %c0_i32, %c0_i32_0, %c0_i32_1 : i32, i32, i32, i32
  }
  func.func @transform_5(%arg0: i32, %arg1: i32) -> (i32, i32, i32, i32) {
    %c0_i32 = arith.constant 0 : i32
    %c0_i32_0 = arith.constant 0 : i32
    %c0_i32_1 = arith.constant 0 : i32
    %c0_i32_2 = arith.constant 0 : i32
    return %arg1, %c0_i32, %c0_i32_0, %c0_i32_1 : i32, i32, i32, i32
  }
  func.func @transform_6(%arg0: i32, %arg1: i32) -> (i32, i32, i32, i32) {
    %c0_i32 = arith.constant 0 : i32
    %c0_i32_0 = arith.constant 0 : i32
    %c0_i32_1 = arith.constant 0 : i32
    %c0_i32_2 = arith.constant 0 : i32
    return %arg1, %c0_i32, %c0_i32_0, %c0_i32_1 : i32, i32, i32, i32
  }
  func.func @transform_7(%arg0: i32, %arg1: i32) -> (i32, i32, i32, i32) {
    %c0_i32 = arith.constant 0 : i32
    %c0_i32_0 = arith.constant 0 : i32
    %c0_i32_1 = arith.constant 0 : i32
    %c0_i32_2 = arith.constant 0 : i32
    return %arg1, %c0_i32, %c0_i32_0, %c0_i32_1 : i32, i32, i32, i32
  }
  func.func @transform_8(%arg0: i32, %arg1: i32) -> (i32, i32, i32, i32) {
    %c0_i32 = arith.constant 0 : i32
    %c0_i32_0 = arith.constant 0 : i32
    %c0_i32_1 = arith.constant 0 : i32
    %c0_i32_2 = arith.constant 0 : i32
    return %arg1, %c0_i32, %c0_i32_0, %c0_i32_1 : i32, i32, i32, i32
  }
  func.func @transform_9(%arg0: i32, %arg1: i32) -> (i32, i32, i32, i32) {
    %c0_i32 = arith.constant 0 : i32
    %c0_i32_0 = arith.constant 0 : i32
    %c0_i32_1 = arith.constant 0 : i32
    %c0_i32_2 = arith.constant 0 : i32
    return %arg1, %c0_i32, %c0_i32_0, %c0_i32_1 : i32, i32, i32, i32
  }
  func.func @transform_10(%arg0: i32, %arg1: i32) -> (i32, i32, i32) {
    %c0_i32 = arith.constant 0 : i32
    %c0_i32_0 = arith.constant 0 : i32
    %c0_i32_1 = arith.constant 0 : i32
    return %arg1, %c0_i32, %c0_i32_0 : i32, i32, i32
  }
  func.func @transform_11(%arg0: i32, %arg1: i32) -> (i32, i32, i32) {
    %c0_i32 = arith.constant 0 : i32
    %c0_i32_0 = arith.constant 0 : i32
    %c0_i32_1 = arith.constant 0 : i32
    return %arg1, %c0_i32, %c0_i32_0 : i32, i32, i32
  }
  func.func @transform_12(%arg0: i32, %arg1: i32) -> (i32, i32, i32) {
    %c0_i32 = arith.constant 0 : i32
    %c0_i32_0 = arith.constant 0 : i32
    %c0_i32_1 = arith.constant 0 : i32
    return %arg1, %c0_i32, %c0_i32_0 : i32, i32, i32
  }
  func.func @transform_13(%arg0: i32, %arg1: i32) -> (i32, i32, i32) {
    %c0_i32 = arith.constant 0 : i32
    %c0_i32_0 = arith.constant 0 : i32
    %c0_i32_1 = arith.constant 0 : i32
    return %arg1, %c0_i32, %c0_i32_0 : i32, i32, i32
  }
  func.func @transform_14(%arg0: i32, %arg1: i32) -> (i32, i32, i32) {
    %c0_i32 = arith.constant 0 : i32
    %c0_i32_0 = arith.constant 0 : i32
    %c0_i32_1 = arith.constant 0 : i32
    return %arg0, %c0_i32, %c0_i32_0 : i32, i32, i32
  }
}

</mosaic_0001>

<llo_original>
// kernel: transformer_forward.5
$region0: #{transformer_forward.5}
  #allocation0 [shape = 'u32[]', space=smem, size = 0x4, offset = 0x4, fixed_abs, tag = 'smem constant byte address 0x4 - core index']
  #allocation1 [shape = 'u32[72,128]{1,0:T(1,128)}', space=vmem, size = 0x9000, scoped, tag = 'internal scratch']
  %s0 = inlined_call_operand.vmem [shape: f32[16,32], index: 0, kind: input, shape index: {}]
  %s1 = inlined_call_operand.vmem [shape: bf16[32,64], index: 1, kind: input, shape index: {}]
  %s2 = inlined_call_operand.vmem [shape: f32[1,64], index: 2, kind: input, shape index: {}]
  %s3 = inlined_call_operand.hbm [shape: f32[16,64], index: 3, kind: output, shape index: {}]
  %s4 = sld [smem:[#allocation0]]
  $region45: #{transformer_forward.5} parent=0
    _
  %s6 = ssub.s32 1, %s4
  %s7 = scalar_select 0, %s6, %s4
  $region1: #{transformer_forward.5} parent=0
    #allocation2 [shape = 'u8[8192]{0}', space=vmem, size = 0x2000, scoped, tag = 'output window, operand 0']
    #allocation3 [shape = 's32[2]{0}', space=sflag, size = 0x8, scoped, tag = 'scoped memory for transformer_forward.5']
    %8 = vsyncpa [#allocation3], 0
    %s9 = scalar_lea.sflag [#allocation3], 1
    %10 = vsyncpa %s9, 0
    loop: start=0, step=1, limit=4
    $region2: #{transformer_forward.5} parent=1 // loop_pre_header
      _
    $region3: #{transformer_forward.5} parent=1 // loop_header
      %s12 = sphi 0, %s16
      %p13 = scmp.ge.s32.totalorder %s12, 4
      %s19 = sphi 0, %s31
      %s20 = sphi 0, %s27
      %s21 = sphi 0, %s19
      %s22 = sphi 0, %s20
      %s23 = sphi 0, %s21
      %s24 = sphi 0, %s22
      %s34 = sphi 0, %s36
      %s37 = sphi 0, %s34
      %s38 = sphi 0, %s37
      %s54 = sphi 0, %s38
      %s60 = sphi 0, %s62
      %s63 = sphi 0, %s60
      %s64 = sphi 0, %s63
      %s80 = sphi 0, %s64
      %s86 = sphi 0, %s88
      %s89 = sphi 0, %s86
      %s90 = sphi 0, %s89
      %s106 = sphi 0, %s90
      %s114 = sphi 0, %s116
      %s117 = sphi 0, %s114
      %s118 = sphi 0, %s117
      %s134 = sphi 0, %s118
    $region4: #{transformer_forward.5} parent=1 // loop_header_branch
      %15 = sbr.rel (%p13) target = $region8
    $region5: #{transformer_forward.5} parent=1 // loop_body
      %s17 = ssub.s32 %s12, 1
      %s18 = ssub.s32 %s12, 2
      %s25 = sadd.s32 1, %s20
      %p26 = scmp.ge.s32.totalorder %s25, 1
      %s27 = scalar_select %p26, 0, %s25
      %s28 = sadd.s32 1, %s19
      %s29 = scalar_select %p26, %s28, %s19
      %p30 = scmp.ge.s32.totalorder %s29, 2
      %s31 = scalar_select %p30, 0, %s29
      %s32 = ssub.s32 %s19, %s31
      %p33 = scmp.eq.s32.totalorder %s32, 0
      %s35 = sadd.s32 %s34, 1
      %s36 = scalar_select %p33, %s34, %s35
      %p39 = pneg %p33
      %p40 = scmp.eq.s32.totalorder %s12, 1
      %p41 = por %p39, %p40
      %p42 = scmp.ne.s32.totalorder %s34, %s37
      %p43 = scmp.eq.s32.totalorder %s12, 0
      %p44 = por %p42, %p43
      %p45 = scmp.ne.s32.totalorder %s34, %s37
      %p46 = scmp.eq.s32.totalorder %s17, 1
      %p47 = por %p45, %p46
      %p48 = scmp.ne.s32.totalorder %s37, %s38
      %p49 = scmp.eq.s32.totalorder %s17, 0
      %p50 = por %p48, %p49
      %p51 = scmp.ne.s32.totalorder %s37, %s38
      %p52 = scmp.eq.s32.totalorder %s18, 1
      %p53 = por %p51, %p52
      %p55 = scmp.ne.s32.totalorder %s38, %s54
      %p56 = scmp.eq.s32.totalorder %s18, 0
      %p57 = por %p55, %p56
      %s58 = ssub.s32 %s20, %s27
      %p59 = scmp.eq.s32.totalorder %s58, 0
      %s61 = sadd.s32 %s60, 1
      %s62 = scalar_select %p59, %s60, %s61
      %p65 = pneg %p59
      %p66 = scmp.eq.s32.totalorder %s12, 1
      %p67 = por %p65, %p66
      %p68 = scmp.ne.s32.totalorder %s60, %s63
      %p69 = scmp.eq.s32.totalorder %s12, 0
      %p70 = por %p68, %p69
      %p71 = scmp.ne.s32.totalorder %s60, %s63
      %p72 = scmp.eq.s32.totalorder %s17, 1
      %p73 = por %p71, %p72
      %p74 = scmp.ne.s32.totalorder %s63, %s64
      %p75 = scmp.eq.s32.totalorder %s17, 0
      %p76 = por %p74, %p75
      %p77 = scmp.ne.s32.totalorder %s63, %s64
      %p78 = scmp.eq.s32.totalorder %s18, 1
      %p79 = por %p77, %p78
      %p81 = scmp.ne.s32.totalorder %s64, %s80
      %p82 = scmp.eq.s32.totalorder %s18, 0
      %p83 = por %p81, %p82
      %s84 = ssub.s32 %s20, %s27
      %p85 = scmp.eq.s32.totalorder %s84, 0
      %s87 = sadd.s32 %s86, 1
      %s88 = scalar_select %p85, %s86, %s87
      %p91 = pneg %p85
      %p92 = scmp.eq.s32.totalorder %s12, 1
      %p93 = por %p91, %p92
      %p94 = scmp.ne.s32.totalorder %s86, %s89
      %p95 = scmp.eq.s32.totalorder %s12, 0
      %p96 = por %p94, %p95
      %p97 = scmp.ne.s32.totalorder %s86, %s89
      %p98 = scmp.eq.s32.totalorder %s17, 1
      %p99 = por %p97, %p98
      %p100 = scmp.ne.s32.totalorder %s89, %s90
      %p101 = scmp.eq.s32.totalorder %s17, 0
      %p102 = por %p100, %p101
      %p103 = scmp.ne.s32.totalorder %s89, %s90
      %p104 = scmp.eq.s32.totalorder %s18, 1
      %p105 = por %p103, %p104
      %p107 = scmp.ne.s32.totalorder %s90, %s106
      %p108 = scmp.eq.s32.totalorder %s18, 0
      %p109 = por %p107, %p108
      %s110 = ssub.s32 %s19, %s31
      %s111 = ssub.s32 %s20, %s27
      %s112 = sor.u32 %s110, %s111
      %p113 = scmp.eq.s32.totalorder %s112, 0
      %s115 = sadd.s32 %s114, 1
      %s116 = scalar_select %p113, %s114, %s115
      %p119 = pneg %p113
      %p120 = scmp.eq.s32.totalorder %s12, 1
      %p121 = por %p119, %p120
      %p122 = scmp.ne.s32.totalorder %s114, %s117
      %p123 = scmp.eq.s32.totalorder %s12, 0
      %p124 = por %p122, %p123
      %p125 = scmp.ne.s32.totalorder %s114, %s117
      %p126 = scmp.eq.s32.totalorder %s17, 1
      %p127 = por %p125, %p126
      %p128 = scmp.ne.s32.totalorder %s117, %s118
      %p129 = scmp.eq.s32.totalorder %s17, 0
      %p130 = por %p128, %p129
      %p131 = scmp.ne.s32.totalorder %s117, %s118
      %p132 = scmp.eq.s32.totalorder %s18, 1
      %p133 = por %p131, %p132
      %p135 = scmp.ne.s32.totalorder %s118, %s134
      %p136 = scmp.eq.s32.totalorder %s18, 0
      %p137 = por %p135, %p136
      %p138 = scmp.le.s32.totalorder 1, %s12
      %p139 = scmp.lt.s32.totalorder %s12, 3
      %p140 = pnand %p138, %p139
      %p141 = pneg %p140
      // Predicated region
      $region9: #{transformer_forward.5} parent=5 // pred_check
        _
      $region10: #{transformer_forward.5} parent=5 // pred_check_branch
        %143 = sbr.rel (%p140) target = $region12
      $region11: #{transformer_forward.5} parent=5 // pred_region
        %s144 = ssub.s32 %s12, 1
        // Predicated region
        $region13: #{transformer_forward.5} parent=11 // pred_check
          %p145 = pneg %p76
        $region14: #{transformer_forward.5} parent=11 // pred_check_branch
          %147 = sbr.rel (%p145) target = $region16
        $region15: #{transformer_forward.5} parent=11 // pred_region
          %p148 = scmp.lt.s32.totalorder %s22, 0
          %s149 = scalar_select %p148, %s22, 0
          %s150 = smul.addr %s149, 4
          %s151 = scalar_lea.vmem %s1, %s150
        $region16: #{transformer_forward.5} parent=11 // pred_fallthru
          _
        // Predicated region
        $region17: #{transformer_forward.5} parent=11 // pred_check
          %p152 = pneg %p102
        $region18: #{transformer_forward.5} parent=11 // pred_check_branch
          %154 = sbr.rel (%p152) target = $region20
        $region19: #{transformer_forward.5} parent=11 // pred_region
          %p155 = scmp.lt.s32.totalorder %s22, 0
          %s156 = scalar_select %p155, %s22, 0
          %s157 = scalar_lea.vmem %s2, %s156
        $region20: #{transformer_forward.5} parent=11 // pred_fallthru
          _
      $region12: #{transformer_forward.5} parent=5 // pred_fallthru
        _
      %p158 = scmp.lt.s32.totalorder %s12, 2
      // Predicated region
      $region21: #{transformer_forward.5} parent=5 // pred_check
        %p159 = pneg %p158
      $region22: #{transformer_forward.5} parent=5 // pred_check_branch
        %161 = sbr.rel (%p159) target = $region24
      $region23: #{transformer_forward.5} parent=5 // pred_region
        // Predicated region
        $region25: #{transformer_forward.5} parent=23 // pred_check
          %p162 = pneg %p44
        $region26: #{transformer_forward.5} parent=23 // pred_check_branch
          %164 = sbr.rel (%p162) target = $region28
        $region27: #{transformer_forward.5} parent=23 // pred_region
          %p165 = scmp.lt.s32.totalorder %s19, 1
          %s166 = scalar_select %p165, %s19, 1
          %s167 = smul.addr %s166, 8
          %s168 = scalar_lea.vmem %s0, %s167
        $region28: #{transformer_forward.5} parent=23 // pred_fallthru
          _
      $region24: #{transformer_forward.5} parent=5 // pred_fallthru
        _
      %p169 = scmp.le.s32.totalorder 1, %s12
      %p170 = scmp.lt.s32.totalorder %s12, 3
      %p171 = pnand %p169, %p170
      %p172 = pneg %p171
      // Predicated region
      $region29: #{transformer_forward.5} parent=5 // pred_check
        _
      $region30: #{transformer_forward.5} parent=5 // pred_check_branch
        %174 = sbr.rel (%p171) target = $region32
      $region31: #{transformer_forward.5} parent=5 // pred_region
        %s175 = ssub.s32 %s12, 1
        %p176 = scmp.lt.s32.totalorder %s21, 1
        %s177 = scalar_select %p176, %s21, 1
        %s178 = smul.addr %s177, 8
        %s179 = scalar_lea.vmem %s0, %s178
        %p180 = pneg %p50
        %p181 = pneg %p47
        %p182 = scmp.lt.s32.totalorder %s22, 0
        %s183 = scalar_select %p182, %s22, 0
        %s184 = smul.addr %s183, 4
        %s185 = scalar_lea.vmem %s1, %s184
        %p186 = pneg %p76
        %p187 = pneg %p73
        %p188 = scmp.lt.s32.totalorder %s22, 0
        %s189 = scalar_select %p188, %s22, 0
        %s190 = scalar_lea.vmem %s2, %s189
        %p191 = pneg %p102
        %p192 = pneg %p99
        %p193 = pneg %p130
        %p194 = pneg %p127
        %s195 = sand.u32 %s117, 1
        %s196 = scalar_lea.sflag [#allocation3], %s195
        %s197 = sand.u32 %s117, 1
        %s198 = smul.addr %s197, 8
        %s199 = scalar_lea.vmem [#allocation2], %s198
        %p200 = scmp.lt.s32.totalorder %s21, 1
        %s201 = scalar_select %p200, %s21, 1
        %s202 = smul.addr %s201, 8
        %s203 = scalar_lea.vmem %s0, %s202
        %p204 = scmp.lt.s32.totalorder %s22, 0
        %s205 = scalar_select %p204, %s22, 0
        %s206 = smul.addr %s205, 4
        %s207 = scalar_lea.vmem %s1, %s206
        %p208 = scmp.lt.s32.totalorder %s22, 0
        %s209 = scalar_select %p208, %s22, 0
        %s210 = scalar_lea.vmem %s2, %s209
        %v212 = vld [vmem:[%s203] sm:$0xff]
        %v213 = vpack.c.bf16 %v212, %v212
        %v214 = vld [vmem:[%s207] sm:$0xf]
        %v215 = vld [vmem:[%s207 + $0x4] sm:$0xf]
        %v216 = vld [vmem:[%s207 + $0x8] sm:$0xf]
        %v217 = vld [vmem:[%s207 + $0xc] sm:$0xf]
        %v218 = vld [vmem:[%s210] sm:$0x1]
        %v220 = vperm.slane %v218, 0
        %v226 = vunpack.c.l.b16 %v214
        %v227 = vunpack.c.l.b16 %v215
        %v228 = vunpack.c.l.b16 %v216
        %v229 = vunpack.c.l.b16 %v217
        %v230 = vpack.c.b16 %v227, %v226
        %v231 = vpack.c.b16 %v229, %v228
        %vm234 = vcmask 261120
        %v236 = vsel %vm234, %v213, 0
        %238 = vmatpush.bf16.msra.mxu0 0
        %239 = vmatpush.bf16.msra.mxu0 0
        %240 = vmatpush.bf16.msra.mxu0 0
        %241 = vmatpush.bf16.msra.mxu0 0
        %242 = vmatpush.bf16.msra.mxu0 0
        %243 = vmatpush.bf16.msra.mxu0 0
        %244 = vmatpush.bf16.msra.mxu0 %v231
        %245 = vmatpush.bf16.msra.mxu0 %v230
        %246 = vmatmul.bf16.gmra.mxu0 %v236
        %v247 = vpop.f32.mrf.mxu0
        %v248 = vadd.f32 %v220, %v247
        %v249 = vpop.f32.mrf.mxu0
        %250 = vdwg.mxu0
        %vm251 = vcmask 523264
        %252 = vst.msk [vmem:[%s199] sm:$0xff] %vm251, %v248
        %s253 = sand.u32 %s117, 1
        %s254 = scalar_lea.sflag [#allocation3], %s253
        %s255 = sand.u32 %s117, 1
        %s256 = smul.addr %s255, 8
        %s257 = scalar_lea.vmem [#allocation2], %s256
        // Predicated region
        $region33: #{transformer_forward.5} parent=31 // pred_check
          %p258 = pneg %p127
        $region34: #{transformer_forward.5} parent=31 // pred_check_branch
          %260 = sbr.rel (%p258) target = $region36
        $region35: #{transformer_forward.5} parent=31 // pred_region
          %262 = vsyncadd %s254, 0
          %s263 = sadd.s32 %s22, %s21
          %s264 = smul.addr %s263, 8
          %s265 = scalar_lea.hbm %s3, %s264
          %s267 = sshll.u32 %s257, 4
          %s268 = int_to_ptr.vmem [resolvable:$true] %s267
          %s269 = sshll.u32 %s265, 4
          %s270 = int_to_ptr.hbm [resolvable:$true] %s269
          %272 = dma.vmem_to_hbm [thread:$0]  %s268, 128, %s270, %s254
        $region36: #{transformer_forward.5} parent=31 // pred_fallthru
          _
      $region32: #{transformer_forward.5} parent=5 // pred_fallthru
        _
      %p273 = scmp.le.s32.totalorder 2, %s12
      // Predicated region
      $region37: #{transformer_forward.5} parent=5 // pred_check
        %p274 = pneg %p273
      $region38: #{transformer_forward.5} parent=5 // pred_check_branch
        %276 = sbr.rel (%p274) target = $region40
      $region39: #{transformer_forward.5} parent=5 // pred_region
        %s277 = ssub.s32 %s12, 2
        // Predicated region
        $region41: #{transformer_forward.5} parent=39 // pred_check
          %p278 = pneg %p133
        $region42: #{transformer_forward.5} parent=39 // pred_check_branch
          %280 = sbr.rel (%p278) target = $region44
        $region43: #{transformer_forward.5} parent=39 // pred_region
          %s281 = sand.u32 %s118, 1
          %s282 = scalar_lea.sflag [#allocation3], %s281
          %s283 = sand.u32 %s118, 1
          %s284 = smul.addr %s283, 8
          %s285 = scalar_lea.vmem [#allocation2], %s284
          %287 = dma.done %s282, 128
        $region44: #{transformer_forward.5} parent=39 // pred_fallthru
          _
      $region40: #{transformer_forward.5} parent=5 // pred_fallthru
        _
    $region6: #{transformer_forward.5} parent=1 // loop_footer
      %s16 = sadd.s32 1, %s12
    $region7: #{transformer_forward.5} parent=1 // loop_footer_branch
      %11 = sbr.rel target = $region3
    $region8: #{transformer_forward.5} parent=1 // loop_exit
      _
    %288 = vsyncpa [#allocation3], 1
    %s289 = scalar_lea.sflag [#allocation3], 1
    %290 = vsyncpa %s289, 1

// kernel: transformer_forward.3
$region0: #{transformer_forward.3}
  #allocation0 [shape = 'u32[]', space=smem, size = 0x4, offset = 0x4, fixed_abs, tag = 'smem constant byte address 0x4 - core index']
  #allocation1 [shape = 'u32[72,128]{1,0:T(1,128)}', space=vmem, size = 0x9000, scoped, tag = 'internal scratch']
  #allocation2 [shape = 'f32[8,32]{1,0:T(8,128)}', space=vmem, size = 0x1000, scoped, tag = 'scratch operand']
  %s0 = inlined_call_operand.vmem [shape: f32[2,8,32], index: 0, kind: input, shape index: {}]
  %s1 = inlined_call_operand.vmem [shape: f32[2,1,8], index: 1, kind: input, shape index: {}]
  %s2 = inlined_call_operand.vmem [shape: bf16[2,4,32,32], index: 2, kind: input, shape index: {}]
  %s3 = inlined_call_operand.vmem [shape: f32[2,4,1,32], index: 3, kind: input, shape index: {}]
  %s4 = inlined_call_operand.vmem [shape: f32[2,2,1,32], index: 4, kind: input, shape index: {}]
  %s5 = inlined_call_operand.vmem [shape: f32[2,2,1,32], index: 5, kind: input, shape index: {}]
  %s6 = inlined_call_operand.vmem [shape: bf16[2,32,64], index: 6, kind: input, shape index: {}]
  %s7 = inlined_call_operand.vmem [shape: f32[2,1,64], index: 7, kind: input, shape index: {}]
  %s8 = inlined_call_operand.vmem [shape: bf16[2,64,32], index: 8, kind: input, shape index: {}]
  %s9 = inlined_call_operand.vmem [shape: f32[2,1,32], index: 9, kind: input, shape index: {}]
  %s10 = inlined_call_operand.vmem [shape: f32[2,8,32], index: 10, kind: output, shape index: {}]
  %s11 = sld [smem:[#allocation0]]
  $region81: #{transformer_forward.3} parent=0
    _
  %s13 = ssub.s32 1, %s11
  %s14 = scalar_select 0, %s13, %s11
  loop: start=0, step=1, limit=6
  $region2: #{transformer_forward.3} parent=0 // loop_pre_header
    _
  $region3: #{transformer_forward.3} parent=0 // loop_header
    %s16 = sphi 0, %s20
    %p17 = scmp.ge.s32.totalorder %s16, 6
    %s23 = sphi 0, %s35
    %s24 = sphi 0, %s31
    %s25 = sphi 0, %s23
    %s26 = sphi 0, %s24
    %s27 = sphi 0, %s25
    %s28 = sphi 0, %s26
    %s38 = sphi 0, %s40
    %s41 = sphi 0, %s38
    %s42 = sphi 0, %s41
    %s58 = sphi 0, %s42
    %s64 = sphi 0, %s66
    %s67 = sphi 0, %s64
    %s68 = sphi 0, %s67
    %s84 = sphi 0, %s68
    %s90 = sphi 0, %s92
    %s93 = sphi 0, %s90
    %s94 = sphi 0, %s93
    %s110 = sphi 0, %s94
    %s116 = sphi 0, %s118
    %s119 = sphi 0, %s116
    %s120 = sphi 0, %s119
    %s136 = sphi 0, %s120
    %s142 = sphi 0, %s144
    %s145 = sphi 0, %s142
    %s146 = sphi 0, %s145
    %s162 = sphi 0, %s146
    %s168 = sphi 0, %s170
    %s171 = sphi 0, %s168
    %s172 = sphi 0, %s171
    %s188 = sphi 0, %s172
    %s194 = sphi 0, %s196
    %s197 = sphi 0, %s194
    %s198 = sphi 0, %s197
    %s214 = sphi 0, %s198
    %s220 = sphi 0, %s222
    %s223 = sphi 0, %s220
    %s224 = sphi 0, %s223
    %s240 = sphi 0, %s224
    %s246 = sphi 0, %s248
    %s249 = sphi 0, %s246
    %s250 = sphi 0, %s249
    %s266 = sphi 0, %s250
    %s272 = sphi 0, %s274
    %s275 = sphi 0, %s272
    %s276 = sphi 0, %s275
    %s292 = sphi 0, %s276
    %s298 = sphi 0, %s300
    %s301 = sphi 0, %s298
    %s302 = sphi 0, %s301
    %s318 = sphi 0, %s302
  $region4: #{transformer_forward.3} parent=0 // loop_header_branch
    %19 = sbr.rel (%p17) target = $region8
  $region5: #{transformer_forward.3} parent=0 // loop_body
    %s21 = ssub.s32 %s16, 1
    %s22 = ssub.s32 %s16, 2
    %s29 = sadd.s32 1, %s24
    %p30 = scmp.ge.s32.totalorder %s29, 2
    %s31 = scalar_select %p30, 0, %s29
    %s32 = sadd.s32 1, %s23
    %s33 = scalar_select %p30, %s32, %s23
    %p34 = scmp.ge.s32.totalorder %s33, 2
    %s35 = scalar_select %p34, 0, %s33
    %s36 = ssub.s32 %s23, %s35
    %p37 = scmp.eq.s32.totalorder %s36, 0
    %s39 = sadd.s32 %s38, 1
    %s40 = scalar_select %p37, %s38, %s39
    %p43 = pneg %p37
    %p44 = scmp.eq.s32.totalorder %s16, 3
    %p45 = por %p43, %p44
    %p46 = scmp.ne.s32.totalorder %s38, %s41
    %p47 = scmp.eq.s32.totalorder %s16, 0
    %p48 = por %p46, %p47
    %p49 = scmp.ne.s32.totalorder %s38, %s41
    %p50 = scmp.eq.s32.totalorder %s21, 3
    %p51 = por %p49, %p50
    %p52 = scmp.ne.s32.totalorder %s41, %s42
    %p53 = scmp.eq.s32.totalorder %s21, 0
    %p54 = por %p52, %p53
    %p55 = scmp.ne.s32.totalorder %s41, %s42
    %p56 = scmp.eq.s32.totalorder %s22, 3
    %p57 = por %p55, %p56
    %p59 = scmp.ne.s32.totalorder %s42, %s58
    %p60 = scmp.eq.s32.totalorder %s22, 0
    %p61 = por %p59, %p60
    %s62 = ssub.s32 %s23, %s35
    %p63 = scmp.eq.s32.totalorder %s62, 0
    %s65 = sadd.s32 %s64, 1
    %s66 = scalar_select %p63, %s64, %s65
    %p69 = pneg %p63
    %p70 = scmp.eq.s32.totalorder %s16, 3
    %p71 = por %p69, %p70
    %p72 = scmp.ne.s32.totalorder %s64, %s67
    %p73 = scmp.eq.s32.totalorder %s16, 0
    %p74 = por %p72, %p73
    %p75 = scmp.ne.s32.totalorder %s64, %s67
    %p76 = scmp.eq.s32.totalorder %s21, 3
    %p77 = por %p75, %p76
    %p78 = scmp.ne.s32.totalorder %s67, %s68
    %p79 = scmp.eq.s32.totalorder %s21, 0
    %p80 = por %p78, %p79
    %p81 = scmp.ne.s32.totalorder %s67, %s68
    %p82 = scmp.eq.s32.totalorder %s22, 3
    %p83 = por %p81, %p82
    %p85 = scmp.ne.s32.totalorder %s68, %s84
    %p86 = scmp.eq.s32.totalorder %s22, 0
    %p87 = por %p85, %p86
    %s88 = ssub.s32 %s24, %s31
    %p89 = scmp.eq.s32.totalorder %s88, 0
    %s91 = sadd.s32 %s90, 1
    %s92 = scalar_select %p89, %s90, %s91
    %p95 = pneg %p89
    %p96 = scmp.eq.s32.totalorder %s16, 3
    %p97 = por %p95, %p96
    %p98 = scmp.ne.s32.totalorder %s90, %s93
    %p99 = scmp.eq.s32.totalorder %s16, 0
    %p100 = por %p98, %p99
    %p101 = scmp.ne.s32.totalorder %s90, %s93
    %p102 = scmp.eq.s32.totalorder %s21, 3
    %p103 = por %p101, %p102
    %p104 = scmp.ne.s32.totalorder %s93, %s94
    %p105 = scmp.eq.s32.totalorder %s21, 0
    %p106 = por %p104, %p105
    %p107 = scmp.ne.s32.totalorder %s93, %s94
    %p108 = scmp.eq.s32.totalorder %s22, 3
    %p109 = por %p107, %p108
    %p111 = scmp.ne.s32.totalorder %s94, %s110
    %p112 = scmp.eq.s32.totalorder %s22, 0
    %p113 = por %p111, %p112
    %s114 = ssub.s32 %s24, %s31
    %p115 = scmp.eq.s32.totalorder %s114, 0
    %s117 = sadd.s32 %s116, 1
    %s118 = scalar_select %p115, %s116, %s117
    %p121 = pneg %p115
    %p122 = scmp.eq.s32.totalorder %s16, 3
    %p123 = por %p121, %p122
    %p124 = scmp.ne.s32.totalorder %s116, %s119
    %p125 = scmp.eq.s32.totalorder %s16, 0
    %p126 = por %p124, %p125
    %p127 = scmp.ne.s32.totalorder %s116, %s119
    %p128 = scmp.eq.s32.totalorder %s21, 3
    %p129 = por %p127, %p128
    %p130 = scmp.ne.s32.totalorder %s119, %s120
    %p131 = scmp.eq.s32.totalorder %s21, 0
    %p132 = por %p130, %p131
    %p133 = scmp.ne.s32.totalorder %s119, %s120
    %p134 = scmp.eq.s32.totalorder %s22, 3
    %p135 = por %p133, %p134
    %p137 = scmp.ne.s32.totalorder %s120, %s136
    %p138 = scmp.eq.s32.totalorder %s22, 0
    %p139 = por %p137, %p138
    %s140 = ssub.s32 %s24, %s31
    %p141 = scmp.eq.s32.totalorder %s140, 0
    %s143 = sadd.s32 %s142, 1
    %s144 = scalar_select %p141, %s142, %s143
    %p147 = pneg %p141
    %p148 = scmp.eq.s32.totalorder %s16, 3
    %p149 = por %p147, %p148
    %p150 = scmp.ne.s32.totalorder %s142, %s145
    %p151 = scmp.eq.s32.totalorder %s16, 0
    %p152 = por %p150, %p151
    %p153 = scmp.ne.s32.totalorder %s142, %s145
    %p154 = scmp.eq.s32.totalorder %s21, 3
    %p155 = por %p153, %p154
    %p156 = scmp.ne.s32.totalorder %s145, %s146
    %p157 = scmp.eq.s32.totalorder %s21, 0
    %p158 = por %p156, %p157
    %p159 = scmp.ne.s32.totalorder %s145, %s146
    %p160 = scmp.eq.s32.totalorder %s22, 3
    %p161 = por %p159, %p160
    %p163 = scmp.ne.s32.totalorder %s146, %s162
    %p164 = scmp.eq.s32.totalorder %s22, 0
    %p165 = por %p163, %p164
    %s166 = ssub.s32 %s24, %s31
    %p167 = scmp.eq.s32.totalorder %s166, 0
    %s169 = sadd.s32 %s168, 1
    %s170 = scalar_select %p167, %s168, %s169
    %p173 = pneg %p167
    %p174 = scmp.eq.s32.totalorder %s16, 3
    %p175 = por %p173, %p174
    %p176 = scmp.ne.s32.totalorder %s168, %s171
    %p177 = scmp.eq.s32.totalorder %s16, 0
    %p178 = por %p176, %p177
    %p179 = scmp.ne.s32.totalorder %s168, %s171
    %p180 = scmp.eq.s32.totalorder %s21, 3
    %p181 = por %p179, %p180
    %p182 = scmp.ne.s32.totalorder %s171, %s172
    %p183 = scmp.eq.s32.totalorder %s21, 0
    %p184 = por %p182, %p183
    %p185 = scmp.ne.s32.totalorder %s171, %s172
    %p186 = scmp.eq.s32.totalorder %s22, 3
    %p187 = por %p185, %p186
    %p189 = scmp.ne.s32.totalorder %s172, %s188
    %p190 = scmp.eq.s32.totalorder %s22, 0
    %p191 = por %p189, %p190
    %s192 = ssub.s32 %s24, %s31
    %p193 = scmp.eq.s32.totalorder %s192, 0
    %s195 = sadd.s32 %s194, 1
    %s196 = scalar_select %p193, %s194, %s195
    %p199 = pneg %p193
    %p200 = scmp.eq.s32.totalorder %s16, 3
    %p201 = por %p199, %p200
    %p202 = scmp.ne.s32.totalorder %s194, %s197
    %p203 = scmp.eq.s32.totalorder %s16, 0
    %p204 = por %p202, %p203
    %p205 = scmp.ne.s32.totalorder %s194, %s197
    %p206 = scmp.eq.s32.totalorder %s21, 3
    %p207 = por %p205, %p206
    %p208 = scmp.ne.s32.totalorder %s197, %s198
    %p209 = scmp.eq.s32.totalorder %s21, 0
    %p210 = por %p208, %p209
    %p211 = scmp.ne.s32.totalorder %s197, %s198
    %p212 = scmp.eq.s32.totalorder %s22, 3
    %p213 = por %p211, %p212
    %p215 = scmp.ne.s32.totalorder %s198, %s214
    %p216 = scmp.eq.s32.totalorder %s22, 0
    %p217 = por %p215, %p216
    %s218 = ssub.s32 %s24, %s31
    %p219 = scmp.eq.s32.totalorder %s218, 0
    %s221 = sadd.s32 %s220, 1
    %s222 = scalar_select %p219, %s220, %s221
    %p225 = pneg %p219
    %p226 = scmp.eq.s32.totalorder %s16, 3
    %p227 = por %p225, %p226
    %p228 = scmp.ne.s32.totalorder %s220, %s223
    %p229 = scmp.eq.s32.totalorder %s16, 0
    %p230 = por %p228, %p229
    %p231 = scmp.ne.s32.totalorder %s220, %s223
    %p232 = scmp.eq.s32.totalorder %s21, 3
    %p233 = por %p231, %p232
    %p234 = scmp.ne.s32.totalorder %s223, %s224
    %p235 = scmp.eq.s32.totalorder %s21, 0
    %p236 = por %p234, %p235
    %p237 = scmp.ne.s32.totalorder %s223, %s224
    %p238 = scmp.eq.s32.totalorder %s22, 3
    %p239 = por %p237, %p238
    %p241 = scmp.ne.s32.totalorder %s224, %s240
    %p242 = scmp.eq.s32.totalorder %s22, 0
    %p243 = por %p241, %p242
    %s244 = ssub.s32 %s24, %s31
    %p245 = scmp.eq.s32.totalorder %s244, 0
    %s247 = sadd.s32 %s246, 1
    %s248 = scalar_select %p245, %s246, %s247
    %p251 = pneg %p245
    %p252 = scmp.eq.s32.totalorder %s16, 3
    %p253 = por %p251, %p252
    %p254 = scmp.ne.s32.totalorder %s246, %s249
    %p255 = scmp.eq.s32.totalorder %s16, 0
    %p256 = por %p254, %p255
    %p257 = scmp.ne.s32.totalorder %s246, %s249
    %p258 = scmp.eq.s32.totalorder %s21, 3
    %p259 = por %p257, %p258
    %p260 = scmp.ne.s32.totalorder %s249, %s250
    %p261 = scmp.eq.s32.totalorder %s21, 0
    %p262 = por %p260, %p261
    %p263 = scmp.ne.s32.totalorder %s249, %s250
    %p264 = scmp.eq.s32.totalorder %s22, 3
    %p265 = por %p263, %p264
    %p267 = scmp.ne.s32.totalorder %s250, %s266
    %p268 = scmp.eq.s32.totalorder %s22, 0
    %p269 = por %p267, %p268
    %s270 = ssub.s32 %s24, %s31
    %p271 = scmp.eq.s32.totalorder %s270, 0
    %s273 = sadd.s32 %s272, 1
    %s274 = scalar_select %p271, %s272, %s273
    %p277 = pneg %p271
    %p278 = scmp.eq.s32.totalorder %s16, 3
    %p279 = por %p277, %p278
    %p280 = scmp.ne.s32.totalorder %s272, %s275
    %p281 = scmp.eq.s32.totalorder %s16, 0
    %p282 = por %p280, %p281
    %p283 = scmp.ne.s32.totalorder %s272, %s275
    %p284 = scmp.eq.s32.totalorder %s21, 3
    %p285 = por %p283, %p284
    %p286 = scmp.ne.s32.totalorder %s275, %s276
    %p287 = scmp.eq.s32.totalorder %s21, 0
    %p288 = por %p286, %p287
    %p289 = scmp.ne.s32.totalorder %s275, %s276
    %p290 = scmp.eq.s32.totalorder %s22, 3
    %p291 = por %p289, %p290
    %p293 = scmp.ne.s32.totalorder %s276, %s292
    %p294 = scmp.eq.s32.totalorder %s22, 0
    %p295 = por %p293, %p294
    %s296 = ssub.s32 %s23, %s35
    %p297 = scmp.eq.s32.totalorder %s296, 0
    %s299 = sadd.s32 %s298, 1
    %s300 = scalar_select %p297, %s298, %s299
    %p303 = pneg %p297
    %p304 = scmp.eq.s32.totalorder %s16, 3
    %p305 = por %p303, %p304
    %p306 = scmp.ne.s32.totalorder %s298, %s301
    %p307 = scmp.eq.s32.totalorder %s16, 0
    %p308 = por %p306, %p307
    %p309 = scmp.ne.s32.totalorder %s298, %s301
    %p310 = scmp.eq.s32.totalorder %s21, 3
    %p311 = por %p309, %p310
    %p312 = scmp.ne.s32.totalorder %s301, %s302
    %p313 = scmp.eq.s32.totalorder %s21, 0
    %p314 = por %p312, %p313
    %p315 = scmp.ne.s32.totalorder %s301, %s302
    %p316 = scmp.eq.s32.totalorder %s22, 3
    %p317 = por %p315, %p316
    %p319 = scmp.ne.s32.totalorder %s302, %s318
    %p320 = scmp.eq.s32.totalorder %s22, 0
    %p321 = por %p319, %p320
    %p322 = scmp.le.s32.totalorder 1, %s16
    %p323 = scmp.lt.s32.totalorder %s16, 5
    %p324 = pnand %p322, %p323
    %p325 = pneg %p324
    // Predicated region
    $region9: #{transformer_forward.3} parent=5 // pred_check
      _
    $region10: #{transformer_forward.3} parent=5 // pred_check_branch
      %327 = sbr.rel (%p324) target = $region12
    $region11: #{transformer_forward.3} parent=5 // pred_region
      %s328 = ssub.s32 %s16, 1
    $region12: #{transformer_forward.3} parent=5 // pred_fallthru
      _
    %p329 = scmp.lt.s32.totalorder %s16, 4
    // Predicated region
    $region13: #{transformer_forward.3} parent=5 // pred_check
      %p330 = pneg %p329
    $region14: #{transformer_forward.3} parent=5 // pred_check_branch
      %332 = sbr.rel (%p330) target = $region16
    $region15: #{transformer_forward.3} parent=5 // pred_region
      // Predicated region
      $region17: #{transformer_forward.3} parent=15 // pred_check
        %p333 = pneg %p48
      $region18: #{transformer_forward.3} parent=15 // pred_check_branch
        %335 = sbr.rel (%p333) target = $region20
      $region19: #{transformer_forward.3} parent=15 // pred_region
        %p336 = scmp.lt.s32.totalorder %s23, 1
        %s337 = scalar_select %p336, %s23, 1
        %s338 = smul.addr %s337, 8
        %s339 = scalar_lea.vmem %s0, %s338
      $region20: #{transformer_forward.3} parent=15 // pred_fallthru
        _
      // Predicated region
      $region21: #{transformer_forward.3} parent=15 // pred_check
        %p340 = pneg %p74
      $region22: #{transformer_forward.3} parent=15 // pred_check_branch
        %342 = sbr.rel (%p340) target = $region24
      $region23: #{transformer_forward.3} parent=15 // pred_region
        %p343 = scmp.lt.s32.totalorder %s23, 1
        %s344 = scalar_select %p343, %s23, 1
        %s345 = scalar_lea.vmem %s1, %s344
      $region24: #{transformer_forward.3} parent=15 // pred_fallthru
        _
      // Predicated region
      $region25: #{transformer_forward.3} parent=15 // pred_check
        %p346 = pneg %p100
      $region26: #{transformer_forward.3} parent=15 // pred_check_branch
        %348 = sbr.rel (%p346) target = $region28
      $region27: #{transformer_forward.3} parent=15 // pred_region
        %p349 = scmp.lt.s32.totalorder %s24, 1
        %s350 = scalar_select %p349, %s24, 1
        %s351 = smul.addr %s350, 16
        %s352 = smul.addr %s351, 4
        %s353 = scalar_lea.vmem %s2, %s352
      $region28: #{transformer_forward.3} parent=15 // pred_fallthru
        _
      // Predicated region
      $region29: #{transformer_forward.3} parent=15 // pred_check
        %p354 = pneg %p126
      $region30: #{transformer_forward.3} parent=15 // pred_check_branch
        %356 = sbr.rel (%p354) target = $region32
      $region31: #{transformer_forward.3} parent=15 // pred_region
        %p357 = scmp.lt.s32.totalorder %s24, 1
        %s358 = scalar_select %p357, %s24, 1
        %s359 = smul.addr %s358, 4
        %s360 = scalar_lea.vmem %s3, %s359
      $region32: #{transformer_forward.3} parent=15 // pred_fallthru
        _
      // Predicated region
      $region33: #{transformer_forward.3} parent=15 // pred_check
        %p361 = pneg %p152
      $region34: #{transformer_forward.3} parent=15 // pred_check_branch
        %363 = sbr.rel (%p361) target = $region36
      $region35: #{transformer_forward.3} parent=15 // pred_region
        %p364 = scmp.lt.s32.totalorder %s24, 1
        %s365 = scalar_select %p364, %s24, 1
        %s366 = smul.addr %s365, 2
        %s367 = scalar_lea.vmem %s4, %s366
      $region36: #{transformer_forward.3} parent=15 // pred_fallthru
        _
      // Predicated region
      $region37: #{transformer_forward.3} parent=15 // pred_check
        %p368 = pneg %p178
      $region38: #{transformer_forward.3} parent=15 // pred_check_branch
        %370 = sbr.rel (%p368) target = $region40
      $region39: #{transformer_forward.3} parent=15 // pred_region
        %p371 = scmp.lt.s32.totalorder %s24, 1
        %s372 = scalar_select %p371, %s24, 1
        %s373 = smul.addr %s372, 2
        %s374 = scalar_lea.vmem %s5, %s373
      $region40: #{transformer_forward.3} parent=15 // pred_fallthru
        _
      // Predicated region
      $region41: #{transformer_forward.3} parent=15 // pred_check
        %p375 = pneg %p204
      $region42: #{transformer_forward.3} parent=15 // pred_check_branch
        %377 = sbr.rel (%p375) target = $region44
      $region43: #{transformer_forward.3} parent=15 // pred_region
        %p378 = scmp.lt.s32.totalorder %s24, 1
        %s379 = scalar_select %p378, %s24, 1
        %s380 = smul.addr %s379, 4
        %s381 = smul.addr %s380, 4
        %s382 = scalar_lea.vmem %s6, %s381
      $region44: #{transformer_forward.3} parent=15 // pred_fallthru
        _
      // Predicated region
      $region45: #{transformer_forward.3} parent=15 // pred_check
        %p383 = pneg %p230
      $region46: #{transformer_forward.3} parent=15 // pred_check_branch
        %385 = sbr.rel (%p383) target = $region48
      $region47: #{transformer_forward.3} parent=15 // pred_region
        %p386 = scmp.lt.s32.totalorder %s24, 1
        %s387 = scalar_select %p386, %s24, 1
        %s388 = scalar_lea.vmem %s7, %s387
      $region48: #{transformer_forward.3} parent=15 // pred_fallthru
        _
      // Predicated region
      $region49: #{transformer_forward.3} parent=15 // pred_check
        %p389 = pneg %p256
      $region50: #{transformer_forward.3} parent=15 // pred_check_branch
        %391 = sbr.rel (%p389) target = $region52
      $region51: #{transformer_forward.3} parent=15 // pred_region
        %p392 = scmp.lt.s32.totalorder %s24, 1
        %s393 = scalar_select %p392, %s24, 1
        %s394 = smul.addr %s393, 8
        %s395 = smul.addr %s394, 4
        %s396 = scalar_lea.vmem %s8, %s395
      $region52: #{transformer_forward.3} parent=15 // pred_fallthru
        _
      // Predicated region
      $region53: #{transformer_forward.3} parent=15 // pred_check
        %p397 = pneg %p282
      $region54: #{transformer_forward.3} parent=15 // pred_check_branch
        %399 = sbr.rel (%p397) target = $region56
      $region55: #{transformer_forward.3} parent=15 // pred_region
        %p400 = scmp.lt.s32.totalorder %s24, 1
        %s401 = scalar_select %p400, %s24, 1
        %s402 = scalar_lea.vmem %s9, %s401
      $region56: #{transformer_forward.3} parent=15 // pred_fallthru
        _
    $region16: #{transformer_forward.3} parent=5 // pred_fallthru
      _
    %p403 = scmp.le.s32.totalorder 1, %s16
    %p404 = scmp.lt.s32.totalorder %s16, 5
    %p405 = pnand %p403, %p404
    %p406 = pneg %p405
    // Predicated region
    $region57: #{transformer_forward.3} parent=5 // pred_check
      _
    $region58: #{transformer_forward.3} parent=5 // pred_check_branch
      %408 = sbr.rel (%p405) target = $region60
    $region59: #{transformer_forward.3} parent=5 // pred_region
      %s409 = ssub.s32 %s16, 1
      %p410 = scmp.lt.s32.totalorder %s25, 1
      %s411 = scalar_select %p410, %s25, 1
      %s412 = smul.addr %s411, 8
      %s413 = scalar_lea.vmem %s0, %s412
      %p414 = pneg %p54
      %p415 = pneg %p51
      %p416 = scmp.lt.s32.totalorder %s25, 1
      %s417 = scalar_select %p416, %s25, 1
      %s418 = scalar_lea.vmem %s1, %s417
      %p419 = pneg %p80
      %p420 = pneg %p77
      %p421 = scmp.lt.s32.totalorder %s26, 1
      %s422 = scalar_select %p421, %s26, 1
      %s423 = smul.addr %s422, 16
      %s424 = smul.addr %s423, 4
      %s425 = scalar_lea.vmem %s2, %s424
      %p426 = pneg %p106
      %p427 = pneg %p103
      %p428 = scmp.lt.s32.totalorder %s26, 1
      %s429 = scalar_select %p428, %s26, 1
      %s430 = smul.addr %s429, 4
      %s431 = scalar_lea.vmem %s3, %s430
      %p432 = pneg %p132
      %p433 = pneg %p129
      %p434 = scmp.lt.s32.totalorder %s26, 1
      %s435 = scalar_select %p434, %s26, 1
      %s436 = smul.addr %s435, 2
      %s437 = scalar_lea.vmem %s4, %s436
      %p438 = pneg %p158
      %p439 = pneg %p155
      %p440 = scmp.lt.s32.totalorder %s26, 1
      %s441 = scalar_select %p440, %s26, 1
      %s442 = smul.addr %s441, 2
      %s443 = scalar_lea.vmem %s5, %s442
      %p444 = pneg %p184
      %p445 = pneg %p181
      %p446 = scmp.lt.s32.totalorder %s26, 1
      %s447 = scalar_select %p446, %s26, 1
      %s448 = smul.addr %s447, 4
      %s449 = smul.addr %s448, 4
      %s450 = scalar_lea.vmem %s6, %s449
      %p451 = pneg %p210
      %p452 = pneg %p207
      %p453 = scmp.lt.s32.totalorder %s26, 1
      %s454 = scalar_select %p453, %s26, 1
      %s455 = scalar_lea.vmem %s7, %s454
      %p456 = pneg %p236
      %p457 = pneg %p233
      %p458 = scmp.lt.s32.totalorder %s26, 1
      %s459 = scalar_select %p458, %s26, 1
      %s460 = smul.addr %s459, 8
      %s461 = smul.addr %s460, 4
      %s462 = scalar_lea.vmem %s8, %s461
      %p463 = pneg %p262
      %p464 = pneg %p259
      %p465 = scmp.lt.s32.totalorder %s26, 1
      %s466 = scalar_select %p465, %s26, 1
      %s467 = scalar_lea.vmem %s9, %s466
      %p468 = pneg %p288
      %p469 = pneg %p285
      %p470 = pneg %p314
      %p471 = pneg %p311
      %p472 = scmp.lt.s32.totalorder %s25, 1
      %s473 = scalar_select %p472, %s25, 1
      %s474 = smul.addr %s473, 8
      %s475 = scalar_lea.vmem %s10, %s474
      %p476 = scmp.lt.s32.totalorder %s25, 1
      %s477 = scalar_select %p476, %s25, 1
      %s478 = smul.addr %s477, 8
      %s479 = scalar_lea.vmem %s0, %s478
      %p480 = scmp.lt.s32.totalorder %s25, 1
      %s481 = scalar_select %p480, %s25, 1
      %s482 = scalar_lea.vmem %s1, %s481
      %p483 = scmp.lt.s32.totalorder %s26, 1
      %s484 = scalar_select %p483, %s26, 1
      %s485 = smul.addr %s484, 16
      %s486 = smul.addr %s485, 4
      %s487 = scalar_lea.vmem %s2, %s486
      %p488 = scmp.lt.s32.totalorder %s26, 1
      %s489 = scalar_select %p488, %s26, 1
      %s490 = smul.addr %s489, 4
      %s491 = scalar_lea.vmem %s3, %s490
      %p492 = scmp.lt.s32.totalorder %s26, 1
      %s493 = scalar_select %p492, %s26, 1
      %s494 = smul.addr %s493, 2
      %s495 = scalar_lea.vmem %s4, %s494
      %p496 = scmp.lt.s32.totalorder %s26, 1
      %s497 = scalar_select %p496, %s26, 1
      %s498 = smul.addr %s497, 2
      %s499 = scalar_lea.vmem %s5, %s498
      %p500 = scmp.lt.s32.totalorder %s26, 1
      %s501 = scalar_select %p500, %s26, 1
      %s502 = smul.addr %s501, 4
      %s503 = smul.addr %s502, 4
      %s504 = scalar_lea.vmem %s6, %s503
      %p505 = scmp.lt.s32.totalorder %s26, 1
      %s506 = scalar_select %p505, %s26, 1
      %s507 = scalar_lea.vmem %s7, %s506
      %p508 = scmp.lt.s32.totalorder %s26, 1
      %s509 = scalar_select %p508, %s26, 1
      %s510 = smul.addr %s509, 8
      %s511 = smul.addr %s510, 4
      %s512 = scalar_lea.vmem %s8, %s511
      %p513 = scmp.lt.s32.totalorder %s26, 1
      %s514 = scalar_select %p513, %s26, 1
      %s515 = scalar_lea.vmem %s9, %s514
      %p516 = scmp.lt.s32.totalorder %s25, 1
      %s517 = scalar_select %p516, %s25, 1
      %s518 = smul.addr %s517, 8
      %s519 = scalar_lea.vmem %s10, %s518
      %p521 = scmp.eq.s32.totalorder %s26, 0
      // Predicated region
      $region61: #{transformer_forward.3} parent=59 // pred_check
        %p522 = pneg %p521
      $region62: #{transformer_forward.3} parent=59 // pred_check_branch
        %524 = sbr.rel (%p522) target = $region64
      $region63: #{transformer_forward.3} parent=59 // pred_region
        %v525 = vld [vmem:[%s479] sm:$0xff]
        %vm526 = vcmask 261120
        %527 = vst.msk [vmem:[#allocation2] sm:$0xff] %vm526, %v525
      $region64: #{transformer_forward.3} parent=59 // pred_fallthru
        _
      %v528 = vld [vmem:[#allocation2] sm:$0xff]
      %v529 = vld [vmem:[%s482] sm:$0x1]
      %v530 = vld [vmem:[%s495] sm:$0x1]
      %v531 = vld [vmem:[%s495 + $0x1] sm:$0x1]
      %v532 = vld [vmem:[%s499] sm:$0x1]
      %v533 = vld [vmem:[%s499 + $0x1] sm:$0x1]
      %v534 = vld [vmem:[%s487] sm:$0xf]
      %v535 = vld [vmem:[%s487 + $0x4] sm:$0xf]
      %v536 = vld [vmem:[%s487 + $0x8] sm:$0xf]
      %v537 = vld [vmem:[%s487 + $0xc] sm:$0xf]
      %v538 = vld [vmem:[%s487 + $0x10] sm:$0xf]
      %v539 = vld [vmem:[%s487 + $0x14] sm:$0xf]
      %v540 = vld [vmem:[%s487 + $0x18] sm:$0xf]
      %v541 = vld [vmem:[%s487 + $0x1c] sm:$0xf]
      %v542 = vld [vmem:[%s487 + $0x20] sm:$0xf]
      %v543 = vld [vmem:[%s487 + $0x24] sm:$0xf]
      %v544 = vld [vmem:[%s487 + $0x28] sm:$0xf]
      %v545 = vld [vmem:[%s487 + $0x2c] sm:$0xf]
      %v546 = vld [vmem:[%s487 + $0x30] sm:$0xf]
      %v547 = vld [vmem:[%s487 + $0x34] sm:$0xf]
      %v548 = vld [vmem:[%s487 + $0x38] sm:$0xf]
      %v549 = vld [vmem:[%s487 + $0x3c] sm:$0xf]
      %v550 = vld [vmem:[%s491] sm:$0x1]
      %v551 = vld [vmem:[%s491 + $0x1] sm:$0x1]
      %v552 = vld [vmem:[%s491 + $0x2] sm:$0x1]
      %v553 = vld [vmem:[%s491 + $0x3] sm:$0x1]
      %v554 = vpack.c.bf16 %v528, %v528
      %v556 = vperm.slane %v550, 0
      %v562 = vunpack.c.l.b16 %v534
      %v563 = vunpack.c.l.b16 %v535
      %v564 = vunpack.c.l.b16 %v536
      %v565 = vunpack.c.l.b16 %v537
      %v566 = vpack.c.b16 %v563, %v562
      %v567 = vpack.c.b16 %v565, %v564
      %vm570 = vcmask 261120
      %v572 = vsel %vm570, %v554, 0
      %574 = vmatpush.bf16.msra.mxu0 0
      %575 = vmatpush.bf16.msra.mxu0 0
      %576 = vmatpush.bf16.msra.mxu0 0
      %577 = vmatpush.bf16.msra.mxu0 0
      %578 = vmatpush.bf16.msra.mxu0 0
      %579 = vmatpush.bf16.msra.mxu0 0
      %580 = vmatpush.bf16.msra.mxu0 %v567
      %581 = vmatpush.bf16.msra.mxu0 %v566
      %582 = vmatmul.bf16.gmra.mxu0 %v572
      %v583 = vpop.f32.mrf.mxu0
      %v584 = vadd.f32 %v556, %v583
      %v585 = vpop.f32.mrf.mxu0
      %586 = vdwg.mxu0
      %v588 = vperm.slane %v551, 0
      %v594 = vunpack.c.l.b16 %v538
      %v595 = vunpack.c.l.b16 %v539
      %v596 = vunpack.c.l.b16 %v540
      %v597 = vunpack.c.l.b16 %v541
      %v598 = vpack.c.b16 %v595, %v594
      %v599 = vpack.c.b16 %v597, %v596
      %602 = vmatpush.bf16.msra.mxu0 0
      %603 = vmatpush.bf16.msra.mxu0 0
      %604 = vmatpush.bf16.msra.mxu0 0
      %605 = vmatpush.bf16.msra.mxu0 0
      %606 = vmatpush.bf16.msra.mxu0 0
      %607 = vmatpush.bf16.msra.mxu0 0
      %608 = vmatpush.bf16.msra.mxu0 %v599
      %609 = vmatpush.bf16.msra.mxu0 %v598
      %610 = vmatmul.bf16.gmra.mxu0 %v572
      %v611 = vpop.f32.mrf.mxu0
      %v612 = vadd.f32 %v588, %v611
      %v613 = vpop.f32.mrf.mxu0
      %614 = vdwg.mxu0
      %v616 = vperm.slane %v552, 0
      %v622 = vunpack.c.l.b16 %v542
      %v623 = vunpack.c.l.b16 %v543
      %v624 = vunpack.c.l.b16 %v544
      %v625 = vunpack.c.l.b16 %v545
      %v626 = vpack.c.b16 %v623, %v622
      %v627 = vpack.c.b16 %v625, %v624
      %630 = vmatpush.bf16.msra.mxu0 0
      %631 = vmatpush.bf16.msra.mxu0 0
      %632 = vmatpush.bf16.msra.mxu0 0
      %633 = vmatpush.bf16.msra.mxu0 0
      %634 = vmatpush.bf16.msra.mxu0 0
      %635 = vmatpush.bf16.msra.mxu0 0
      %636 = vmatpush.bf16.msra.mxu0 %v627
      %637 = vmatpush.bf16.msra.mxu0 %v626
      %638 = vmatmul.bf16.gmra.mxu0 %v572
      %v639 = vpop.f32.mrf.mxu0
      %v640 = vadd.f32 %v616, %v639
      %v641 = vpop.f32.mrf.mxu0
      %642 = vdwg.mxu0
      %644 = vrot.lane.b32.xlu0 %v584, 120
      %v645 = vpop.permute.xlu0 %644
      %647 = vrot.lane.b32.xlu0 %v584, 112
      %v648 = vpop.permute.xlu0 %647
      %650 = vrot.lane.b32.xlu0 %v584, 104
      %v651 = vpop.permute.xlu0 %650
      %654 = vrot.lane.b32.xlu0 %v612, 120
      %v655 = vpop.permute.xlu0 %654
      %657 = vrot.lane.b32.xlu0 %v612, 112
      %v658 = vpop.permute.xlu0 %657
      %660 = vrot.lane.b32.xlu0 %v612, 104
      %v661 = vpop.permute.xlu0 %660
      %664 = vrot.lane.b32.xlu0 %v640, 120
      %v665 = vpop.permute.xlu0 %664
      %667 = vrot.lane.b32.xlu0 %v640, 112
      %v668 = vpop.permute.xlu0 %667
      %670 = vrot.lane.b32.xlu0 %v640, 104
      %v671 = vpop.permute.xlu0 %670
      %v673 = vpack.c.bf16 %v584, %v584
      %v674 = vpack.c.bf16 %v645, %v645
      %v675 = vpack.c.bf16 %v648, %v648
      %v676 = vpack.c.bf16 %v651, %v651
      %v677 = vpack.c.bf16 %v612, %v612
      %v678 = vpack.c.bf16 %v655, %v655
      %v679 = vpack.c.bf16 %v658, %v658
      %v680 = vpack.c.bf16 %v661, %v661
      %vm681 = vcmask 64512
      %v683 = vsel %vm681, %v673, 0
      %v686 = vsel %vm681, %v677, 0
      %688 = vmatpush.bf16.xpose.msra.mxu0 0
      %689 = vmatpush.bf16.xpose.msra.mxu0 0
      %690 = vmatpush.bf16.xpose.msra.mxu0 0
      %691 = vmatpush.bf16.xpose.msra.mxu0 0
      %692 = vmatpush.bf16.xpose.msra.mxu0 0
      %693 = vmatpush.bf16.xpose.msra.mxu0 0
      %694 = vmatpush.bf16.xpose.msra.mxu0 0
      %695 = vmatpush.bf16.xpose.msra.mxu0 %v686
      %696 = vmatmul.bf16.gmra.mxu0 %v683
      %v697 = vpop.f32.mrf.mxu0
      %v698 = vadd.f32 0.0, %v697
      %v699 = vpop.f32.mrf.mxu0
      %700 = vdwg.mxu0
      %v702 = vsel %vm681, %v674, 0
      %v705 = vsel %vm681, %v678, 0
      %707 = vmatpush.bf16.xpose.msra.mxu0 0
      %708 = vmatpush.bf16.xpose.msra.mxu0 0
      %709 = vmatpush.bf16.xpose.msra.mxu0 0
      %710 = vmatpush.bf16.xpose.msra.mxu0 0
      %711 = vmatpush.bf16.xpose.msra.mxu0 0
      %712 = vmatpush.bf16.xpose.msra.mxu0 0
      %713 = vmatpush.bf16.xpose.msra.mxu0 0
      %714 = vmatpush.bf16.xpose.msra.mxu0 %v705
      %715 = vmatmul.bf16.gmra.mxu0 %v702
      %v716 = vpop.f32.mrf.mxu0
      %v717 = vadd.f32 0.0, %v716
      %v718 = vpop.f32.mrf.mxu0
      %719 = vdwg.mxu0
      %v721 = vsel %vm681, %v675, 0
      %v724 = vsel %vm681, %v679, 0
      %726 = vmatpush.bf16.xpose.msra.mxu0 0
      %727 = vmatpush.bf16.xpose.msra.mxu0 0
      %728 = vmatpush.bf16.xpose.msra.mxu0 0
      %729 = vmatpush.bf16.xpose.msra.mxu0 0
      %730 = vmatpush.bf16.xpose.msra.mxu0 0
      %731 = vmatpush.bf16.xpose.msra.mxu0 0
      %732 = vmatpush.bf16.xpose.msra.mxu0 0
      %733 = vmatpush.bf16.xpose.msra.mxu0 %v724
      %734 = vmatmul.bf16.gmra.mxu0 %v721
      %v735 = vpop.f32.mrf.mxu0
      %v736 = vadd.f32 0.0, %v735
      %v737 = vpop.f32.mrf.mxu0
      %738 = vdwg.mxu0
      %v740 = vsel %vm681, %v676, 0
      %v743 = vsel %vm681, %v680, 0
      %745 = vmatpush.bf16.xpose.msra.mxu0 0
      %746 = vmatpush.bf16.xpose.msra.mxu0 0
      %747 = vmatpush.bf16.xpose.msra.mxu0 0
      %748 = vmatpush.bf16.xpose.msra.mxu0 0
      %749 = vmatpush.bf16.xpose.msra.mxu0 0
      %750 = vmatpush.bf16.xpose.msra.mxu0 0
      %751 = vmatpush.bf16.xpose.msra.mxu0 0
      %752 = vmatpush.bf16.xpose.msra.mxu0 %v743
      %753 = vmatmul.bf16.gmra.mxu0 %v740
      %v754 = vpop.f32.mrf.mxu0
      %v755 = vadd.f32 0.0, %v754
      %v756 = vpop.f32.mrf.mxu0
      %757 = vdwg.mxu0
      %v758 = vmul.f32 %v698, 0.35355338
      %v759 = vmul.f32 %v717, 0.35355338
      %v760 = vmul.f32 %v736, 0.35355338
      %v761 = vmul.f32 %v755, 0.35355338
      %v763 = vperm.slane %v529, 0
      %v765 = vadd.f32 %v758, %v763
      %v766 = vadd.f32 %v759, %v763
      %v767 = vadd.f32 %v760, %v763
      %v768 = vadd.f32 %v761, %v763
      %v769 = vsel %vm681, %v765, -inf
      %770 = vmax.xlane.f32.xlu0 %v769
      %v771 = vpop.xlane.xlu0 %770
      %v772 = vsel %vm681, %v766, -inf
      %773 = vmax.xlane.f32.xlu0 %v772
      %v774 = vpop.xlane.xlu0 %773
      %v775 = vsel %vm681, %v767, -inf
      %776 = vmax.xlane.f32.xlu0 %v775
      %v777 = vpop.xlane.xlu0 %776
      %v778 = vsel %vm681, %v768, -inf
      %779 = vmax.xlane.f32.xlu0 %v778
      %v780 = vpop.xlane.xlu0 %779
      %v781 = vsub.f32 %v765, %v771
      %v782 = vsub.f32 %v766, %v774
      %v783 = vsub.f32 %v767, %v777
      %v784 = vsub.f32 %v768, %v780
      %v785 = vmul.f32 %v781, 1.442695
      %v786 = vpow.pop %v785
      %v787 = vmul.f32 %v782, 1.442695
      %v788 = vpow.pop %v787
      %v789 = vmul.f32 %v783, 1.442695
      %v790 = vpow.pop %v789
      %v791 = vmul.f32 %v784, 1.442695
      %v792 = vpow.pop %v791
      %v793 = vsel %vm681, %v786, 0.0
      %794 = vadd.xlane.f32.xlu0 %v793
      %v795 = vpop.xlane.xlu0 %794
      %v796 = vsel %vm681, %v788, 0.0
      %797 = vadd.xlane.f32.xlu0 %v796
      %v798 = vpop.xlane.xlu0 %797
      %v799 = vsel %vm681, %v790, 0.0
      %800 = vadd.xlane.f32.xlu0 %v799
      %v801 = vpop.xlane.xlu0 %800
      %v802 = vsel %vm681, %v792, 0.0
      %803 = vadd.xlane.f32.xlu0 %v802
      %v804 = vpop.xlane.xlu0 %803
      %v805 = vrcp.pop %v795
      %v806 = vrcp.pop %v798
      %v807 = vrcp.pop %v801
      %v808 = vrcp.pop %v804
      %v809 = vmul.f32 %v786, %v805
      %v810 = vmul.f32 %v788, %v806
      %v811 = vmul.f32 %v790, %v807
      %v812 = vmul.f32 %v792, %v808
      %v813 = vpack.c.bf16 %v809, %v809
      %v814 = vpack.c.bf16 %v810, %v810
      %v815 = vpack.c.bf16 %v811, %v811
      %v816 = vpack.c.bf16 %v812, %v812
      %v817 = vpack.c.bf16 %v640, %v640
      %v818 = vpack.c.bf16 %v665, %v665
      %v819 = vpack.c.bf16 %v668, %v668
      %v820 = vpack.c.bf16 %v671, %v671
      %v822 = vsel %vm681, %v813, 0
      %vm824 = vcmask 1043456
      %v826 = vsel %vm824, %v817, 0
      %828 = vmatpush.bf16.msra.mxu0 0
      %829 = vmatpush.bf16.msra.mxu0 0
      %830 = vmatpush.bf16.msra.mxu0 0
      %831 = vmatpush.bf16.msra.mxu0 0
      %832 = vmatpush.bf16.msra.mxu0 0
      %833 = vmatpush.bf16.msra.mxu0 0
      %834 = vmatpush.bf16.msra.mxu0 0
      %835 = vmatpush.bf16.msra.mxu0 %v826
      %836 = vmatmul.bf16.gmra.mxu0 %v822
      %v837 = vpop.f32.mrf.mxu0
      %v838 = vadd.f32 0.0, %v837
      %v839 = vpop.f32.mrf.mxu0
      %840 = vdwg.mxu0
      %v842 = vsel %vm681, %v814, 0
      %v845 = vsel %vm824, %v818, 0
      %847 = vmatpush.bf16.msra.mxu0 0
      %848 = vmatpush.bf16.msra.mxu0 0
      %849 = vmatpush.bf16.msra.mxu0 0
      %850 = vmatpush.bf16.msra.mxu0 0
      %851 = vmatpush.bf16.msra.mxu0 0
      %852 = vmatpush.bf16.msra.mxu0 0
      %853 = vmatpush.bf16.msra.mxu0 0
      %854 = vmatpush.bf16.msra.mxu0 %v845
      %855 = vmatmul.bf16.gmra.mxu0 %v842
      %v856 = vpop.f32.mrf.mxu0
      %v857 = vadd.f32 0.0, %v856
      %v858 = vpop.f32.mrf.mxu0
      %859 = vdwg.mxu0
      %v861 = vsel %vm681, %v815, 0
      %v864 = vsel %vm824, %v819, 0
      %866 = vmatpush.bf16.msra.mxu0 0
      %867 = vmatpush.bf16.msra.mxu0 0
      %868 = vmatpush.bf16.msra.mxu0 0
      %869 = vmatpush.bf16.msra.mxu0 0
      %870 = vmatpush.bf16.msra.mxu0 0
      %871 = vmatpush.bf16.msra.mxu0 0
      %872 = vmatpush.bf16.msra.mxu0 0
      %873 = vmatpush.bf16.msra.mxu0 %v864
      %874 = vmatmul.bf16.gmra.mxu0 %v861
      %v875 = vpop.f32.mrf.mxu0
      %v876 = vadd.f32 0.0, %v875
      %v877 = vpop.f32.mrf.mxu0
      %878 = vdwg.mxu0
      %v880 = vsel %vm681, %v816, 0
      %v883 = vsel %vm824, %v820, 0
      %885 = vmatpush.bf16.msra.mxu0 0
      %886 = vmatpush.bf16.msra.mxu0 0
      %887 = vmatpush.bf16.msra.mxu0 0
      %888 = vmatpush.bf16.msra.mxu0 0
      %889 = vmatpush.bf16.msra.mxu0 0
      %890 = vmatpush.bf16.msra.mxu0 0
      %891 = vmatpush.bf16.msra.mxu0 0
      %892 = vmatpush.bf16.msra.mxu0 %v883
      %893 = vmatmul.bf16.gmra.mxu0 %v880
      %v894 = vpop.f32.mrf.mxu0
      %v895 = vadd.f32 0.0, %v894
      %v896 = vpop.f32.mrf.mxu0
      %897 = vdwg.mxu0
      %899 = vrot.lane.b32.xlu0 %v857, 8
      %v900 = vpop.permute.xlu0 %899
      %903 = vrot.lane.b32.xlu0 %v876, 16
      %v904 = vpop.permute.xlu0 %903
      %907 = vrot.lane.b32.xlu0 %v895, 24
      %v908 = vpop.permute.xlu0 %907
      %v910 = vsel %vm681, %v838, %v900
      %vm911 = vcmask 130048
      %v912 = vsel %vm911, %v910, %v904
      %vm913 = vcmask 195584
      %v914 = vsel %vm913, %v912, %v908
      %v915 = vpack.c.bf16 %v914, %v914
      %v917 = vperm.slane %v553, 0
      %v923 = vunpack.c.l.b16 %v546
      %v924 = vunpack.c.l.b16 %v547
      %v925 = vunpack.c.l.b16 %v548
      %v926 = vunpack.c.l.b16 %v549
      %v927 = vpack.c.b16 %v924, %v923
      %v928 = vpack.c.b16 %v926, %v925
      %v932 = vsel %vm570, %v915, 0
      %934 = vmatpush.bf16.msra.mxu0 0
      %935 = vmatpush.bf16.msra.mxu0 0
      %936 = vmatpush.bf16.msra.mxu0 0
      %937 = vmatpush.bf16.msra.mxu0 0
      %938 = vmatpush.bf16.msra.mxu0 0
      %939 = vmatpush.bf16.msra.mxu0 0
      %940 = vmatpush.bf16.msra.mxu0 %v928
      %941 = vmatpush.bf16.msra.mxu0 %v927
      %942 = vmatmul.bf16.gmra.mxu0 %v932
      %v943 = vpop.f32.mrf.mxu0
      %v944 = vadd.f32 %v917, %v943
      %v945 = vpop.f32.mrf.mxu0
      %946 = vdwg.mxu0
      %v947 = vadd.f32 %v528, %v944
      %v948 = vsel %vm570, %v947, 0.0
      %949 = vadd.xlane.f32.xlu0 %v948
      %v950 = vpop.xlane.xlu0 %949
      %v951 = vmul.f32 %v947, %v947
      %v952 = vsel %vm570, %v951, 0.0
      %953 = vadd.xlane.f32.xlu0 %v952
      %v954 = vpop.xlane.xlu0 %953
      %v955 = vmul.f32 %v950, 0.03125
      %v956 = vmul.f32 %v954, 0.03125
      %v957 = vmul.f32 %v955, %v955
      %v958 = vsub.f32 %v956, %v957
      %v959 = vsub.f32 %v947, %v955
      %v960 = vadd.f32 %v958, 1e-05
      %v961 = vrsqrt.pop %v960
      %v962 = vmul.f32 %v961, %v960
      %v963 = vmul.f32 %v962, %v961
      %v964 = vmul.f32 0.5, %v963
      %v965 = vsub.f32 1.5, %v964
      %v966 = vmul.f32 %v961, %v965
      %vm967 = vweird.f32 %v960
      %vm968 = vweird.f32 %v961
      %vm969 = vmor %vm967, %vm968
      %v970 = vsel %vm969, %v961, %v966
      %v971 = vmul.f32 %v959, %v970
      %v973 = vperm.slane %v530, 0
      %v975 = vmul.f32 %v971, %v973
      %v977 = vperm.slane %v532, 0
      %v979 = vadd.f32 %v975, %v977
      %v980 = vld [vmem:[%s504] sm:$0xf]
      %v981 = vld [vmem:[%s504 + $0x4] sm:$0xf]
      %v982 = vld [vmem:[%s504 + $0x8] sm:$0xf]
      %v983 = vld [vmem:[%s504 + $0xc] sm:$0xf]
      %v984 = vld [vmem:[%s507] sm:$0x1]
      %v985 = vld [vmem:[%s512] sm:$0xf]
      %v986 = vld [vmem:[%s512 + $0x4] sm:$0xf]
      %v987 = vld [vmem:[%s512 + $0x8] sm:$0xf]
      %v988 = vld [vmem:[%s512 + $0xc] sm:$0xf]
      %v989 = vld [vmem:[%s512 + $0x10] sm:$0xf]
      %v990 = vld [vmem:[%s512 + $0x14] sm:$0xf]
      %v991 = vld [vmem:[%s512 + $0x18] sm:$0xf]
      %v992 = vld [vmem:[%s512 + $0x1c] sm:$0xf]
      %v993 = vld [vmem:[%s515] sm:$0x1]
      %v994 = vpack.c.bf16 %v979, %v979
      %v996 = vperm.slane %v984, 0
      %v1002 = vunpack.c.l.b16 %v980
      %v1003 = vunpack.c.l.b16 %v981
      %v1004 = vunpack.c.l.b16 %v982
      %v1005 = vunpack.c.l.b16 %v983
      %v1006 = vpack.c.b16 %v1003, %v1002
      %v1007 = vpack.c.b16 %v1005, %v1004
      %v1011 = vsel %vm570, %v994, 0
      %1013 = vmatpush.bf16.msra.mxu0 0
      %1014 = vmatpush.bf16.msra.mxu0 0
      %1015 = vmatpush.bf16.msra.mxu0 0
      %1016 = vmatpush.bf16.msra.mxu0 0
      %1017 = vmatpush.bf16.msra.mxu0 0
      %1018 = vmatpush.bf16.msra.mxu0 0
      %1019 = vmatpush.bf16.msra.mxu0 %v1007
      %1020 = vmatpush.bf16.msra.mxu0 %v1006
      %1021 = vmatmul.bf16.gmra.mxu0 %v1011
      %v1022 = vpop.f32.mrf.mxu0
      %v1023 = vadd.f32 %v996, %v1022
      %v1024 = vpop.f32.mrf.mxu0
      %1025 = vdwg.mxu0
      %v1026 = vmax.f32 %v1023, 0.0
      %v1027 = vpack.c.bf16 %v1026, %v1026
      %v1029 = vperm.slane %v993, 0
      %v1039 = vunpack.c.l.b16 %v985
      %v1040 = vunpack.c.l.b16 %v986
      %v1041 = vunpack.c.l.b16 %v987
      %v1042 = vunpack.c.l.b16 %v988
      %v1043 = vunpack.c.l.b16 %v989
      %v1044 = vunpack.c.l.b16 %v990
      %v1045 = vunpack.c.l.b16 %v991
      %v1046 = vunpack.c.l.b16 %v992
      %v1047 = vpack.c.b16 %v1040, %v1039
      %v1048 = vpack.c.b16 %v1042, %v1041
      %v1049 = vpack.c.b16 %v1044, %v1043
      %v1050 = vpack.c.b16 %v1046, %v1045
      %vm1055 = vcmask 523264
      %v1057 = vsel %vm1055, %v1027, 0
      %1059 = vmatpush.bf16.msra.mxu0 0
      %1060 = vmatpush.bf16.msra.mxu0 0
      %1061 = vmatpush.bf16.msra.mxu0 0
      %1062 = vmatpush.bf16.msra.mxu0 0
      %1063 = vmatpush.bf16.msra.mxu0 %v1050
      %1064 = vmatpush.bf16.msra.mxu0 %v1049
      %1065 = vmatpush.bf16.msra.mxu0 %v1048
      %1066 = vmatpush.bf16.msra.mxu0 %v1047
      %1067 = vmatmul.bf16.gmra.mxu0 %v1057
      %v1068 = vpop.f32.mrf.mxu0
      %v1069 = vadd.f32 %v1029, %v1068
      %v1070 = vpop.f32.mrf.mxu0
      %1071 = vdwg.mxu0
      %v1072 = vadd.f32 %v979, %v1069
      %v1073 = vsel %vm570, %v1072, 0.0
      %1074 = vadd.xlane.f32.xlu0 %v1073
      %v1075 = vpop.xlane.xlu0 %1074
      %v1076 = vmul.f32 %v1072, %v1072
      %v1077 = vsel %vm570, %v1076, 0.0
      %1078 = vadd.xlane.f32.xlu0 %v1077
      %v1079 = vpop.xlane.xlu0 %1078
      %v1080 = vmul.f32 %v1075, 0.03125
      %v1081 = vmul.f32 %v1079, 0.03125
      %v1082 = vmul.f32 %v1080, %v1080
      %v1083 = vsub.f32 %v1081, %v1082
      %v1084 = vsub.f32 %v1072, %v1080
      %v1085 = vadd.f32 %v1083, 1e-05
      %v1086 = vrsqrt.pop %v1085
      %v1087 = vmul.f32 %v1086, %v1085
      %v1088 = vmul.f32 %v1087, %v1086
      %v1089 = vmul.f32 0.5, %v1088
      %v1090 = vsub.f32 1.5, %v1089
      %v1091 = vmul.f32 %v1086, %v1090
      %vm1092 = vweird.f32 %v1085
      %vm1093 = vweird.f32 %v1086
      %vm1094 = vmor %vm1092, %vm1093
      %v1095 = vsel %vm1094, %v1086, %v1091
      %v1096 = vmul.f32 %v1084, %v1095
      %v1098 = vperm.slane %v531, 0
      %v1100 = vmul.f32 %v1096, %v1098
      %v1102 = vperm.slane %v533, 0
      %v1104 = vadd.f32 %v1100, %v1102
      %1105 = vst.msk [vmem:[#allocation2] sm:$0xff] %vm570, %v1104
      %p1106 = scmp.eq.s32.totalorder %s26, 1
      // Predicated region
      $region65: #{transformer_forward.3} parent=59 // pred_check
        %p1107 = pneg %p1106
      $region66: #{transformer_forward.3} parent=59 // pred_check_branch
        %1109 = sbr.rel (%p1107) target = $region68
      $region67: #{transformer_forward.3} parent=59 // pred_region
        %1110 = vst.msk [vmem:[%s519] sm:$0xff] %vm570, %v1104
      $region68: #{transformer_forward.3} parent=59 // pred_fallthru
        _
      %p1111 = scmp.lt.s32.totalorder %s25, 1
      %s1112 = scalar_select %p1111, %s25, 1
      %s1113 = smul.addr %s1112, 8
      %s1114 = scalar_lea.vmem %s10, %s1113
      // Predicated region
      $region69: #{transformer_forward.3} parent=59 // pred_check
        %p1115 = pneg %p311
      $region70: #{transformer_forward.3} parent=59 // pred_check_branch
        %1117 = sbr.rel (%p1115) target = $region72
      $region71: #{transformer_forward.3} parent=59 // pred_region
        _
      $region72: #{transformer_forward.3} parent=59 // pred_fallthru
        _
    $region60: #{transformer_forward.3} parent=5 // pred_fallthru
      _
    %p1118 = scmp.le.s32.totalorder 2, %s16
    // Predicated region
    $region73: #{transformer_forward.3} parent=5 // pred_check
      %p1119 = pneg %p1118
    $region74: #{transformer_forward.3} parent=5 // pred_check_branch
      %1121 = sbr.rel (%p1119) target = $region76
    $region75: #{transformer_forward.3} parent=5 // pred_region
      %s1122 = ssub.s32 %s16, 2
      // Predicated region
      $region77: #{transformer_forward.3} parent=75 // pred_check
        %p1123 = pneg %p317
      $region78: #{transformer_forward.3} parent=75 // pred_check_branch
        %1125 = sbr.rel (%p1123) target = $region80
      $region79: #{transformer_forward.3} parent=75 // pred_region
        %p1126 = scmp.lt.s32.totalorder %s27, 1
        %s1127 = scalar_select %p1126, %s27, 1
        %s1128 = smul.addr %s1127, 8
        %s1129 = scalar_lea.vmem %s10, %s1128
      $region80: #{transformer_forward.3} parent=75 // pred_fallthru
        _
    $region76: #{transformer_forward.3} parent=5 // pred_fallthru
      _
  $region6: #{transformer_forward.3} parent=0 // loop_footer
    %s20 = sadd.s32 1, %s16
  $region7: #{transformer_forward.3} parent=0 // loop_footer_branch
    %15 = sbr.rel target = $region3
  $region8: #{transformer_forward.3} parent=0 // loop_exit
    _

// kernel: transformer_forward.4
$region0: #{transformer_forward.4}
  #allocation0 [shape = 'u32[]', space=smem, size = 0x4, offset = 0x4, fixed_abs, tag = 'smem constant byte address 0x4 - core index']
  #allocation1 [shape = 'u32[72,128]{1,0:T(1,128)}', space=vmem, size = 0x9000, scoped, tag = 'internal scratch']
  #allocation2 [shape = 'f32[8,32]{1,0:T(8,128)}', space=vmem, size = 0x1000, scoped, tag = 'scratch operand']
  %s0 = inlined_call_operand.vmem [shape: f32[2,8,32], index: 0, kind: input, shape index: {}]
  %s1 = inlined_call_operand.vmem [shape: f32[2,8,32], index: 1, kind: input, shape index: {}]
  %s2 = inlined_call_operand.vmem [shape: f32[2,1,8], index: 2, kind: input, shape index: {}]
  %s3 = inlined_call_operand.vmem [shape: f32[2,1,8], index: 3, kind: input, shape index: {}]
  %s4 = inlined_call_operand.vmem [shape: bf16[2,4,32,32], index: 4, kind: input, shape index: {}]
  %s5 = inlined_call_operand.vmem [shape: f32[2,4,1,32], index: 5, kind: input, shape index: {}]
  %s6 = inlined_call_operand.vmem [shape: bf16[2,4,32,32], index: 6, kind: input, shape index: {}]
  %s7 = inlined_call_operand.vmem [shape: f32[2,4,1,32], index: 7, kind: input, shape index: {}]
  %s8 = inlined_call_operand.vmem [shape: f32[2,3,1,32], index: 8, kind: input, shape index: {}]
  %s9 = inlined_call_operand.vmem [shape: f32[2,3,1,32], index: 9, kind: input, shape index: {}]
  %s10 = inlined_call_operand.vmem [shape: bf16[2,32,64], index: 10, kind: input, shape index: {}]
  %s11 = inlined_call_operand.vmem [shape: f32[2,1,64], index: 11, kind: input, shape index: {}]
  %s12 = inlined_call_operand.vmem [shape: bf16[2,64,32], index: 12, kind: input, shape index: {}]
  %s13 = inlined_call_operand.vmem [shape: f32[2,1,32], index: 13, kind: input, shape index: {}]
  %s14 = inlined_call_operand.vmem [shape: f32[2,8,32], index: 14, kind: output, shape index: {}]
  %s15 = sld [smem:[#allocation0]]
  $region97: #{transformer_forward.4} parent=0
    _
  %s17 = ssub.s32 1, %s15
  %s18 = scalar_select 0, %s17, %s15
  loop: start=0, step=1, limit=6
  $region2: #{transformer_forward.4} parent=0 // loop_pre_header
    _
  $region3: #{transformer_forward.4} parent=0 // loop_header
    %s20 = sphi 0, %s24
    %p21 = scmp.ge.s32.totalorder %s20, 6
    %s27 = sphi 0, %s39
    %s28 = sphi 0, %s35
    %s29 = sphi 0, %s27
    %s30 = sphi 0, %s28
    %s31 = sphi 0, %s29
    %s32 = sphi 0, %s30
    %s42 = sphi 0, %s44
    %s45 = sphi 0, %s42
    %s46 = sphi 0, %s45
    %s62 = sphi 0, %s46
    %s68 = sphi 0, %s70
    %s71 = sphi 0, %s68
    %s72 = sphi 0, %s71
    %s88 = sphi 0, %s72
    %s94 = sphi 0, %s96
    %s97 = sphi 0, %s94
    %s98 = sphi 0, %s97
    %s114 = sphi 0, %s98
    %s120 = sphi 0, %s122
    %s123 = sphi 0, %s120
    %s124 = sphi 0, %s123
    %s140 = sphi 0, %s124
    %s146 = sphi 0, %s148
    %s149 = sphi 0, %s146
    %s150 = sphi 0, %s149
    %s166 = sphi 0, %s150
    %s172 = sphi 0, %s174
    %s175 = sphi 0, %s172
    %s176 = sphi 0, %s175
    %s192 = sphi 0, %s176
    %s198 = sphi 0, %s200
    %s201 = sphi 0, %s198
    %s202 = sphi 0, %s201
    %s218 = sphi 0, %s202
    %s224 = sphi 0, %s226
    %s227 = sphi 0, %s224
    %s228 = sphi 0, %s227
    %s244 = sphi 0, %s228
    %s250 = sphi 0, %s252
    %s253 = sphi 0, %s250
    %s254 = sphi 0, %s253
    %s270 = sphi 0, %s254
    %s276 = sphi 0, %s278
    %s279 = sphi 0, %s276
    %s280 = sphi 0, %s279
    %s296 = sphi 0, %s280
    %s302 = sphi 0, %s304
    %s305 = sphi 0, %s302
    %s306 = sphi 0, %s305
    %s322 = sphi 0, %s306
    %s328 = sphi 0, %s330
    %s331 = sphi 0, %s328
    %s332 = sphi 0, %s331
    %s348 = sphi 0, %s332
    %s354 = sphi 0, %s356
    %s357 = sphi 0, %s354
    %s358 = sphi 0, %s357
    %s374 = sphi 0, %s358
    %s380 = sphi 0, %s382
    %s383 = sphi 0, %s380
    %s384 = sphi 0, %s383
    %s400 = sphi 0, %s384
    %s406 = sphi 0, %s408
    %s409 = sphi 0, %s406
    %s410 = sphi 0, %s409
    %s426 = sphi 0, %s410
  $region4: #{transformer_forward.4} parent=0 // loop_header_branch
    %23 = sbr.rel (%p21) target = $region8
  $region5: #{transformer_forward.4} parent=0 // loop_body
    %s25 = ssub.s32 %s20, 1
    %s26 = ssub.s32 %s20, 2
    %s33 = sadd.s32 1, %s28
    %p34 = scmp.ge.s32.totalorder %s33, 2
    %s35 = scalar_select %p34, 0, %s33
    %s36 = sadd.s32 1, %s27
    %s37 = scalar_select %p34, %s36, %s27
    %p38 = scmp.ge.s32.totalorder %s37, 2
    %s39 = scalar_select %p38, 0, %s37
    %s40 = ssub.s32 %s27, %s39
    %p41 = scmp.eq.s32.totalorder %s40, 0
    %s43 = sadd.s32 %s42, 1
    %s44 = scalar_select %p41, %s42, %s43
    %p47 = pneg %p41
    %p48 = scmp.eq.s32.totalorder %s20, 3
    %p49 = por %p47, %p48
    %p50 = scmp.ne.s32.totalorder %s42, %s45
    %p51 = scmp.eq.s32.totalorder %s20, 0
    %p52 = por %p50, %p51
    %p53 = scmp.ne.s32.totalorder %s42, %s45
    %p54 = scmp.eq.s32.totalorder %s25, 3
    %p55 = por %p53, %p54
    %p56 = scmp.ne.s32.totalorder %s45, %s46
    %p57 = scmp.eq.s32.totalorder %s25, 0
    %p58 = por %p56, %p57
    %p59 = scmp.ne.s32.totalorder %s45, %s46
    %p60 = scmp.eq.s32.totalorder %s26, 3
    %p61 = por %p59, %p60
    %p63 = scmp.ne.s32.totalorder %s46, %s62
    %p64 = scmp.eq.s32.totalorder %s26, 0
    %p65 = por %p63, %p64
    %s66 = ssub.s32 %s27, %s39
    %p67 = scmp.eq.s32.totalorder %s66, 0
    %s69 = sadd.s32 %s68, 1
    %s70 = scalar_select %p67, %s68, %s69
    %p73 = pneg %p67
    %p74 = scmp.eq.s32.totalorder %s20, 3
    %p75 = por %p73, %p74
    %p76 = scmp.ne.s32.totalorder %s68, %s71
    %p77 = scmp.eq.s32.totalorder %s20, 0
    %p78 = por %p76, %p77
    %p79 = scmp.ne.s32.totalorder %s68, %s71
    %p80 = scmp.eq.s32.totalorder %s25, 3
    %p81 = por %p79, %p80
    %p82 = scmp.ne.s32.totalorder %s71, %s72
    %p83 = scmp.eq.s32.totalorder %s25, 0
    %p84 = por %p82, %p83
    %p85 = scmp.ne.s32.totalorder %s71, %s72
    %p86 = scmp.eq.s32.totalorder %s26, 3
    %p87 = por %p85, %p86
    %p89 = scmp.ne.s32.totalorder %s72, %s88
    %p90 = scmp.eq.s32.totalorder %s26, 0
    %p91 = por %p89, %p90
    %s92 = ssub.s32 %s27, %s39
    %p93 = scmp.eq.s32.totalorder %s92, 0
    %s95 = sadd.s32 %s94, 1
    %s96 = scalar_select %p93, %s94, %s95
    %p99 = pneg %p93
    %p100 = scmp.eq.s32.totalorder %s20, 3
    %p101 = por %p99, %p100
    %p102 = scmp.ne.s32.totalorder %s94, %s97
    %p103 = scmp.eq.s32.totalorder %s20, 0
    %p104 = por %p102, %p103
    %p105 = scmp.ne.s32.totalorder %s94, %s97
    %p106 = scmp.eq.s32.totalorder %s25, 3
    %p107 = por %p105, %p106
    %p108 = scmp.ne.s32.totalorder %s97, %s98
    %p109 = scmp.eq.s32.totalorder %s25, 0
    %p110 = por %p108, %p109
    %p111 = scmp.ne.s32.totalorder %s97, %s98
    %p112 = scmp.eq.s32.totalorder %s26, 3
    %p113 = por %p111, %p112
    %p115 = scmp.ne.s32.totalorder %s98, %s114
    %p116 = scmp.eq.s32.totalorder %s26, 0
    %p117 = por %p115, %p116
    %s118 = ssub.s32 %s27, %s39
    %p119 = scmp.eq.s32.totalorder %s118, 0
    %s121 = sadd.s32 %s120, 1
    %s122 = scalar_select %p119, %s120, %s121
    %p125 = pneg %p119
    %p126 = scmp.eq.s32.totalorder %s20, 3
    %p127 = por %p125, %p126
    %p128 = scmp.ne.s32.totalorder %s120, %s123
    %p129 = scmp.eq.s32.totalorder %s20, 0
    %p130 = por %p128, %p129
    %p131 = scmp.ne.s32.totalorder %s120, %s123
    %p132 = scmp.eq.s32.totalorder %s25, 3
    %p133 = por %p131, %p132
    %p134 = scmp.ne.s32.totalorder %s123, %s124
    %p135 = scmp.eq.s32.totalorder %s25, 0
    %p136 = por %p134, %p135
    %p137 = scmp.ne.s32.totalorder %s123, %s124
    %p138 = scmp.eq.s32.totalorder %s26, 3
    %p139 = por %p137, %p138
    %p141 = scmp.ne.s32.totalorder %s124, %s140
    %p142 = scmp.eq.s32.totalorder %s26, 0
    %p143 = por %p141, %p142
    %s144 = ssub.s32 %s28, %s35
    %p145 = scmp.eq.s32.totalorder %s144, 0
    %s147 = sadd.s32 %s146, 1
    %s148 = scalar_select %p145, %s146, %s147
    %p151 = pneg %p145
    %p152 = scmp.eq.s32.totalorder %s20, 3
    %p153 = por %p151, %p152
    %p154 = scmp.ne.s32.totalorder %s146, %s149
    %p155 = scmp.eq.s32.totalorder %s20, 0
    %p156 = por %p154, %p155
    %p157 = scmp.ne.s32.totalorder %s146, %s149
    %p158 = scmp.eq.s32.totalorder %s25, 3
    %p159 = por %p157, %p158
    %p160 = scmp.ne.s32.totalorder %s149, %s150
    %p161 = scmp.eq.s32.totalorder %s25, 0
    %p162 = por %p160, %p161
    %p163 = scmp.ne.s32.totalorder %s149, %s150
    %p164 = scmp.eq.s32.totalorder %s26, 3
    %p165 = por %p163, %p164
    %p167 = scmp.ne.s32.totalorder %s150, %s166
    %p168 = scmp.eq.s32.totalorder %s26, 0
    %p169 = por %p167, %p168
    %s170 = ssub.s32 %s28, %s35
    %p171 = scmp.eq.s32.totalorder %s170, 0
    %s173 = sadd.s32 %s172, 1
    %s174 = scalar_select %p171, %s172, %s173
    %p177 = pneg %p171
    %p178 = scmp.eq.s32.totalorder %s20, 3
    %p179 = por %p177, %p178
    %p180 = scmp.ne.s32.totalorder %s172, %s175
    %p181 = scmp.eq.s32.totalorder %s20, 0
    %p182 = por %p180, %p181
    %p183 = scmp.ne.s32.totalorder %s172, %s175
    %p184 = scmp.eq.s32.totalorder %s25, 3
    %p185 = por %p183, %p184
    %p186 = scmp.ne.s32.totalorder %s175, %s176
    %p187 = scmp.eq.s32.totalorder %s25, 0
    %p188 = por %p186, %p187
    %p189 = scmp.ne.s32.totalorder %s175, %s176
    %p190 = scmp.eq.s32.totalorder %s26, 3
    %p191 = por %p189, %p190
    %p193 = scmp.ne.s32.totalorder %s176, %s192
    %p194 = scmp.eq.s32.totalorder %s26, 0
    %p195 = por %p193, %p194
    %s196 = ssub.s32 %s28, %s35
    %p197 = scmp.eq.s32.totalorder %s196, 0
    %s199 = sadd.s32 %s198, 1
    %s200 = scalar_select %p197, %s198, %s199
    %p203 = pneg %p197
    %p204 = scmp.eq.s32.totalorder %s20, 3
    %p205 = por %p203, %p204
    %p206 = scmp.ne.s32.totalorder %s198, %s201
    %p207 = scmp.eq.s32.totalorder %s20, 0
    %p208 = por %p206, %p207
    %p209 = scmp.ne.s32.totalorder %s198, %s201
    %p210 = scmp.eq.s32.totalorder %s25, 3
    %p211 = por %p209, %p210
    %p212 = scmp.ne.s32.totalorder %s201, %s202
    %p213 = scmp.eq.s32.totalorder %s25, 0
    %p214 = por %p212, %p213
    %p215 = scmp.ne.s32.totalorder %s201, %s202
    %p216 = scmp.eq.s32.totalorder %s26, 3
    %p217 = por %p215, %p216
    %p219 = scmp.ne.s32.totalorder %s202, %s218
    %p220 = scmp.eq.s32.totalorder %s26, 0
    %p221 = por %p219, %p220
    %s222 = ssub.s32 %s28, %s35
    %p223 = scmp.eq.s32.totalorder %s222, 0
    %s225 = sadd.s32 %s224, 1
    %s226 = scalar_select %p223, %s224, %s225
    %p229 = pneg %p223
    %p230 = scmp.eq.s32.totalorder %s20, 3
    %p231 = por %p229, %p230
    %p232 = scmp.ne.s32.totalorder %s224, %s227
    %p233 = scmp.eq.s32.totalorder %s20, 0
    %p234 = por %p232, %p233
    %p235 = scmp.ne.s32.totalorder %s224, %s227
    %p236 = scmp.eq.s32.totalorder %s25, 3
    %p237 = por %p235, %p236
    %p238 = scmp.ne.s32.totalorder %s227, %s228
    %p239 = scmp.eq.s32.totalorder %s25, 0
    %p240 = por %p238, %p239
    %p241 = scmp.ne.s32.totalorder %s227, %s228
    %p242 = scmp.eq.s32.totalorder %s26, 3
    %p243 = por %p241, %p242
    %p245 = scmp.ne.s32.totalorder %s228, %s244
    %p246 = scmp.eq.s32.totalorder %s26, 0
    %p247 = por %p245, %p246
    %s248 = ssub.s32 %s28, %s35
    %p249 = scmp.eq.s32.totalorder %s248, 0
    %s251 = sadd.s32 %s250, 1
    %s252 = scalar_select %p249, %s250, %s251
    %p255 = pneg %p249
    %p256 = scmp.eq.s32.totalorder %s20, 3
    %p257 = por %p255, %p256
    %p258 = scmp.ne.s32.totalorder %s250, %s253
    %p259 = scmp.eq.s32.totalorder %s20, 0
    %p260 = por %p258, %p259
    %p261 = scmp.ne.s32.totalorder %s250, %s253
    %p262 = scmp.eq.s32.totalorder %s25, 3
    %p263 = por %p261, %p262
    %p264 = scmp.ne.s32.totalorder %s253, %s254
    %p265 = scmp.eq.s32.totalorder %s25, 0
    %p266 = por %p264, %p265
    %p267 = scmp.ne.s32.totalorder %s253, %s254
    %p268 = scmp.eq.s32.totalorder %s26, 3
    %p269 = por %p267, %p268
    %p271 = scmp.ne.s32.totalorder %s254, %s270
    %p272 = scmp.eq.s32.totalorder %s26, 0
    %p273 = por %p271, %p272
    %s274 = ssub.s32 %s28, %s35
    %p275 = scmp.eq.s32.totalorder %s274, 0
    %s277 = sadd.s32 %s276, 1
    %s278 = scalar_select %p275, %s276, %s277
    %p281 = pneg %p275
    %p282 = scmp.eq.s32.totalorder %s20, 3
    %p283 = por %p281, %p282
    %p284 = scmp.ne.s32.totalorder %s276, %s279
    %p285 = scmp.eq.s32.totalorder %s20, 0
    %p286 = por %p284, %p285
    %p287 = scmp.ne.s32.totalorder %s276, %s279
    %p288 = scmp.eq.s32.totalorder %s25, 3
    %p289 = por %p287, %p288
    %p290 = scmp.ne.s32.totalorder %s279, %s280
    %p291 = scmp.eq.s32.totalorder %s25, 0
    %p292 = por %p290, %p291
    %p293 = scmp.ne.s32.totalorder %s279, %s280
    %p294 = scmp.eq.s32.totalorder %s26, 3
    %p295 = por %p293, %p294
    %p297 = scmp.ne.s32.totalorder %s280, %s296
    %p298 = scmp.eq.s32.totalorder %s26, 0
    %p299 = por %p297, %p298
    %s300 = ssub.s32 %s28, %s35
    %p301 = scmp.eq.s32.totalorder %s300, 0
    %s303 = sadd.s32 %s302, 1
    %s304 = scalar_select %p301, %s302, %s303
    %p307 = pneg %p301
    %p308 = scmp.eq.s32.totalorder %s20, 3
    %p309 = por %p307, %p308
    %p310 = scmp.ne.s32.totalorder %s302, %s305
    %p311 = scmp.eq.s32.totalorder %s20, 0
    %p312 = por %p310, %p311
    %p313 = scmp.ne.s32.totalorder %s302, %s305
    %p314 = scmp.eq.s32.totalorder %s25, 3
    %p315 = por %p313, %p314
    %p316 = scmp.ne.s32.totalorder %s305, %s306
    %p317 = scmp.eq.s32.totalorder %s25, 0
    %p318 = por %p316, %p317
    %p319 = scmp.ne.s32.totalorder %s305, %s306
    %p320 = scmp.eq.s32.totalorder %s26, 3
    %p321 = por %p319, %p320
    %p323 = scmp.ne.s32.totalorder %s306, %s322
    %p324 = scmp.eq.s32.totalorder %s26, 0
    %p325 = por %p323, %p324
    %s326 = ssub.s32 %s28, %s35
    %p327 = scmp.eq.s32.totalorder %s326, 0
    %s329 = sadd.s32 %s328, 1
    %s330 = scalar_select %p327, %s328, %s329
    %p333 = pneg %p327
    %p334 = scmp.eq.s32.totalorder %s20, 3
    %p335 = por %p333, %p334
    %p336 = scmp.ne.s32.totalorder %s328, %s331
    %p337 = scmp.eq.s32.totalorder %s20, 0
    %p338 = por %p336, %p337
    %p339 = scmp.ne.s32.totalorder %s328, %s331
    %p340 = scmp.eq.s32.totalorder %s25, 3
    %p341 = por %p339, %p340
    %p342 = scmp.ne.s32.totalorder %s331, %s332
    %p343 = scmp.eq.s32.totalorder %s25, 0
    %p344 = por %p342, %p343
    %p345 = scmp.ne.s32.totalorder %s331, %s332
    %p346 = scmp.eq.s32.totalorder %s26, 3
    %p347 = por %p345, %p346
    %p349 = scmp.ne.s32.totalorder %s332, %s348
    %p350 = scmp.eq.s32.totalorder %s26, 0
    %p351 = por %p349, %p350
    %s352 = ssub.s32 %s28, %s35
    %p353 = scmp.eq.s32.totalorder %s352, 0
    %s355 = sadd.s32 %s354, 1
    %s356 = scalar_select %p353, %s354, %s355
    %p359 = pneg %p353
    %p360 = scmp.eq.s32.totalorder %s20, 3
    %p361 = por %p359, %p360
    %p362 = scmp.ne.s32.totalorder %s354, %s357
    %p363 = scmp.eq.s32.totalorder %s20, 0
    %p364 = por %p362, %p363
    %p365 = scmp.ne.s32.totalorder %s354, %s357
    %p366 = scmp.eq.s32.totalorder %s25, 3
    %p367 = por %p365, %p366
    %p368 = scmp.ne.s32.totalorder %s357, %s358
    %p369 = scmp.eq.s32.totalorder %s25, 0
    %p370 = por %p368, %p369
    %p371 = scmp.ne.s32.totalorder %s357, %s358
    %p372 = scmp.eq.s32.totalorder %s26, 3
    %p373 = por %p371, %p372
    %p375 = scmp.ne.s32.totalorder %s358, %s374
    %p376 = scmp.eq.s32.totalorder %s26, 0
    %p377 = por %p375, %p376
    %s378 = ssub.s32 %s28, %s35
    %p379 = scmp.eq.s32.totalorder %s378, 0
    %s381 = sadd.s32 %s380, 1
    %s382 = scalar_select %p379, %s380, %s381
    %p385 = pneg %p379
    %p386 = scmp.eq.s32.totalorder %s20, 3
    %p387 = por %p385, %p386
    %p388 = scmp.ne.s32.totalorder %s380, %s383
    %p389 = scmp.eq.s32.totalorder %s20, 0
    %p390 = por %p388, %p389
    %p391 = scmp.ne.s32.totalorder %s380, %s383
    %p392 = scmp.eq.s32.totalorder %s25, 3
    %p393 = por %p391, %p392
    %p394 = scmp.ne.s32.totalorder %s383, %s384
    %p395 = scmp.eq.s32.totalorder %s25, 0
    %p396 = por %p394, %p395
    %p397 = scmp.ne.s32.totalorder %s383, %s384
    %p398 = scmp.eq.s32.totalorder %s26, 3
    %p399 = por %p397, %p398
    %p401 = scmp.ne.s32.totalorder %s384, %s400
    %p402 = scmp.eq.s32.totalorder %s26, 0
    %p403 = por %p401, %p402
    %s404 = ssub.s32 %s27, %s39
    %p405 = scmp.eq.s32.totalorder %s404, 0
    %s407 = sadd.s32 %s406, 1
    %s408 = scalar_select %p405, %s406, %s407
    %p411 = pneg %p405
    %p412 = scmp.eq.s32.totalorder %s20, 3
    %p413 = por %p411, %p412
    %p414 = scmp.ne.s32.totalorder %s406, %s409
    %p415 = scmp.eq.s32.totalorder %s20, 0
    %p416 = por %p414, %p415
    %p417 = scmp.ne.s32.totalorder %s406, %s409
    %p418 = scmp.eq.s32.totalorder %s25, 3
    %p419 = por %p417, %p418
    %p420 = scmp.ne.s32.totalorder %s409, %s410
    %p421 = scmp.eq.s32.totalorder %s25, 0
    %p422 = por %p420, %p421
    %p423 = scmp.ne.s32.totalorder %s409, %s410
    %p424 = scmp.eq.s32.totalorder %s26, 3
    %p425 = por %p423, %p424
    %p427 = scmp.ne.s32.totalorder %s410, %s426
    %p428 = scmp.eq.s32.totalorder %s26, 0
    %p429 = por %p427, %p428
    %p430 = scmp.le.s32.totalorder 1, %s20
    %p431 = scmp.lt.s32.totalorder %s20, 5
    %p432 = pnand %p430, %p431
    %p433 = pneg %p432
    // Predicated region
    $region9: #{transformer_forward.4} parent=5 // pred_check
      _
    $region10: #{transformer_forward.4} parent=5 // pred_check_branch
      %435 = sbr.rel (%p432) target = $region12
    $region11: #{transformer_forward.4} parent=5 // pred_region
      %s436 = ssub.s32 %s20, 1
    $region12: #{transformer_forward.4} parent=5 // pred_fallthru
      _
    %p437 = scmp.lt.s32.totalorder %s20, 4
    // Predicated region
    $region13: #{transformer_forward.4} parent=5 // pred_check
      %p438 = pneg %p437
    $region14: #{transformer_forward.4} parent=5 // pred_check_branch
      %440 = sbr.rel (%p438) target = $region16
    $region15: #{transformer_forward.4} parent=5 // pred_region
      // Predicated region
      $region17: #{transformer_forward.4} parent=15 // pred_check
        %p441 = pneg %p52
      $region18: #{transformer_forward.4} parent=15 // pred_check_branch
        %443 = sbr.rel (%p441) target = $region20
      $region19: #{transformer_forward.4} parent=15 // pred_region
        %p444 = scmp.lt.s32.totalorder %s27, 1
        %s445 = scalar_select %p444, %s27, 1
        %s446 = smul.addr %s445, 8
        %s447 = scalar_lea.vmem %s0, %s446
      $region20: #{transformer_forward.4} parent=15 // pred_fallthru
        _
      // Predicated region
      $region21: #{transformer_forward.4} parent=15 // pred_check
        %p448 = pneg %p78
      $region22: #{transformer_forward.4} parent=15 // pred_check_branch
        %450 = sbr.rel (%p448) target = $region24
      $region23: #{transformer_forward.4} parent=15 // pred_region
        %p451 = scmp.lt.s32.totalorder %s27, 1
        %s452 = scalar_select %p451, %s27, 1
        %s453 = smul.addr %s452, 8
        %s454 = scalar_lea.vmem %s1, %s453
      $region24: #{transformer_forward.4} parent=15 // pred_fallthru
        _
      // Predicated region
      $region25: #{transformer_forward.4} parent=15 // pred_check
        %p455 = pneg %p104
      $region26: #{transformer_forward.4} parent=15 // pred_check_branch
        %457 = sbr.rel (%p455) target = $region28
      $region27: #{transformer_forward.4} parent=15 // pred_region
        %p458 = scmp.lt.s32.totalorder %s27, 1
        %s459 = scalar_select %p458, %s27, 1
        %s460 = scalar_lea.vmem %s2, %s459
      $region28: #{transformer_forward.4} parent=15 // pred_fallthru
        _
      // Predicated region
      $region29: #{transformer_forward.4} parent=15 // pred_check
        %p461 = pneg %p130
      $region30: #{transformer_forward.4} parent=15 // pred_check_branch
        %463 = sbr.rel (%p461) target = $region32
      $region31: #{transformer_forward.4} parent=15 // pred_region
        %p464 = scmp.lt.s32.totalorder %s27, 1
        %s465 = scalar_select %p464, %s27, 1
        %s466 = scalar_lea.vmem %s3, %s465
      $region32: #{transformer_forward.4} parent=15 // pred_fallthru
        _
      // Predicated region
      $region33: #{transformer_forward.4} parent=15 // pred_check
        %p467 = pneg %p156
      $region34: #{transformer_forward.4} parent=15 // pred_check_branch
        %469 = sbr.rel (%p467) target = $region36
      $region35: #{transformer_forward.4} parent=15 // pred_region
        %p470 = scmp.lt.s32.totalorder %s28, 1
        %s471 = scalar_select %p470, %s28, 1
        %s472 = smul.addr %s471, 16
        %s473 = smul.addr %s472, 4
        %s474 = scalar_lea.vmem %s4, %s473
      $region36: #{transformer_forward.4} parent=15 // pred_fallthru
        _
      // Predicated region
      $region37: #{transformer_forward.4} parent=15 // pred_check
        %p475 = pneg %p182
      $region38: #{transformer_forward.4} parent=15 // pred_check_branch
        %477 = sbr.rel (%p475) target = $region40
      $region39: #{transformer_forward.4} parent=15 // pred_region
        %p478 = scmp.lt.s32.totalorder %s28, 1
        %s479 = scalar_select %p478, %s28, 1
        %s480 = smul.addr %s479, 4
        %s481 = scalar_lea.vmem %s5, %s480
      $region40: #{transformer_forward.4} parent=15 // pred_fallthru
        _
      // Predicated region
      $region41: #{transformer_forward.4} parent=15 // pred_check
        %p482 = pneg %p208
      $region42: #{transformer_forward.4} parent=15 // pred_check_branch
        %484 = sbr.rel (%p482) target = $region44
      $region43: #{transformer_forward.4} parent=15 // pred_region
        %p485 = scmp.lt.s32.totalorder %s28, 1
        %s486 = scalar_select %p485, %s28, 1
        %s487 = smul.addr %s486, 16
        %s488 = smul.addr %s487, 4
        %s489 = scalar_lea.vmem %s6, %s488
      $region44: #{transformer_forward.4} parent=15 // pred_fallthru
        _
      // Predicated region
      $region45: #{transformer_forward.4} parent=15 // pred_check
        %p490 = pneg %p234
      $region46: #{transformer_forward.4} parent=15 // pred_check_branch
        %492 = sbr.rel (%p490) target = $region48
      $region47: #{transformer_forward.4} parent=15 // pred_region
        %p493 = scmp.lt.s32.totalorder %s28, 1
        %s494 = scalar_select %p493, %s28, 1
        %s495 = smul.addr %s494, 4
        %s496 = scalar_lea.vmem %s7, %s495
      $region48: #{transformer_forward.4} parent=15 // pred_fallthru
        _
      // Predicated region
      $region49: #{transformer_forward.4} parent=15 // pred_check
        %p497 = pneg %p260
      $region50: #{transformer_forward.4} parent=15 // pred_check_branch
        %499 = sbr.rel (%p497) target = $region52
      $region51: #{transformer_forward.4} parent=15 // pred_region
        %p500 = scmp.lt.s32.totalorder %s28, 1
        %s501 = scalar_select %p500, %s28, 1
        %s502 = smul.addr %s501, 3
        %s503 = scalar_lea.vmem %s8, %s502
      $region52: #{transformer_forward.4} parent=15 // pred_fallthru
        _
      // Predicated region
      $region53: #{transformer_forward.4} parent=15 // pred_check
        %p504 = pneg %p286
      $region54: #{transformer_forward.4} parent=15 // pred_check_branch
        %506 = sbr.rel (%p504) target = $region56
      $region55: #{transformer_forward.4} parent=15 // pred_region
        %p507 = scmp.lt.s32.totalorder %s28, 1
        %s508 = scalar_select %p507, %s28, 1
        %s509 = smul.addr %s508, 3
        %s510 = scalar_lea.vmem %s9, %s509
      $region56: #{transformer_forward.4} parent=15 // pred_fallthru
        _
      // Predicated region
      $region57: #{transformer_forward.4} parent=15 // pred_check
        %p511 = pneg %p312
      $region58: #{transformer_forward.4} parent=15 // pred_check_branch
        %513 = sbr.rel (%p511) target = $region60
      $region59: #{transformer_forward.4} parent=15 // pred_region
        %p514 = scmp.lt.s32.totalorder %s28, 1
        %s515 = scalar_select %p514, %s28, 1
        %s516 = smul.addr %s515, 4
        %s517 = smul.addr %s516, 4
        %s518 = scalar_lea.vmem %s10, %s517
      $region60: #{transformer_forward.4} parent=15 // pred_fallthru
        _
      // Predicated region
      $region61: #{transformer_forward.4} parent=15 // pred_check
        %p519 = pneg %p338
      $region62: #{transformer_forward.4} parent=15 // pred_check_branch
        %521 = sbr.rel (%p519) target = $region64
      $region63: #{transformer_forward.4} parent=15 // pred_region
        %p522 = scmp.lt.s32.totalorder %s28, 1
        %s523 = scalar_select %p522, %s28, 1
        %s524 = scalar_lea.vmem %s11, %s523
      $region64: #{transformer_forward.4} parent=15 // pred_fallthru
        _
      // Predicated region
      $region65: #{transformer_forward.4} parent=15 // pred_check
        %p525 = pneg %p364
      $region66: #{transformer_forward.4} parent=15 // pred_check_branch
        %527 = sbr.rel (%p525) target = $region68
      $region67: #{transformer_forward.4} parent=15 // pred_region
        %p528 = scmp.lt.s32.totalorder %s28, 1
        %s529 = scalar_select %p528, %s28, 1
        %s530 = smul.addr %s529, 8
        %s531 = smul.addr %s530, 4
        %s532 = scalar_lea.vmem %s12, %s531
      $region68: #{transformer_forward.4} parent=15 // pred_fallthru
        _
      // Predicated region
      $region69: #{transformer_forward.4} parent=15 // pred_check
        %p533 = pneg %p390
      $region70: #{transformer_forward.4} parent=15 // pred_check_branch
        %535 = sbr.rel (%p533) target = $region72
      $region71: #{transformer_forward.4} parent=15 // pred_region
        %p536 = scmp.lt.s32.totalorder %s28, 1
        %s537 = scalar_select %p536, %s28, 1
        %s538 = scalar_lea.vmem %s13, %s537
      $region72: #{transformer_forward.4} parent=15 // pred_fallthru
        _
    $region16: #{transformer_forward.4} parent=5 // pred_fallthru
      _
    %p539 = scmp.le.s32.totalorder 1, %s20
    %p540 = scmp.lt.s32.totalorder %s20, 5
    %p541 = pnand %p539, %p540
    %p542 = pneg %p541
    // Predicated region
    $region73: #{transformer_forward.4} parent=5 // pred_check
      _
    $region74: #{transformer_forward.4} parent=5 // pred_check_branch
      %544 = sbr.rel (%p541) target = $region76
    $region75: #{transformer_forward.4} parent=5 // pred_region
      %s545 = ssub.s32 %s20, 1
      %p546 = scmp.lt.s32.totalorder %s29, 1
      %s547 = scalar_select %p546, %s29, 1
      %s548 = smul.addr %s547, 8
      %s549 = scalar_lea.vmem %s0, %s548
      %p550 = pneg %p58
      %p551 = pneg %p55
      %p552 = scmp.lt.s32.totalorder %s29, 1
      %s553 = scalar_select %p552, %s29, 1
      %s554 = smul.addr %s553, 8
      %s555 = scalar_lea.vmem %s1, %s554
      %p556 = pneg %p84
      %p557 = pneg %p81
      %p558 = scmp.lt.s32.totalorder %s29, 1
      %s559 = scalar_select %p558, %s29, 1
      %s560 = scalar_lea.vmem %s2, %s559
      %p561 = pneg %p110
      %p562 = pneg %p107
      %p563 = scmp.lt.s32.totalorder %s29, 1
      %s564 = scalar_select %p563, %s29, 1
      %s565 = scalar_lea.vmem %s3, %s564
      %p566 = pneg %p136
      %p567 = pneg %p133
      %p568 = scmp.lt.s32.totalorder %s30, 1
      %s569 = scalar_select %p568, %s30, 1
      %s570 = smul.addr %s569, 16
      %s571 = smul.addr %s570, 4
      %s572 = scalar_lea.vmem %s4, %s571
      %p573 = pneg %p162
      %p574 = pneg %p159
      %p575 = scmp.lt.s32.totalorder %s30, 1
      %s576 = scalar_select %p575, %s30, 1
      %s577 = smul.addr %s576, 4
      %s578 = scalar_lea.vmem %s5, %s577
      %p579 = pneg %p188
      %p580 = pneg %p185
      %p581 = scmp.lt.s32.totalorder %s30, 1
      %s582 = scalar_select %p581, %s30, 1
      %s583 = smul.addr %s582, 16
      %s584 = smul.addr %s583, 4
      %s585 = scalar_lea.vmem %s6, %s584
      %p586 = pneg %p214
      %p587 = pneg %p211
      %p588 = scmp.lt.s32.totalorder %s30, 1
      %s589 = scalar_select %p588, %s30, 1
      %s590 = smul.addr %s589, 4
      %s591 = scalar_lea.vmem %s7, %s590
      %p592 = pneg %p240
      %p593 = pneg %p237
      %p594 = scmp.lt.s32.totalorder %s30, 1
      %s595 = scalar_select %p594, %s30, 1
      %s596 = smul.addr %s595, 3
      %s597 = scalar_lea.vmem %s8, %s596
      %p598 = pneg %p266
      %p599 = pneg %p263
      %p600 = scmp.lt.s32.totalorder %s30, 1
      %s601 = scalar_select %p600, %s30, 1
      %s602 = smul.addr %s601, 3
      %s603 = scalar_lea.vmem %s9, %s602
      %p604 = pneg %p292
      %p605 = pneg %p289
      %p606 = scmp.lt.s32.totalorder %s30, 1
      %s607 = scalar_select %p606, %s30, 1
      %s608 = smul.addr %s607, 4
      %s609 = smul.addr %s608, 4
      %s610 = scalar_lea.vmem %s10, %s609
      %p611 = pneg %p318
      %p612 = pneg %p315
      %p613 = scmp.lt.s32.totalorder %s30, 1
      %s614 = scalar_select %p613, %s30, 1
      %s615 = scalar_lea.vmem %s11, %s614
      %p616 = pneg %p344
      %p617 = pneg %p341
      %p618 = scmp.lt.s32.totalorder %s30, 1
      %s619 = scalar_select %p618, %s30, 1
      %s620 = smul.addr %s619, 8
      %s621 = smul.addr %s620, 4
      %s622 = scalar_lea.vmem %s12, %s621
      %p623 = pneg %p370
      %p624 = pneg %p367
      %p625 = scmp.lt.s32.totalorder %s30, 1
      %s626 = scalar_select %p625, %s30, 1
      %s627 = scalar_lea.vmem %s13, %s626
      %p628 = pneg %p396
      %p629 = pneg %p393
      %p630 = pneg %p422
      %p631 = pneg %p419
      %p632 = scmp.lt.s32.totalorder %s29, 1
      %s633 = scalar_select %p632, %s29, 1
      %s634 = smul.addr %s633, 8
      %s635 = scalar_lea.vmem %s14, %s634
      %p636 = scmp.lt.s32.totalorder %s29, 1
      %s637 = scalar_select %p636, %s29, 1
      %s638 = smul.addr %s637, 8
      %s639 = scalar_lea.vmem %s0, %s638
      %p640 = scmp.lt.s32.totalorder %s29, 1
      %s641 = scalar_select %p640, %s29, 1
      %s642 = smul.addr %s641, 8
      %s643 = scalar_lea.vmem %s1, %s642
      %p644 = scmp.lt.s32.totalorder %s29, 1
      %s645 = scalar_select %p644, %s29, 1
      %s646 = scalar_lea.vmem %s2, %s645
      %p647 = scmp.lt.s32.totalorder %s29, 1
      %s648 = scalar_select %p647, %s29, 1
      %s649 = scalar_lea.vmem %s3, %s648
      %p650 = scmp.lt.s32.totalorder %s30, 1
      %s651 = scalar_select %p650, %s30, 1
      %s652 = smul.addr %s651, 16
      %s653 = smul.addr %s652, 4
      %s654 = scalar_lea.vmem %s4, %s653
      %p655 = scmp.lt.s32.totalorder %s30, 1
      %s656 = scalar_select %p655, %s30, 1
      %s657 = smul.addr %s656, 4
      %s658 = scalar_lea.vmem %s5, %s657
      %p659 = scmp.lt.s32.totalorder %s30, 1
      %s660 = scalar_select %p659, %s30, 1
      %s661 = smul.addr %s660, 16
      %s662 = smul.addr %s661, 4
      %s663 = scalar_lea.vmem %s6, %s662
      %p664 = scmp.lt.s32.totalorder %s30, 1
      %s665 = scalar_select %p664, %s30, 1
      %s666 = smul.addr %s665, 4
      %s667 = scalar_lea.vmem %s7, %s666
      %p668 = scmp.lt.s32.totalorder %s30, 1
      %s669 = scalar_select %p668, %s30, 1
      %s670 = smul.addr %s669, 3
      %s671 = scalar_lea.vmem %s8, %s670
      %p672 = scmp.lt.s32.totalorder %s30, 1
      %s673 = scalar_select %p672, %s30, 1
      %s674 = smul.addr %s673, 3
      %s675 = scalar_lea.vmem %s9, %s674
      %p676 = scmp.lt.s32.totalorder %s30, 1
      %s677 = scalar_select %p676, %s30, 1
      %s678 = smul.addr %s677, 4
      %s679 = smul.addr %s678, 4
      %s680 = scalar_lea.vmem %s10, %s679
      %p681 = scmp.lt.s32.totalorder %s30, 1
      %s682 = scalar_select %p681, %s30, 1
      %s683 = scalar_lea.vmem %s11, %s682
      %p684 = scmp.lt.s32.totalorder %s30, 1
      %s685 = scalar_select %p684, %s30, 1
      %s686 = smul.addr %s685, 8
      %s687 = smul.addr %s686, 4
      %s688 = scalar_lea.vmem %s12, %s687
      %p689 = scmp.lt.s32.totalorder %s30, 1
      %s690 = scalar_select %p689, %s30, 1
      %s691 = scalar_lea.vmem %s13, %s690
      %p692 = scmp.lt.s32.totalorder %s29, 1
      %s693 = scalar_select %p692, %s29, 1
      %s694 = smul.addr %s693, 8
      %s695 = scalar_lea.vmem %s14, %s694
      %p697 = scmp.eq.s32.totalorder %s30, 0
      // Predicated region
      $region77: #{transformer_forward.4} parent=75 // pred_check
        %p698 = pneg %p697
      $region78: #{transformer_forward.4} parent=75 // pred_check_branch
        %700 = sbr.rel (%p698) target = $region80
      $region79: #{transformer_forward.4} parent=75 // pred_region
        %v701 = vld [vmem:[%s639] sm:$0xff]
        %vm702 = vcmask 261120
        %703 = vst.msk [vmem:[#allocation2] sm:$0xff] %vm702, %v701
      $region80: #{transformer_forward.4} parent=75 // pred_fallthru
        _
      %v704 = vld [vmem:[#allocation2] sm:$0xff]
      %v705 = vld [vmem:[%s643] sm:$0xff]
      %v706 = vld [vmem:[%s646] sm:$0x1]
      %v707 = vld [vmem:[%s649] sm:$0x1]
      %v708 = vlaneseq
      %v709 = vshrl.u32 %v708, 7
      %v710 = vlaneseq
      %v711 = vand.u32 %v710, 127
      %vm712 = vcmp.gt.s32.totalorder %v711, %v709
      %v713 = vsel %vm712, -1e+09, 0.0
      %v714 = vld [vmem:[%s671] sm:$0x1]
      %v715 = vld [vmem:[%s671 + $0x1] sm:$0x1]
      %v716 = vld [vmem:[%s671 + $0x2] sm:$0x1]
      %v717 = vld [vmem:[%s675] sm:$0x1]
      %v718 = vld [vmem:[%s675 + $0x1] sm:$0x1]
      %v719 = vld [vmem:[%s675 + $0x2] sm:$0x1]
      %v720 = vld [vmem:[%s654] sm:$0xf]
      %v721 = vld [vmem:[%s654 + $0x4] sm:$0xf]
      %v722 = vld [vmem:[%s654 + $0x8] sm:$0xf]
      %v723 = vld [vmem:[%s654 + $0xc] sm:$0xf]
      %v724 = vld [vmem:[%s654 + $0x10] sm:$0xf]
      %v725 = vld [vmem:[%s654 + $0x14] sm:$0xf]
      %v726 = vld [vmem:[%s654 + $0x18] sm:$0xf]
      %v727 = vld [vmem:[%s654 + $0x1c] sm:$0xf]
      %v728 = vld [vmem:[%s654 + $0x20] sm:$0xf]
      %v729 = vld [vmem:[%s654 + $0x24] sm:$0xf]
      %v730 = vld [vmem:[%s654 + $0x28] sm:$0xf]
      %v731 = vld [vmem:[%s654 + $0x2c] sm:$0xf]
      %v732 = vld [vmem:[%s654 + $0x30] sm:$0xf]
      %v733 = vld [vmem:[%s654 + $0x34] sm:$0xf]
      %v734 = vld [vmem:[%s654 + $0x38] sm:$0xf]
      %v735 = vld [vmem:[%s654 + $0x3c] sm:$0xf]
      %v736 = vld [vmem:[%s658] sm:$0x1]
      %v737 = vld [vmem:[%s658 + $0x1] sm:$0x1]
      %v738 = vld [vmem:[%s658 + $0x2] sm:$0x1]
      %v739 = vld [vmem:[%s658 + $0x3] sm:$0x1]
      %v740 = vpack.c.bf16 %v704, %v704
      %v742 = vperm.slane %v736, 0
      %v748 = vunpack.c.l.b16 %v720
      %v749 = vunpack.c.l.b16 %v721
      %v750 = vunpack.c.l.b16 %v722
      %v751 = vunpack.c.l.b16 %v723
      %v752 = vpack.c.b16 %v749, %v748
      %v753 = vpack.c.b16 %v751, %v750
      %vm756 = vcmask 261120
      %v758 = vsel %vm756, %v740, 0
      %760 = vmatpush.bf16.msra.mxu0 0
      %761 = vmatpush.bf16.msra.mxu0 0
      %762 = vmatpush.bf16.msra.mxu0 0
      %763 = vmatpush.bf16.msra.mxu0 0
      %764 = vmatpush.bf16.msra.mxu0 0
      %765 = vmatpush.bf16.msra.mxu0 0
      %766 = vmatpush.bf16.msra.mxu0 %v753
      %767 = vmatpush.bf16.msra.mxu0 %v752
      %768 = vmatmul.bf16.gmra.mxu0 %v758
      %v769 = vpop.f32.mrf.mxu0
      %v770 = vadd.f32 %v742, %v769
      %v771 = vpop.f32.mrf.mxu0
      %772 = vdwg.mxu0
      %v774 = vperm.slane %v737, 0
      %v780 = vunpack.c.l.b16 %v724
      %v781 = vunpack.c.l.b16 %v725
      %v782 = vunpack.c.l.b16 %v726
      %v783 = vunpack.c.l.b16 %v727
      %v784 = vpack.c.b16 %v781, %v780
      %v785 = vpack.c.b16 %v783, %v782
      %788 = vmatpush.bf16.msra.mxu0 0
      %789 = vmatpush.bf16.msra.mxu0 0
      %790 = vmatpush.bf16.msra.mxu0 0
      %791 = vmatpush.bf16.msra.mxu0 0
      %792 = vmatpush.bf16.msra.mxu0 0
      %793 = vmatpush.bf16.msra.mxu0 0
      %794 = vmatpush.bf16.msra.mxu0 %v785
      %795 = vmatpush.bf16.msra.mxu0 %v784
      %796 = vmatmul.bf16.gmra.mxu0 %v758
      %v797 = vpop.f32.mrf.mxu0
      %v798 = vadd.f32 %v774, %v797
      %v799 = vpop.f32.mrf.mxu0
      %800 = vdwg.mxu0
      %v802 = vperm.slane %v738, 0
      %v808 = vunpack.c.l.b16 %v728
      %v809 = vunpack.c.l.b16 %v729
      %v810 = vunpack.c.l.b16 %v730
      %v811 = vunpack.c.l.b16 %v731
      %v812 = vpack.c.b16 %v809, %v808
      %v813 = vpack.c.b16 %v811, %v810
      %816 = vmatpush.bf16.msra.mxu0 0
      %817 = vmatpush.bf16.msra.mxu0 0
      %818 = vmatpush.bf16.msra.mxu0 0
      %819 = vmatpush.bf16.msra.mxu0 0
      %820 = vmatpush.bf16.msra.mxu0 0
      %821 = vmatpush.bf16.msra.mxu0 0
      %822 = vmatpush.bf16.msra.mxu0 %v813
      %823 = vmatpush.bf16.msra.mxu0 %v812
      %824 = vmatmul.bf16.gmra.mxu0 %v758
      %v825 = vpop.f32.mrf.mxu0
      %v826 = vadd.f32 %v802, %v825
      %v827 = vpop.f32.mrf.mxu0
      %828 = vdwg.mxu0
      %830 = vrot.lane.b32.xlu0 %v770, 120
      %v831 = vpop.permute.xlu0 %830
      %833 = vrot.lane.b32.xlu0 %v770, 112
      %v834 = vpop.permute.xlu0 %833
      %836 = vrot.lane.b32.xlu0 %v770, 104
      %v837 = vpop.permute.xlu0 %836
      %840 = vrot.lane.b32.xlu0 %v798, 120
      %v841 = vpop.permute.xlu0 %840
      %843 = vrot.lane.b32.xlu0 %v798, 112
      %v844 = vpop.permute.xlu0 %843
      %846 = vrot.lane.b32.xlu0 %v798, 104
      %v847 = vpop.permute.xlu0 %846
      %850 = vrot.lane.b32.xlu0 %v826, 120
      %v851 = vpop.permute.xlu0 %850
      %853 = vrot.lane.b32.xlu0 %v826, 112
      %v854 = vpop.permute.xlu0 %853
      %856 = vrot.lane.b32.xlu0 %v826, 104
      %v857 = vpop.permute.xlu0 %856
      %v859 = vpack.c.bf16 %v770, %v770
      %v860 = vpack.c.bf16 %v831, %v831
      %v861 = vpack.c.bf16 %v834, %v834
      %v862 = vpack.c.bf16 %v837, %v837
      %v863 = vpack.c.bf16 %v798, %v798
      %v864 = vpack.c.bf16 %v841, %v841
      %v865 = vpack.c.bf16 %v844, %v844
      %v866 = vpack.c.bf16 %v847, %v847
      %vm867 = vcmask 64512
      %v869 = vsel %vm867, %v859, 0
      %v872 = vsel %vm867, %v863, 0
      %874 = vmatpush.bf16.xpose.msra.mxu0 0
      %875 = vmatpush.bf16.xpose.msra.mxu0 0
      %876 = vmatpush.bf16.xpose.msra.mxu0 0
      %877 = vmatpush.bf16.xpose.msra.mxu0 0
      %878 = vmatpush.bf16.xpose.msra.mxu0 0
      %879 = vmatpush.bf16.xpose.msra.mxu0 0
      %880 = vmatpush.bf16.xpose.msra.mxu0 0
      %881 = vmatpush.bf16.xpose.msra.mxu0 %v872
      %882 = vmatmul.bf16.gmra.mxu0 %v869
      %v883 = vpop.f32.mrf.mxu0
      %v884 = vadd.f32 0.0, %v883
      %v885 = vpop.f32.mrf.mxu0
      %886 = vdwg.mxu0
      %v888 = vsel %vm867, %v860, 0
      %v891 = vsel %vm867, %v864, 0
      %893 = vmatpush.bf16.xpose.msra.mxu0 0
      %894 = vmatpush.bf16.xpose.msra.mxu0 0
      %895 = vmatpush.bf16.xpose.msra.mxu0 0
      %896 = vmatpush.bf16.xpose.msra.mxu0 0
      %897 = vmatpush.bf16.xpose.msra.mxu0 0
      %898 = vmatpush.bf16.xpose.msra.mxu0 0
      %899 = vmatpush.bf16.xpose.msra.mxu0 0
      %900 = vmatpush.bf16.xpose.msra.mxu0 %v891
      %901 = vmatmul.bf16.gmra.mxu0 %v888
      %v902 = vpop.f32.mrf.mxu0
      %v903 = vadd.f32 0.0, %v902
      %v904 = vpop.f32.mrf.mxu0
      %905 = vdwg.mxu0
      %v907 = vsel %vm867, %v861, 0
      %v910 = vsel %vm867, %v865, 0
      %912 = vmatpush.bf16.xpose.msra.mxu0 0
      %913 = vmatpush.bf16.xpose.msra.mxu0 0
      %914 = vmatpush.bf16.xpose.msra.mxu0 0
      %915 = vmatpush.bf16.xpose.msra.mxu0 0
      %916 = vmatpush.bf16.xpose.msra.mxu0 0
      %917 = vmatpush.bf16.xpose.msra.mxu0 0
      %918 = vmatpush.bf16.xpose.msra.mxu0 0
      %919 = vmatpush.bf16.xpose.msra.mxu0 %v910
      %920 = vmatmul.bf16.gmra.mxu0 %v907
      %v921 = vpop.f32.mrf.mxu0
      %v922 = vadd.f32 0.0, %v921
      %v923 = vpop.f32.mrf.mxu0
      %924 = vdwg.mxu0
      %v926 = vsel %vm867, %v862, 0
      %v929 = vsel %vm867, %v866, 0
      %931 = vmatpush.bf16.xpose.msra.mxu0 0
      %932 = vmatpush.bf16.xpose.msra.mxu0 0
      %933 = vmatpush.bf16.xpose.msra.mxu0 0
      %934 = vmatpush.bf16.xpose.msra.mxu0 0
      %935 = vmatpush.bf16.xpose.msra.mxu0 0
      %936 = vmatpush.bf16.xpose.msra.mxu0 0
      %937 = vmatpush.bf16.xpose.msra.mxu0 0
      %938 = vmatpush.bf16.xpose.msra.mxu0 %v929
      %939 = vmatmul.bf16.gmra.mxu0 %v926
      %v940 = vpop.f32.mrf.mxu0
      %v941 = vadd.f32 0.0, %v940
      %v942 = vpop.f32.mrf.mxu0
      %943 = vdwg.mxu0
      %v944 = vmul.f32 %v884, 0.35355338
      %v945 = vmul.f32 %v903, 0.35355338
      %v946 = vmul.f32 %v922, 0.35355338
      %v947 = vmul.f32 %v941, 0.35355338
      %v949 = vperm.slane %v706, 0
      %v951 = vadd.f32 %v944, %v949
      %v952 = vadd.f32 %v945, %v949
      %v953 = vadd.f32 %v946, %v949
      %v954 = vadd.f32 %v947, %v949
      %v955 = vadd.f32 %v951, %v713
      %v956 = vadd.f32 %v952, %v713
      %v957 = vadd.f32 %v953, %v713
      %v958 = vadd.f32 %v954, %v713
      %v959 = vsel %vm867, %v955, -inf
      %960 = vmax.xlane.f32.xlu0 %v959
      %v961 = vpop.xlane.xlu0 %960
      %v962 = vsel %vm867, %v956, -inf
      %963 = vmax.xlane.f32.xlu0 %v962
      %v964 = vpop.xlane.xlu0 %963
      %v965 = vsel %vm867, %v957, -inf
      %966 = vmax.xlane.f32.xlu0 %v965
      %v967 = vpop.xlane.xlu0 %966
      %v968 = vsel %vm867, %v958, -inf
      %969 = vmax.xlane.f32.xlu0 %v968
      %v970 = vpop.xlane.xlu0 %969
      %v971 = vsub.f32 %v955, %v961
      %v972 = vsub.f32 %v956, %v964
      %v973 = vsub.f32 %v957, %v967
      %v974 = vsub.f32 %v958, %v970
      %v975 = vmul.f32 %v971, 1.442695
      %v976 = vpow.pop %v975
      %v977 = vmul.f32 %v972, 1.442695
      %v978 = vpow.pop %v977
      %v979 = vmul.f32 %v973, 1.442695
      %v980 = vpow.pop %v979
      %v981 = vmul.f32 %v974, 1.442695
      %v982 = vpow.pop %v981
      %v983 = vsel %vm867, %v976, 0.0
      %984 = vadd.xlane.f32.xlu0 %v983
      %v985 = vpop.xlane.xlu0 %984
      %v986 = vsel %vm867, %v978, 0.0
      %987 = vadd.xlane.f32.xlu0 %v986
      %v988 = vpop.xlane.xlu0 %987
      %v989 = vsel %vm867, %v980, 0.0
      %990 = vadd.xlane.f32.xlu0 %v989
      %v991 = vpop.xlane.xlu0 %990
      %v992 = vsel %vm867, %v982, 0.0
      %993 = vadd.xlane.f32.xlu0 %v992
      %v994 = vpop.xlane.xlu0 %993
      %v995 = vrcp.pop %v985
      %v996 = vrcp.pop %v988
      %v997 = vrcp.pop %v991
      %v998 = vrcp.pop %v994
      %v999 = vmul.f32 %v976, %v995
      %v1000 = vmul.f32 %v978, %v996
      %v1001 = vmul.f32 %v980, %v997
      %v1002 = vmul.f32 %v982, %v998
      %v1003 = vpack.c.bf16 %v999, %v999
      %v1004 = vpack.c.bf16 %v1000, %v1000
      %v1005 = vpack.c.bf16 %v1001, %v1001
      %v1006 = vpack.c.bf16 %v1002, %v1002
      %v1007 = vpack.c.bf16 %v826, %v826
      %v1008 = vpack.c.bf16 %v851, %v851
      %v1009 = vpack.c.bf16 %v854, %v854
      %v1010 = vpack.c.bf16 %v857, %v857
      %v1012 = vsel %vm867, %v1003, 0
      %vm1014 = vcmask 1043456
      %v1016 = vsel %vm1014, %v1007, 0
      %1018 = vmatpush.bf16.msra.mxu0 0
      %1019 = vmatpush.bf16.msra.mxu0 0
      %1020 = vmatpush.bf16.msra.mxu0 0
      %1021 = vmatpush.bf16.msra.mxu0 0
      %1022 = vmatpush.bf16.msra.mxu0 0
      %1023 = vmatpush.bf16.msra.mxu0 0
      %1024 = vmatpush.bf16.msra.mxu0 0
      %1025 = vmatpush.bf16.msra.mxu0 %v1016
      %1026 = vmatmul.bf16.gmra.mxu0 %v1012
      %v1027 = vpop.f32.mrf.mxu0
      %v1028 = vadd.f32 0.0, %v1027
      %v1029 = vpop.f32.mrf.mxu0
      %1030 = vdwg.mxu0
      %v1032 = vsel %vm867, %v1004, 0
      %v1035 = vsel %vm1014, %v1008, 0
      %1037 = vmatpush.bf16.msra.mxu0 0
      %1038 = vmatpush.bf16.msra.mxu0 0
      %1039 = vmatpush.bf16.msra.mxu0 0
      %1040 = vmatpush.bf16.msra.mxu0 0
      %1041 = vmatpush.bf16.msra.mxu0 0
      %1042 = vmatpush.bf16.msra.mxu0 0
      %1043 = vmatpush.bf16.msra.mxu0 0
      %1044 = vmatpush.bf16.msra.mxu0 %v1035
      %1045 = vmatmul.bf16.gmra.mxu0 %v1032
      %v1046 = vpop.f32.mrf.mxu0
      %v1047 = vadd.f32 0.0, %v1046
      %v1048 = vpop.f32.mrf.mxu0
      %1049 = vdwg.mxu0
      %v1051 = vsel %vm867, %v1005, 0
      %v1054 = vsel %vm1014, %v1009, 0
      %1056 = vmatpush.bf16.msra.mxu0 0
      %1057 = vmatpush.bf16.msra.mxu0 0
      %1058 = vmatpush.bf16.msra.mxu0 0
      %1059 = vmatpush.bf16.msra.mxu0 0
      %1060 = vmatpush.bf16.msra.mxu0 0
      %1061 = vmatpush.bf16.msra.mxu0 0
      %1062 = vmatpush.bf16.msra.mxu0 0
      %1063 = vmatpush.bf16.msra.mxu0 %v1054
      %1064 = vmatmul.bf16.gmra.mxu0 %v1051
      %v1065 = vpop.f32.mrf.mxu0
      %v1066 = vadd.f32 0.0, %v1065
      %v1067 = vpop.f32.mrf.mxu0
      %1068 = vdwg.mxu0
      %v1070 = vsel %vm867, %v1006, 0
      %v1073 = vsel %vm1014, %v1010, 0
      %1075 = vmatpush.bf16.msra.mxu0 0
      %1076 = vmatpush.bf16.msra.mxu0 0
      %1077 = vmatpush.bf16.msra.mxu0 0
      %1078 = vmatpush.bf16.msra.mxu0 0
      %1079 = vmatpush.bf16.msra.mxu0 0
      %1080 = vmatpush.bf16.msra.mxu0 0
      %1081 = vmatpush.bf16.msra.mxu0 0
      %1082 = vmatpush.bf16.msra.mxu0 %v1073
      %1083 = vmatmul.bf16.gmra.mxu0 %v1070
      %v1084 = vpop.f32.mrf.mxu0
      %v1085 = vadd.f32 0.0, %v1084
      %v1086 = vpop.f32.mrf.mxu0
      %1087 = vdwg.mxu0
      %1089 = vrot.lane.b32.xlu0 %v1047, 8
      %v1090 = vpop.permute.xlu0 %1089
      %1093 = vrot.lane.b32.xlu0 %v1066, 16
      %v1094 = vpop.permute.xlu0 %1093
      %1097 = vrot.lane.b32.xlu0 %v1085, 24
      %v1098 = vpop.permute.xlu0 %1097
      %v1100 = vsel %vm867, %v1028, %v1090
      %vm1101 = vcmask 130048
      %v1102 = vsel %vm1101, %v1100, %v1094
      %vm1103 = vcmask 195584
      %v1104 = vsel %vm1103, %v1102, %v1098
      %v1105 = vpack.c.bf16 %v1104, %v1104
      %v1107 = vperm.slane %v739, 0
      %v1113 = vunpack.c.l.b16 %v732
      %v1114 = vunpack.c.l.b16 %v733
      %v1115 = vunpack.c.l.b16 %v734
      %v1116 = vunpack.c.l.b16 %v735
      %v1117 = vpack.c.b16 %v1114, %v1113
      %v1118 = vpack.c.b16 %v1116, %v1115
      %v1122 = vsel %vm756, %v1105, 0
      %1124 = vmatpush.bf16.msra.mxu0 0
      %1125 = vmatpush.bf16.msra.mxu0 0
      %1126 = vmatpush.bf16.msra.mxu0 0
      %1127 = vmatpush.bf16.msra.mxu0 0
      %1128 = vmatpush.bf16.msra.mxu0 0
      %1129 = vmatpush.bf16.msra.mxu0 0
      %1130 = vmatpush.bf16.msra.mxu0 %v1118
      %1131 = vmatpush.bf16.msra.mxu0 %v1117
      %1132 = vmatmul.bf16.gmra.mxu0 %v1122
      %v1133 = vpop.f32.mrf.mxu0
      %v1134 = vadd.f32 %v1107, %v1133
      %v1135 = vpop.f32.mrf.mxu0
      %1136 = vdwg.mxu0
      %v1137 = vadd.f32 %v704, %v1134
      %v1138 = vsel %vm756, %v1137, 0.0
      %1139 = vadd.xlane.f32.xlu0 %v1138
      %v1140 = vpop.xlane.xlu0 %1139
      %v1141 = vmul.f32 %v1137, %v1137
      %v1142 = vsel %vm756, %v1141, 0.0
      %1143 = vadd.xlane.f32.xlu0 %v1142
      %v1144 = vpop.xlane.xlu0 %1143
      %v1145 = vmul.f32 %v1140, 0.03125
      %v1146 = vmul.f32 %v1144, 0.03125
      %v1147 = vmul.f32 %v1145, %v1145
      %v1148 = vsub.f32 %v1146, %v1147
      %v1149 = vsub.f32 %v1137, %v1145
      %v1150 = vadd.f32 %v1148, 1e-05
      %v1151 = vrsqrt.pop %v1150
      %v1152 = vmul.f32 %v1151, %v1150
      %v1153 = vmul.f32 %v1152, %v1151
      %v1154 = vmul.f32 0.5, %v1153
      %v1155 = vsub.f32 1.5, %v1154
      %v1156 = vmul.f32 %v1151, %v1155
      %vm1157 = vweird.f32 %v1150
      %vm1158 = vweird.f32 %v1151
      %vm1159 = vmor %vm1157, %vm1158
      %v1160 = vsel %vm1159, %v1151, %v1156
      %v1161 = vmul.f32 %v1149, %v1160
      %v1163 = vperm.slane %v714, 0
      %v1165 = vmul.f32 %v1161, %v1163
      %v1167 = vperm.slane %v717, 0
      %v1169 = vadd.f32 %v1165, %v1167
      %v1170 = vld [vmem:[%s663] sm:$0xf]
      %v1171 = vld [vmem:[%s663 + $0x4] sm:$0xf]
      %v1172 = vld [vmem:[%s663 + $0x8] sm:$0xf]
      %v1173 = vld [vmem:[%s663 + $0xc] sm:$0xf]
      %v1174 = vld [vmem:[%s663 + $0x10] sm:$0xf]
      %v1175 = vld [vmem:[%s663 + $0x14] sm:$0xf]
      %v1176 = vld [vmem:[%s663 + $0x18] sm:$0xf]
      %v1177 = vld [vmem:[%s663 + $0x1c] sm:$0xf]
      %v1178 = vld [vmem:[%s663 + $0x20] sm:$0xf]
      %v1179 = vld [vmem:[%s663 + $0x24] sm:$0xf]
      %v1180 = vld [vmem:[%s663 + $0x28] sm:$0xf]
      %v1181 = vld [vmem:[%s663 + $0x2c] sm:$0xf]
      %v1182 = vld [vmem:[%s663 + $0x30] sm:$0xf]
      %v1183 = vld [vmem:[%s663 + $0x34] sm:$0xf]
      %v1184 = vld [vmem:[%s663 + $0x38] sm:$0xf]
      %v1185 = vld [vmem:[%s663 + $0x3c] sm:$0xf]
      %v1186 = vld [vmem:[%s667] sm:$0x1]
      %v1187 = vld [vmem:[%s667 + $0x1] sm:$0x1]
      %v1188 = vld [vmem:[%s667 + $0x2] sm:$0x1]
      %v1189 = vld [vmem:[%s667 + $0x3] sm:$0x1]
      %v1190 = vpack.c.bf16 %v1169, %v1169
      %v1191 = vpack.c.bf16 %v705, %v705
      %v1193 = vperm.slane %v1186, 0
      %v1199 = vunpack.c.l.b16 %v1170
      %v1200 = vunpack.c.l.b16 %v1171
      %v1201 = vunpack.c.l.b16 %v1172
      %v1202 = vunpack.c.l.b16 %v1173
      %v1203 = vpack.c.b16 %v1200, %v1199
      %v1204 = vpack.c.b16 %v1202, %v1201
      %v1208 = vsel %vm756, %v1190, 0
      %1210 = vmatpush.bf16.msra.mxu0 0
      %1211 = vmatpush.bf16.msra.mxu0 0
      %1212 = vmatpush.bf16.msra.mxu0 0
      %1213 = vmatpush.bf16.msra.mxu0 0
      %1214 = vmatpush.bf16.msra.mxu0 0
      %1215 = vmatpush.bf16.msra.mxu0 0
      %1216 = vmatpush.bf16.msra.mxu0 %v1204
      %1217 = vmatpush.bf16.msra.mxu0 %v1203
      %1218 = vmatmul.bf16.gmra.mxu0 %v1208
      %v1219 = vpop.f32.mrf.mxu0
      %v1220 = vadd.f32 %v1193, %v1219
      %v1221 = vpop.f32.mrf.mxu0
      %1222 = vdwg.mxu0
      %v1224 = vperm.slane %v1187, 0
      %v1230 = vunpack.c.l.b16 %v1174
      %v1231 = vunpack.c.l.b16 %v1175
      %v1232 = vunpack.c.l.b16 %v1176
      %v1233 = vunpack.c.l.b16 %v1177
      %v1234 = vpack.c.b16 %v1231, %v1230
      %v1235 = vpack.c.b16 %v1233, %v1232
      %v1239 = vsel %vm756, %v1191, 0
      %1241 = vmatpush.bf16.msra.mxu0 0
      %1242 = vmatpush.bf16.msra.mxu0 0
      %1243 = vmatpush.bf16.msra.mxu0 0
      %1244 = vmatpush.bf16.msra.mxu0 0
      %1245 = vmatpush.bf16.msra.mxu0 0
      %1246 = vmatpush.bf16.msra.mxu0 0
      %1247 = vmatpush.bf16.msra.mxu0 %v1235
      %1248 = vmatpush.bf16.msra.mxu0 %v1234
      %1249 = vmatmul.bf16.gmra.mxu0 %v1239
      %v1250 = vpop.f32.mrf.mxu0
      %v1251 = vadd.f32 %v1224, %v1250
      %v1252 = vpop.f32.mrf.mxu0
      %1253 = vdwg.mxu0
      %v1255 = vperm.slane %v1188, 0
      %v1261 = vunpack.c.l.b16 %v1178
      %v1262 = vunpack.c.l.b16 %v1179
      %v1263 = vunpack.c.l.b16 %v1180
      %v1264 = vunpack.c.l.b16 %v1181
      %v1265 = vpack.c.b16 %v1262, %v1261
      %v1266 = vpack.c.b16 %v1264, %v1263
      %1269 = vmatpush.bf16.msra.mxu0 0
      %1270 = vmatpush.bf16.msra.mxu0 0
      %1271 = vmatpush.bf16.msra.mxu0 0
      %1272 = vmatpush.bf16.msra.mxu0 0
      %1273 = vmatpush.bf16.msra.mxu0 0
      %1274 = vmatpush.bf16.msra.mxu0 0
      %1275 = vmatpush.bf16.msra.mxu0 %v1266
      %1276 = vmatpush.bf16.msra.mxu0 %v1265
      %1277 = vmatmul.bf16.gmra.mxu0 %v1239
      %v1278 = vpop.f32.mrf.mxu0
      %v1279 = vadd.f32 %v1255, %v1278
      %v1280 = vpop.f32.mrf.mxu0
      %1281 = vdwg.mxu0
      %1283 = vrot.lane.b32.xlu0 %v1220, 120
      %v1284 = vpop.permute.xlu0 %1283
      %1286 = vrot.lane.b32.xlu0 %v1220, 112
      %v1287 = vpop.permute.xlu0 %1286
      %1289 = vrot.lane.b32.xlu0 %v1220, 104
      %v1290 = vpop.permute.xlu0 %1289
      %1293 = vrot.lane.b32.xlu0 %v1251, 120
      %v1294 = vpop.permute.xlu0 %1293
      %1296 = vrot.lane.b32.xlu0 %v1251, 112
      %v1297 = vpop.permute.xlu0 %1296
      %1299 = vrot.lane.b32.xlu0 %v1251, 104
      %v1300 = vpop.permute.xlu0 %1299
      %1303 = vrot.lane.b32.xlu0 %v1279, 120
      %v1304 = vpop.permute.xlu0 %1303
      %1306 = vrot.lane.b32.xlu0 %v1279, 112
      %v1307 = vpop.permute.xlu0 %1306
      %1309 = vrot.lane.b32.xlu0 %v1279, 104
      %v1310 = vpop.permute.xlu0 %1309
      %v1312 = vpack.c.bf16 %v1220, %v1220
      %v1313 = vpack.c.bf16 %v1284, %v1284
      %v1314 = vpack.c.bf16 %v1287, %v1287
      %v1315 = vpack.c.bf16 %v1290, %v1290
      %v1316 = vpack.c.bf16 %v1251, %v1251
      %v1317 = vpack.c.bf16 %v1294, %v1294
      %v1318 = vpack.c.bf16 %v1297, %v1297
      %v1319 = vpack.c.bf16 %v1300, %v1300
      %v1321 = vsel %vm867, %v1312, 0
      %v1324 = vsel %vm867, %v1316, 0
      %1326 = vmatpush.bf16.xpose.msra.mxu0 0
      %1327 = vmatpush.bf16.xpose.msra.mxu0 0
      %1328 = vmatpush.bf16.xpose.msra.mxu0 0
      %1329 = vmatpush.bf16.xpose.msra.mxu0 0
      %1330 = vmatpush.bf16.xpose.msra.mxu0 0
      %1331 = vmatpush.bf16.xpose.msra.mxu0 0
      %1332 = vmatpush.bf16.xpose.msra.mxu0 0
      %1333 = vmatpush.bf16.xpose.msra.mxu0 %v1324
      %1334 = vmatmul.bf16.gmra.mxu0 %v1321
      %v1335 = vpop.f32.mrf.mxu0
      %v1336 = vadd.f32 0.0, %v1335
      %v1337 = vpop.f32.mrf.mxu0
      %1338 = vdwg.mxu0
      %v1340 = vsel %vm867, %v1313, 0
      %v1343 = vsel %vm867, %v1317, 0
      %1345 = vmatpush.bf16.xpose.msra.mxu0 0
      %1346 = vmatpush.bf16.xpose.msra.mxu0 0
      %1347 = vmatpush.bf16.xpose.msra.mxu0 0
      %1348 = vmatpush.bf16.xpose.msra.mxu0 0
      %1349 = vmatpush.bf16.xpose.msra.mxu0 0
      %1350 = vmatpush.bf16.xpose.msra.mxu0 0
      %1351 = vmatpush.bf16.xpose.msra.mxu0 0
      %1352 = vmatpush.bf16.xpose.msra.mxu0 %v1343
      %1353 = vmatmul.bf16.gmra.mxu0 %v1340
      %v1354 = vpop.f32.mrf.mxu0
      %v1355 = vadd.f32 0.0, %v1354
      %v1356 = vpop.f32.mrf.mxu0
      %1357 = vdwg.mxu0
      %v1359 = vsel %vm867, %v1314, 0
      %v1362 = vsel %vm867, %v1318, 0
      %1364 = vmatpush.bf16.xpose.msra.mxu0 0
      %1365 = vmatpush.bf16.xpose.msra.mxu0 0
      %1366 = vmatpush.bf16.xpose.msra.mxu0 0
      %1367 = vmatpush.bf16.xpose.msra.mxu0 0
      %1368 = vmatpush.bf16.xpose.msra.mxu0 0
      %1369 = vmatpush.bf16.xpose.msra.mxu0 0
      %1370 = vmatpush.bf16.xpose.msra.mxu0 0
      %1371 = vmatpush.bf16.xpose.msra.mxu0 %v1362
      %1372 = vmatmul.bf16.gmra.mxu0 %v1359
      %v1373 = vpop.f32.mrf.mxu0
      %v1374 = vadd.f32 0.0, %v1373
      %v1375 = vpop.f32.mrf.mxu0
      %1376 = vdwg.mxu0
      %v1378 = vsel %vm867, %v1315, 0
      %v1381 = vsel %vm867, %v1319, 0
      %1383 = vmatpush.bf16.xpose.msra.mxu0 0
      %1384 = vmatpush.bf16.xpose.msra.mxu0 0
      %1385 = vmatpush.bf16.xpose.msra.mxu0 0
      %1386 = vmatpush.bf16.xpose.msra.mxu0 0
      %1387 = vmatpush.bf16.xpose.msra.mxu0 0
      %1388 = vmatpush.bf16.xpose.msra.mxu0 0
      %1389 = vmatpush.bf16.xpose.msra.mxu0 0
      %1390 = vmatpush.bf16.xpose.msra.mxu0 %v1381
      %1391 = vmatmul.bf16.gmra.mxu0 %v1378
      %v1392 = vpop.f32.mrf.mxu0
      %v1393 = vadd.f32 0.0, %v1392
      %v1394 = vpop.f32.mrf.mxu0
      %1395 = vdwg.mxu0
      %v1396 = vmul.f32 %v1336, 0.35355338
      %v1397 = vmul.f32 %v1355, 0.35355338
      %v1398 = vmul.f32 %v1374, 0.35355338
      %v1399 = vmul.f32 %v1393, 0.35355338
      %v1401 = vperm.slane %v707, 0
      %v1403 = vadd.f32 %v1396, %v1401
      %v1404 = vadd.f32 %v1397, %v1401
      %v1405 = vadd.f32 %v1398, %v1401
      %v1406 = vadd.f32 %v1399, %v1401
      %v1407 = vsel %vm867, %v1403, -inf
      %1408 = vmax.xlane.f32.xlu0 %v1407
      %v1409 = vpop.xlane.xlu0 %1408
      %v1410 = vsel %vm867, %v1404, -inf
      %1411 = vmax.xlane.f32.xlu0 %v1410
      %v1412 = vpop.xlane.xlu0 %1411
      %v1413 = vsel %vm867, %v1405, -inf
      %1414 = vmax.xlane.f32.xlu0 %v1413
      %v1415 = vpop.xlane.xlu0 %1414
      %v1416 = vsel %vm867, %v1406, -inf
      %1417 = vmax.xlane.f32.xlu0 %v1416
      %v1418 = vpop.xlane.xlu0 %1417
      %v1419 = vsub.f32 %v1403, %v1409
      %v1420 = vsub.f32 %v1404, %v1412
      %v1421 = vsub.f32 %v1405, %v1415
      %v1422 = vsub.f32 %v1406, %v1418
      %v1423 = vmul.f32 %v1419, 1.442695
      %v1424 = vpow.pop %v1423
      %v1425 = vmul.f32 %v1420, 1.442695
      %v1426 = vpow.pop %v1425
      %v1427 = vmul.f32 %v1421, 1.442695
      %v1428 = vpow.pop %v1427
      %v1429 = vmul.f32 %v1422, 1.442695
      %v1430 = vpow.pop %v1429
      %v1431 = vsel %vm867, %v1424, 0.0
      %1432 = vadd.xlane.f32.xlu0 %v1431
      %v1433 = vpop.xlane.xlu0 %1432
      %v1434 = vsel %vm867, %v1426, 0.0
      %1435 = vadd.xlane.f32.xlu0 %v1434
      %v1436 = vpop.xlane.xlu0 %1435
      %v1437 = vsel %vm867, %v1428, 0.0
      %1438 = vadd.xlane.f32.xlu0 %v1437
      %v1439 = vpop.xlane.xlu0 %1438
      %v1440 = vsel %vm867, %v1430, 0.0
      %1441 = vadd.xlane.f32.xlu0 %v1440
      %v1442 = vpop.xlane.xlu0 %1441
      %v1443 = vrcp.pop %v1433
      %v1444 = vrcp.pop %v1436
      %v1445 = vrcp.pop %v1439
      %v1446 = vrcp.pop %v1442
      %v1447 = vmul.f32 %v1424, %v1443
      %v1448 = vmul.f32 %v1426, %v1444
      %v1449 = vmul.f32 %v1428, %v1445
      %v1450 = vmul.f32 %v1430, %v1446
      %v1451 = vpack.c.bf16 %v1447, %v1447
      %v1452 = vpack.c.bf16 %v1448, %v1448
      %v1453 = vpack.c.bf16 %v1449, %v1449
      %v1454 = vpack.c.bf16 %v1450, %v1450
      %v1455 = vpack.c.bf16 %v1279, %v1279
      %v1456 = vpack.c.bf16 %v1304, %v1304
      %v1457 = vpack.c.bf16 %v1307, %v1307
      %v1458 = vpack.c.bf16 %v1310, %v1310
      %v1460 = vsel %vm867, %v1451, 0
      %v1463 = vsel %vm1014, %v1455, 0
      %1465 = vmatpush.bf16.msra.mxu0 0
      %1466 = vmatpush.bf16.msra.mxu0 0
      %1467 = vmatpush.bf16.msra.mxu0 0
      %1468 = vmatpush.bf16.msra.mxu0 0
      %1469 = vmatpush.bf16.msra.mxu0 0
      %1470 = vmatpush.bf16.msra.mxu0 0
      %1471 = vmatpush.bf16.msra.mxu0 0
      %1472 = vmatpush.bf16.msra.mxu0 %v1463
      %1473 = vmatmul.bf16.gmra.mxu0 %v1460
      %v1474 = vpop.f32.mrf.mxu0
      %v1475 = vadd.f32 0.0, %v1474
      %v1476 = vpop.f32.mrf.mxu0
      %1477 = vdwg.mxu0
      %v1479 = vsel %vm867, %v1452, 0
      %v1482 = vsel %vm1014, %v1456, 0
      %1484 = vmatpush.bf16.msra.mxu0 0
      %1485 = vmatpush.bf16.msra.mxu0 0
      %1486 = vmatpush.bf16.msra.mxu0 0
      %1487 = vmatpush.bf16.msra.mxu0 0
      %1488 = vmatpush.bf16.msra.mxu0 0
      %1489 = vmatpush.bf16.msra.mxu0 0
      %1490 = vmatpush.bf16.msra.mxu0 0
      %1491 = vmatpush.bf16.msra.mxu0 %v1482
      %1492 = vmatmul.bf16.gmra.mxu0 %v1479
      %v1493 = vpop.f32.mrf.mxu0
      %v1494 = vadd.f32 0.0, %v1493
      %v1495 = vpop.f32.mrf.mxu0
      %1496 = vdwg.mxu0
      %v1498 = vsel %vm867, %v1453, 0
      %v1501 = vsel %vm1014, %v1457, 0
      %1503 = vmatpush.bf16.msra.mxu0 0
      %1504 = vmatpush.bf16.msra.mxu0 0
      %1505 = vmatpush.bf16.msra.mxu0 0
      %1506 = vmatpush.bf16.msra.mxu0 0
      %1507 = vmatpush.bf16.msra.mxu0 0
      %1508 = vmatpush.bf16.msra.mxu0 0
      %1509 = vmatpush.bf16.msra.mxu0 0
      %1510 = vmatpush.bf16.msra.mxu0 %v1501
      %1511 = vmatmul.bf16.gmra.mxu0 %v1498
      %v1512 = vpop.f32.mrf.mxu0
      %v1513 = vadd.f32 0.0, %v1512
      %v1514 = vpop.f32.mrf.mxu0
      %1515 = vdwg.mxu0
      %v1517 = vsel %vm867, %v1454, 0
      %v1520 = vsel %vm1014, %v1458, 0
      %1522 = vmatpush.bf16.msra.mxu0 0
      %1523 = vmatpush.bf16.msra.mxu0 0
      %1524 = vmatpush.bf16.msra.mxu0 0
      %1525 = vmatpush.bf16.msra.mxu0 0
      %1526 = vmatpush.bf16.msra.mxu0 0
      %1527 = vmatpush.bf16.msra.mxu0 0
      %1528 = vmatpush.bf16.msra.mxu0 0
      %1529 = vmatpush.bf16.msra.mxu0 %v1520
      %1530 = vmatmul.bf16.gmra.mxu0 %v1517
      %v1531 = vpop.f32.mrf.mxu0
      %v1532 = vadd.f32 0.0, %v1531
      %v1533 = vpop.f32.mrf.mxu0
      %1534 = vdwg.mxu0
      %1536 = vrot.lane.b32.xlu0 %v1494, 8
      %v1537 = vpop.permute.xlu0 %1536
      %1540 = vrot.lane.b32.xlu0 %v1513, 16
      %v1541 = vpop.permute.xlu0 %1540
      %1544 = vrot.lane.b32.xlu0 %v1532, 24
      %v1545 = vpop.permute.xlu0 %1544
      %v1547 = vsel %vm867, %v1475, %v1537
      %v1548 = vsel %vm1101, %v1547, %v1541
      %v1549 = vsel %vm1103, %v1548, %v1545
      %v1550 = vpack.c.bf16 %v1549, %v1549
      %v1552 = vperm.slane %v1189, 0
      %v1558 = vunpack.c.l.b16 %v1182
      %v1559 = vunpack.c.l.b16 %v1183
      %v1560 = vunpack.c.l.b16 %v1184
      %v1561 = vunpack.c.l.b16 %v1185
      %v1562 = vpack.c.b16 %v1559, %v1558
      %v1563 = vpack.c.b16 %v1561, %v1560
      %v1567 = vsel %vm756, %v1550, 0
      %1569 = vmatpush.bf16.msra.mxu0 0
      %1570 = vmatpush.bf16.msra.mxu0 0
      %1571 = vmatpush.bf16.msra.mxu0 0
      %1572 = vmatpush.bf16.msra.mxu0 0
      %1573 = vmatpush.bf16.msra.mxu0 0
      %1574 = vmatpush.bf16.msra.mxu0 0
      %1575 = vmatpush.bf16.msra.mxu0 %v1563
      %1576 = vmatpush.bf16.msra.mxu0 %v1562
      %1577 = vmatmul.bf16.gmra.mxu0 %v1567
      %v1578 = vpop.f32.mrf.mxu0
      %v1579 = vadd.f32 %v1552, %v1578
      %v1580 = vpop.f32.mrf.mxu0
      %1581 = vdwg.mxu0
      %v1582 = vadd.f32 %v1169, %v1579
      %v1583 = vsel %vm756, %v1582, 0.0
      %1584 = vadd.xlane.f32.xlu0 %v1583
      %v1585 = vpop.xlane.xlu0 %1584
      %v1586 = vmul.f32 %v1582, %v1582
      %v1587 = vsel %vm756, %v1586, 0.0
      %1588 = vadd.xlane.f32.xlu0 %v1587
      %v1589 = vpop.xlane.xlu0 %1588
      %v1590 = vmul.f32 %v1585, 0.03125
      %v1591 = vmul.f32 %v1589, 0.03125
      %v1592 = vmul.f32 %v1590, %v1590
      %v1593 = vsub.f32 %v1591, %v1592
      %v1594 = vsub.f32 %v1582, %v1590
      %v1595 = vadd.f32 %v1593, 1e-05
      %v1596 = vrsqrt.pop %v1595
      %v1597 = vmul.f32 %v1596, %v1595
      %v1598 = vmul.f32 %v1597, %v1596
      %v1599 = vmul.f32 0.5, %v1598
      %v1600 = vsub.f32 1.5, %v1599
      %v1601 = vmul.f32 %v1596, %v1600
      %vm1602 = vweird.f32 %v1595
      %vm1603 = vweird.f32 %v1596
      %vm1604 = vmor %vm1602, %vm1603
      %v1605 = vsel %vm1604, %v1596, %v1601
      %v1606 = vmul.f32 %v1594, %v1605
      %v1608 = vperm.slane %v715, 0
      %v1610 = vmul.f32 %v1606, %v1608
      %v1612 = vperm.slane %v718, 0
      %v1614 = vadd.f32 %v1610, %v1612
      %v1615 = vld [vmem:[%s680] sm:$0xf]
      %v1616 = vld [vmem:[%s680 + $0x4] sm:$0xf]
      %v1617 = vld [vmem:[%s680 + $0x8] sm:$0xf]
      %v1618 = vld [vmem:[%s680 + $0xc] sm:$0xf]
      %v1619 = vld [vmem:[%s683] sm:$0x1]
      %v1620 = vld [vmem:[%s688] sm:$0xf]
      %v1621 = vld [vmem:[%s688 + $0x4] sm:$0xf]
      %v1622 = vld [vmem:[%s688 + $0x8] sm:$0xf]
      %v1623 = vld [vmem:[%s688 + $0xc] sm:$0xf]
      %v1624 = vld [vmem:[%s688 + $0x10] sm:$0xf]
      %v1625 = vld [vmem:[%s688 + $0x14] sm:$0xf]
      %v1626 = vld [vmem:[%s688 + $0x18] sm:$0xf]
      %v1627 = vld [vmem:[%s688 + $0x1c] sm:$0xf]
      %v1628 = vld [vmem:[%s691] sm:$0x1]
      %v1629 = vpack.c.bf16 %v1614, %v1614
      %v1631 = vperm.slane %v1619, 0
      %v1637 = vunpack.c.l.b16 %v1615
      %v1638 = vunpack.c.l.b16 %v1616
      %v1639 = vunpack.c.l.b16 %v1617
      %v1640 = vunpack.c.l.b16 %v1618
      %v1641 = vpack.c.b16 %v1638, %v1637
      %v1642 = vpack.c.b16 %v1640, %v1639
      %v1646 = vsel %vm756, %v1629, 0
      %1648 = vmatpush.bf16.msra.mxu0 0
      %1649 = vmatpush.bf16.msra.mxu0 0
      %1650 = vmatpush.bf16.msra.mxu0 0
      %1651 = vmatpush.bf16.msra.mxu0 0
      %1652 = vmatpush.bf16.msra.mxu0 0
      %1653 = vmatpush.bf16.msra.mxu0 0
      %1654 = vmatpush.bf16.msra.mxu0 %v1642
      %1655 = vmatpush.bf16.msra.mxu0 %v1641
      %1656 = vmatmul.bf16.gmra.mxu0 %v1646
      %v1657 = vpop.f32.mrf.mxu0
      %v1658 = vadd.f32 %v1631, %v1657
      %v1659 = vpop.f32.mrf.mxu0
      %1660 = vdwg.mxu0
      %v1661 = vmax.f32 %v1658, 0.0
      %v1662 = vpack.c.bf16 %v1661, %v1661
      %v1664 = vperm.slane %v1628, 0
      %v1674 = vunpack.c.l.b16 %v1620
      %v1675 = vunpack.c.l.b16 %v1621
      %v1676 = vunpack.c.l.b16 %v1622
      %v1677 = vunpack.c.l.b16 %v1623
      %v1678 = vunpack.c.l.b16 %v1624
      %v1679 = vunpack.c.l.b16 %v1625
      %v1680 = vunpack.c.l.b16 %v1626
      %v1681 = vunpack.c.l.b16 %v1627
      %v1682 = vpack.c.b16 %v1675, %v1674
      %v1683 = vpack.c.b16 %v1677, %v1676
      %v1684 = vpack.c.b16 %v1679, %v1678
      %v1685 = vpack.c.b16 %v1681, %v1680
      %vm1690 = vcmask 523264
      %v1692 = vsel %vm1690, %v1662, 0
      %1694 = vmatpush.bf16.msra.mxu0 0
      %1695 = vmatpush.bf16.msra.mxu0 0
      %1696 = vmatpush.bf16.msra.mxu0 0
      %1697 = vmatpush.bf16.msra.mxu0 0
      %1698 = vmatpush.bf16.msra.mxu0 %v1685
      %1699 = vmatpush.bf16.msra.mxu0 %v1684
      %1700 = vmatpush.bf16.msra.mxu0 %v1683
      %1701 = vmatpush.bf16.msra.mxu0 %v1682
      %1702 = vmatmul.bf16.gmra.mxu0 %v1692
      %v1703 = vpop.f32.mrf.mxu0
      %v1704 = vadd.f32 %v1664, %v1703
      %v1705 = vpop.f32.mrf.mxu0
      %1706 = vdwg.mxu0
      %v1707 = vadd.f32 %v1614, %v1704
      %v1708 = vsel %vm756, %v1707, 0.0
      %1709 = vadd.xlane.f32.xlu0 %v1708
      %v1710 = vpop.xlane.xlu0 %1709
      %v1711 = vmul.f32 %v1707, %v1707
      %v1712 = vsel %vm756, %v1711, 0.0
      %1713 = vadd.xlane.f32.xlu0 %v1712
      %v1714 = vpop.xlane.xlu0 %1713
      %v1715 = vmul.f32 %v1710, 0.03125
      %v1716 = vmul.f32 %v1714, 0.03125
      %v1717 = vmul.f32 %v1715, %v1715
      %v1718 = vsub.f32 %v1716, %v1717
      %v1719 = vsub.f32 %v1707, %v1715
      %v1720 = vadd.f32 %v1718, 1e-05
      %v1721 = vrsqrt.pop %v1720
      %v1722 = vmul.f32 %v1721, %v1720
      %v1723 = vmul.f32 %v1722, %v1721
      %v1724 = vmul.f32 0.5, %v1723
      %v1725 = vsub.f32 1.5, %v1724
      %v1726 = vmul.f32 %v1721, %v1725
      %vm1727 = vweird.f32 %v1720
      %vm1728 = vweird.f32 %v1721
      %vm1729 = vmor %vm1727, %vm1728
      %v1730 = vsel %vm1729, %v1721, %v1726
      %v1731 = vmul.f32 %v1719, %v1730
      %v1733 = vperm.slane %v716, 0
      %v1735 = vmul.f32 %v1731, %v1733
      %v1737 = vperm.slane %v719, 0
      %v1739 = vadd.f32 %v1735, %v1737
      %1740 = vst.msk [vmem:[#allocation2] sm:$0xff] %vm756, %v1739
      %p1741 = scmp.eq.s32.totalorder %s30, 1
      // Predicated region
      $region81: #{transformer_forward.4} parent=75 // pred_check
        %p1742 = pneg %p1741
      $region82: #{transformer_forward.4} parent=75 // pred_check_branch
        %1744 = sbr.rel (%p1742) target = $region84
      $region83: #{transformer_forward.4} parent=75 // pred_region
        %1745 = vst.msk [vmem:[%s695] sm:$0xff] %vm756, %v1739
      $region84: #{transformer_forward.4} parent=75 // pred_fallthru
        _
      %p1746 = scmp.lt.s32.totalorder %s29, 1
      %s1747 = scalar_select %p1746, %s29, 1
      %s1748 = smul.addr %s1747, 8
      %s1749 = scalar_lea.vmem %s14, %s1748
      // Predicated region
      $region85: #{transformer_forward.4} parent=75 // pred_check
        %p1750 = pneg %p419
      $region86: #{transformer_forward.4} parent=75 // pred_check_branch
        %1752 = sbr.rel (%p1750) target = $region88
      $region87: #{transformer_forward.4} parent=75 // pred_region
        _
      $region88: #{transformer_forward.4} parent=75 // pred_fallthru
        _
    $region76: #{transformer_forward.4} parent=5 // pred_fallthru
      _
    %p1753 = scmp.le.s32.totalorder 2, %s20
    // Predicated region
    $region89: #{transformer_forward.4} parent=5 // pred_check
      %p1754 = pneg %p1753
    $region90: #{transformer_forward.4} parent=5 // pred_check_branch
      %1756 = sbr.rel (%p1754) target = $region92
    $region91: #{transformer_forward.4} parent=5 // pred_region
      %s1757 = ssub.s32 %s20, 2
      // Predicated region
      $region93: #{transformer_forward.4} parent=91 // pred_check
        %p1758 = pneg %p425
      $region94: #{transformer_forward.4} parent=91 // pred_check_branch
        %1760 = sbr.rel (%p1758) target = $region96
      $region95: #{transformer_forward.4} parent=91 // pred_region
        %p1761 = scmp.lt.s32.totalorder %s31, 1
        %s1762 = scalar_select %p1761, %s31, 1
        %s1763 = smul.addr %s1762, 8
        %s1764 = scalar_lea.vmem %s14, %s1763
      $region96: #{transformer_forward.4} parent=91 // pred_fallthru
        _
    $region92: #{transformer_forward.4} parent=5 // pred_fallthru
      _
  $region6: #{transformer_forward.4} parent=0 // loop_footer
    %s24 = sadd.s32 1, %s20
  $region7: #{transformer_forward.4} parent=0 // loop_footer_branch
    %19 = sbr.rel target = $region3
  $region8: #{transformer_forward.4} parent=0 // loop_exit
    _

</llo_original>
